<compile_context>
chip_gen: v7x
topology: tpu7x:2x2x1
jax: 0.10.0
libtpu: 0.0.40
codegen_flags: <defaults>
</compile_context>

<pallas_src>
import functools
import math

import jax
import jax.numpy as jnp
from jax.experimental import pallas as pl
from jax.experimental.pallas import tpu as pltpu

# ---------------- config (scaled-down bert-base) ----------------
VOCAB = 64
HIDDEN = 128
HEADS = 2
HEAD_DIM = HIDDEN // HEADS
INTERMEDIATE = 256
LAYERS = 2
MAX_POS = 16
DIMS = 6          # ['cohesion','syntax','vocabulary','phraseology','grammar','conventions']
OUT_PAD = 128     # lane-dense padded width of the regression head output
LN_EPS = 1e-12


# ---------------- fused encoder kernel ----------------
def _encoder_kernel(B, S,
                    emb_ref, mask_ref, emb_g_ref, emb_b_ref,
                    wqkv_ref, bqkv_ref, wo_ref, bo_ref, ln1g_ref, ln1b_ref,
                    w1_ref, b1_ref, w2_ref, b2_ref, ln2g_ref, ln2b_ref,
                    poolw_ref, poolb_ref, headw_ref, headb_ref,
                    out_ref):
    H = HIDDEN
    Dh = HEAD_DIM
    scale = 1.0 / math.sqrt(Dh)

    def layernorm(y, g, b):
        mean = jnp.mean(y, axis=-1, keepdims=True)
        cen = y - mean
        var = jnp.mean(cen * cen, axis=-1, keepdims=True)
        return cen * jax.lax.rsqrt(var + LN_EPS) * g + b

    # --- embedding LayerNorm (we + pe + te computed in the wrapper) ---
    x = layernorm(emb_ref[...], emb_g_ref[...], emb_b_ref[...])        # (B*S, H)
    mask = mask_ref[...]                                               # (B, S) additive key mask

    # --- encoder layers (static Python loop; LAYERS=2) ---
    for l in range(LAYERS):
        # fused QKV projection: (B*S, H) @ (H, 3H) -> (B*S, 3H)
        qkv = jnp.dot(x, wqkv_ref[l], preferred_element_type=jnp.float32) + bqkv_ref[l]

        ctx_rows = []
        for b in range(B):                                             # static loop, B=2
            rows = qkv[b * S:(b + 1) * S, :]                           # (S, 3H) static slice
            mb = mask[b:b + 1, :]                                      # (1, S)
            head_outs = []
            for h in range(HEADS):                                     # static loop, HEADS=2
                qh = rows[:, h * Dh:(h + 1) * Dh]                      # (S, Dh) contiguous lanes
                kh = rows[:, H + h * Dh: H + (h + 1) * Dh]
                vh = rows[:, 2 * H + h * Dh: 2 * H + (h + 1) * Dh]
                # contract last axes of q and k directly (no k.T materialization)
                s = jax.lax.dot_general(
                    qh, kh, (((1,), (1,)), ((), ())),
                    preferred_element_type=jnp.float32) * scale        # (S, S)
                s = s + mb
                smax = jnp.max(s, axis=-1, keepdims=True)
                p = jnp.exp(s - smax)
                denom = jnp.sum(p, axis=-1, keepdims=True)
                p = p * pl.reciprocal(denom, approx=True)              # EUP path, ~free
                head_outs.append(
                    jnp.dot(p, vh, preferred_element_type=jnp.float32))  # (S, Dh)
            ctx_rows.append(jnp.concatenate(head_outs, axis=1))        # (S, H)
        ctx = jnp.concatenate(ctx_rows, axis=0)                        # (B*S, H)

        # attention output projection + residual + LN
        attn_out = jnp.dot(ctx, wo_ref[l], preferred_element_type=jnp.float32) + bo_ref[l]
        x = layernorm(attn_out + x, ln1g_ref[l], ln1b_ref[l])

        # FFN: Linear -> GELU -> Linear, residual + LN
        ffn = jnp.dot(x, w1_ref[l], preferred_element_type=jnp.float32) + b1_ref[l]
        # TODO(synk): HF BERT uses erf-GELU; tanh-approx GELU is used here to stay on
        # the EUP-friendly tanh path (small numerical difference vs. the PyTorch ref).
        ffn = 0.5 * ffn * (1.0 + jnp.tanh(
            0.7978845608028654 * (ffn + 0.044715 * ffn * ffn * ffn)))
        ffn = jnp.dot(ffn, w2_ref[l], preferred_element_type=jnp.float32) + b2_ref[l]
        x = layernorm(ffn + x, ln2g_ref[l], ln2b_ref[l])

    # --- pooler: tanh(Linear(h_[CLS])) on row b*S of each sequence ---
    cls = jnp.concatenate([x[b * S:b * S + 1, :] for b in range(B)], axis=0)   # (B, H)
    pooled = jnp.tanh(
        jnp.dot(cls, poolw_ref[...], preferred_element_type=jnp.float32) + poolb_ref[...])

    # --- regression head, lane-dense (padded to OUT_PAD columns) ---
    out = jnp.dot(pooled, headw_ref[...], preferred_element_type=jnp.float32) + headb_ref[...]
    out_ref[...] = out.astype(out_ref.dtype)                           # (B, OUT_PAD)


def _zero_map(ndim):
    return lambda i: (0,) * ndim


def fused_encoder(emb_sum, mask_add, p, B, S):
    args = [
        emb_sum, mask_add, p["emb_ln_g"], p["emb_ln_b"],
        p["wqkv"], p["bqkv"], p["wo"], p["bo"], p["ln1_g"], p["ln1_b"],
        p["w1"], p["b1"], p["w2"], p["b2"], p["ln2_g"], p["ln2_b"],
        p["pool_w"], p["pool_b"], p["head_w_pad"], p["head_b_pad"],
    ]
    in_specs = [pl.BlockSpec(a.shape, _zero_map(a.ndim)) for a in args]
    kernel = functools.partial(_encoder_kernel, B, S)
    return pl.pallas_call(
        kernel,
        out_shape=jax.ShapeDtypeStruct((B, OUT_PAD), jnp.float32),
        grid=(1,),
        in_specs=in_specs,
        out_specs=pl.BlockSpec((B, OUT_PAD), lambda i: (0, 0)),
        compiler_params=pltpu.CompilerParams(dimension_semantics=("arbitrary",)),
    )(*args)


# ---------------- parameter init (deterministic, packed for the fused kernel) ----------------
def init_params(key):
    std = 0.02

    def nrm(k, shape):
        return jax.random.normal(k, shape, jnp.float32) * std

    keys = iter(jax.random.split(key, 256))

    params = {
        "word_emb": nrm(next(keys), (VOCAB, HIDDEN)),
        "pos_emb": nrm(next(keys), (MAX_POS, HIDDEN)),
        "type_emb": nrm(next(keys), (2, HIDDEN)),
        "emb_ln_g": jnp.ones((1, HIDDEN), jnp.float32),
        "emb_ln_b": jnp.zeros((1, HIDDEN), jnp.float32),
        "pool_w": nrm(next(keys), (HIDDEN, HIDDEN)),
        "pool_b": jnp.zeros((1, HIDDEN), jnp.float32),
    }

    # regression head, zero-padded to a lane-dense 128-wide output
    head_w = nrm(next(keys), (HIDDEN, DIMS))
    params["head_w_pad"] = jnp.zeros((HIDDEN, OUT_PAD), jnp.float32).at[:, :DIMS].set(head_w)
    params["head_b_pad"] = jnp.zeros((1, OUT_PAD), jnp.float32)

    wqkv, bqkv, wo, bo = [], [], [], []
    ln1g, ln1b, w1, b1, w2, b2, ln2g, ln2b = [], [], [], [], [], [], [], []
    for _ in range(LAYERS):
        wq = nrm(next(keys), (HIDDEN, HIDDEN))
        wk = nrm(next(keys), (HIDDEN, HIDDEN))
        wv = nrm(next(keys), (HIDDEN, HIDDEN))
        wqkv.append(jnp.concatenate([wq, wk, wv], axis=1))            # (H, 3H)
        bqkv.append(jnp.zeros((1, 3 * HIDDEN), jnp.float32))
        wo.append(nrm(next(keys), (HIDDEN, HIDDEN)))
        bo.append(jnp.zeros((1, HIDDEN), jnp.float32))
        ln1g.append(jnp.ones((1, HIDDEN), jnp.float32))
        ln1b.append(jnp.zeros((1, HIDDEN), jnp.float32))
        w1.append(nrm(next(keys), (HIDDEN, INTERMEDIATE)))
        b1.append(jnp.zeros((1, INTERMEDIATE), jnp.float32))
        w2.append(nrm(next(keys), (INTERMEDIATE, HIDDEN)))
        b2.append(jnp.zeros((1, HIDDEN), jnp.float32))
        ln2g.append(jnp.ones((1, HIDDEN), jnp.float32))
        ln2b.append(jnp.zeros((1, HIDDEN), jnp.float32))

    params.update({
        "wqkv": jnp.stack(wqkv), "bqkv": jnp.stack(bqkv),
        "wo": jnp.stack(wo), "bo": jnp.stack(bo),
        "ln1_g": jnp.stack(ln1g), "ln1_b": jnp.stack(ln1b),
        "w1": jnp.stack(w1), "b1": jnp.stack(b1),
        "w2": jnp.stack(w2), "b2": jnp.stack(b2),
        "ln2_g": jnp.stack(ln2g), "ln2_b": jnp.stack(ln2b),
    })
    return params


# ---------------- forward pass ----------------
def bert_multidim_regression_forward(params, input_ids, attention_mask):
    B, S = input_ids.shape
    assert S <= MAX_POS, f"sequence length {S} exceeds MAX_POS={MAX_POS}"

    # embeddings gather stays as tiny plain-JAX glue; LN happens inside the kernel
    we = jnp.take(params["word_emb"], input_ids.reshape(-1), axis=0)                 # (B*S, H)
    pe = jnp.take(params["pos_emb"], jnp.tile(jnp.arange(S, dtype=jnp.int32), B), axis=0)
    te = jnp.broadcast_to(params["type_emb"][0], (B * S, HIDDEN))                    # token_type_ids = 0
    emb_sum = we + pe + te                                                           # (B*S, H)

    # additive attention key mask, per batch: (B, S)
    mask_add = (1.0 - attention_mask.astype(jnp.float32)) * -10000.0

    out_pad = fused_encoder(emb_sum, mask_add, params, B, S)                         # (B, 128)
    return out_pad[:, :DIMS]                                                         # (B, 6)


if __name__ == "__main__":
    B, S = 2, 8
    key = jax.random.PRNGKey(0)
    k_param, k_ids = jax.random.split(key)

    params = init_params(k_param)
    input_ids = jax.random.randint(k_ids, (B, S), 0, VOCAB, dtype=jnp.int32)
    attention_mask = jnp.ones((B, S), jnp.int32).at[1, 6:].set(0)   # second sequence padded

    fwd = jax.jit(bert_multidim_regression_forward)
    out = fwd(params, input_ids, attention_mask)
    jax.block_until_ready(out)

    assert out.shape == (B, DIMS) and out.dtype == jnp.float32
    assert bool(jnp.all(jnp.isfinite(out)))
    print("KERNEL_OK")
</pallas_src>

<mosaic_0001>
module attributes {stable_mosaic.version = 11 : i64} {
  func.func @_encoder_kernel(%arg0: i32, %arg1: memref<16x128xf32, #tpu.memory_space<vmem>>, %arg2: memref<2x8xf32, #tpu.memory_space<vmem>>, %arg3: memref<1x128xf32, #tpu.memory_space<vmem>>, %arg4: memref<1x128xf32, #tpu.memory_space<vmem>>, %arg5: memref<2x128x384xf32, #tpu.memory_space<vmem>>, %arg6: memref<2x1x384xf32, #tpu.memory_space<vmem>>, %arg7: memref<2x128x128xf32, #tpu.memory_space<vmem>>, %arg8: memref<2x1x128xf32, #tpu.memory_space<vmem>>, %arg9: memref<2x1x128xf32, #tpu.memory_space<vmem>>, %arg10: memref<2x1x128xf32, #tpu.memory_space<vmem>>, %arg11: memref<2x128x256xf32, #tpu.memory_space<vmem>>, %arg12: memref<2x1x256xf32, #tpu.memory_space<vmem>>, %arg13: memref<2x256x128xf32, #tpu.memory_space<vmem>>, %arg14: memref<2x1x128xf32, #tpu.memory_space<vmem>>, %arg15: memref<2x1x128xf32, #tpu.memory_space<vmem>>, %arg16: memref<2x1x128xf32, #tpu.memory_space<vmem>>, %arg17: memref<128x128xf32, #tpu.memory_space<vmem>>, %arg18: memref<1x128xf32, #tpu.memory_space<vmem>>, %arg19: memref<128x128xf32, #tpu.memory_space<vmem>>, %arg20: memref<1x128xf32, #tpu.memory_space<vmem>>, %arg21: memref<2x128xf32, #tpu.memory_space<vmem>>) attributes {dimension_semantics = [#tpu.dimension_semantics<arbitrary>], iteration_bounds = array<i64: 1>, scalar_prefetch = 0 : i64, scratch_operands = 0 : i64, tpu.core_type = #tpu.core_type<tc>, window_params = [{pipeline_mode = #tpu.pipeline_mode<synchronous>, transform_indices = @transform_0, window_bounds = array<i64: 16, 128>}, {pipeline_mode = #tpu.pipeline_mode<synchronous>, transform_indices = @transform_1, window_bounds = array<i64: 2, 8>}, {pipeline_mode = #tpu.pipeline_mode<synchronous>, transform_indices = @transform_2, window_bounds = array<i64: 1, 128>}, {pipeline_mode = #tpu.pipeline_mode<synchronous>, transform_indices = @transform_3, window_bounds = array<i64: 1, 128>}, {pipeline_mode = #tpu.pipeline_mode<synchronous>, transform_indices = @transform_4, window_bounds = array<i64: 2, 128, 384>}, {pipeline_mode = #tpu.pipeline_mode<synchronous>, transform_indices = @transform_5, window_bounds = array<i64: 2, 1, 384>}, {pipeline_mode = #tpu.pipeline_mode<synchronous>, transform_indices = @transform_6, window_bounds = array<i64: 2, 128, 128>}, {pipeline_mode = #tpu.pipeline_mode<synchronous>, transform_indices = @transform_7, window_bounds = array<i64: 2, 1, 128>}, {pipeline_mode = #tpu.pipeline_mode<synchronous>, transform_indices = @transform_8, window_bounds = array<i64: 2, 1, 128>}, {pipeline_mode = #tpu.pipeline_mode<synchronous>, transform_indices = @transform_9, window_bounds = array<i64: 2, 1, 128>}, {pipeline_mode = #tpu.pipeline_mode<synchronous>, transform_indices = @transform_10, window_bounds = array<i64: 2, 128, 256>}, {pipeline_mode = #tpu.pipeline_mode<synchronous>, transform_indices = @transform_11, window_bounds = array<i64: 2, 1, 256>}, {pipeline_mode = #tpu.pipeline_mode<synchronous>, transform_indices = @transform_12, window_bounds = array<i64: 2, 256, 128>}, {pipeline_mode = #tpu.pipeline_mode<synchronous>, transform_indices = @transform_13, window_bounds = array<i64: 2, 1, 128>}, {pipeline_mode = #tpu.pipeline_mode<synchronous>, transform_indices = @transform_14, window_bounds = array<i64: 2, 1, 128>}, {pipeline_mode = #tpu.pipeline_mode<synchronous>, transform_indices = @transform_15, window_bounds = array<i64: 2, 1, 128>}, {pipeline_mode = #tpu.pipeline_mode<synchronous>, transform_indices = @transform_16, window_bounds = array<i64: 128, 128>}, {pipeline_mode = #tpu.pipeline_mode<synchronous>, transform_indices = @transform_17, window_bounds = array<i64: 1, 128>}, {pipeline_mode = #tpu.pipeline_mode<synchronous>, transform_indices = @transform_18, window_bounds = array<i64: 128, 128>}, {pipeline_mode = #tpu.pipeline_mode<synchronous>, transform_indices = @transform_19, window_bounds = array<i64: 1, 128>}, {pipeline_mode = #tpu.pipeline_mode<synchronous>, transform_indices = @transform_20, window_bounds = array<i64: 2, 128>}]} {
    %c0 = arith.constant 0 : index
    %c0_0 = arith.constant 0 : index
    %0 = vector.load %arg1[%c0, %c0_0] : memref<16x128xf32, #tpu.memory_space<vmem>>, vector<16x128xf32>
    %c0_1 = arith.constant 0 : index
    %c0_2 = arith.constant 0 : index
    %1 = vector.load %arg3[%c0_1, %c0_2] : memref<1x128xf32, #tpu.memory_space<vmem>>, vector<1x128xf32>
    %c0_3 = arith.constant 0 : index
    %c0_4 = arith.constant 0 : index
    %2 = vector.load %arg4[%c0_3, %c0_4] : memref<1x128xf32, #tpu.memory_space<vmem>>, vector<1x128xf32>
    %cst = arith.constant dense<0.000000e+00> : vector<16xf32>
    %3 = vector.multi_reduction <add>, %0, %cst [1] : vector<16x128xf32> to vector<16xf32>
    %4 = vector.shape_cast %3 : vector<16xf32> to vector<16x1xf32>
    %cst_5 = arith.constant 1.280000e+02 : f32
    %5 = vector.broadcast %cst_5 : f32 to vector<16x1xf32>
    %6 = arith.divf %4, %5 : vector<16x1xf32>
    %7 = vector.broadcast %6 : vector<16x1xf32> to vector<16x128xf32>
    %8 = arith.subf %0, %7 : vector<16x128xf32>
    %9 = arith.mulf %8, %8 : vector<16x128xf32>
    %cst_6 = arith.constant dense<0.000000e+00> : vector<16xf32>
    %10 = vector.multi_reduction <add>, %9, %cst_6 [1] : vector<16x128xf32> to vector<16xf32>
    %11 = vector.shape_cast %10 : vector<16xf32> to vector<16x1xf32>
    %cst_7 = arith.constant 1.280000e+02 : f32
    %12 = vector.broadcast %cst_7 : f32 to vector<16x1xf32>
    %13 = arith.divf %11, %12 : vector<16x1xf32>
    %cst_8 = arith.constant 9.99999996E-13 : f32
    %14 = vector.broadcast %cst_8 : f32 to vector<16x1xf32>
    %15 = arith.addf %13, %14 : vector<16x1xf32>
    %16 = math.rsqrt %15 : vector<16x1xf32>
    %17 = vector.broadcast %16 : vector<16x1xf32> to vector<16x128xf32>
    %18 = arith.mulf %8, %17 : vector<16x128xf32>
    %19 = vector.broadcast %1 : vector<1x128xf32> to vector<16x128xf32>
    %20 = arith.mulf %18, %19 : vector<16x128xf32>
    %21 = vector.broadcast %2 : vector<1x128xf32> to vector<16x128xf32>
    %22 = arith.addf %20, %21 : vector<16x128xf32>
    %c0_9 = arith.constant 0 : index
    %c0_10 = arith.constant 0 : index
    %23 = vector.load %arg2[%c0_9, %c0_10] : memref<2x8xf32, #tpu.memory_space<vmem>>, vector<2x8xf32>
    %c0_11 = arith.constant 0 : index
    %c0_12 = arith.constant 0 : index
    %c0_13 = arith.constant 0 : index
    %24 = vector.load %arg5[%c0_11, %c0_12, %c0_13] : memref<2x128x384xf32, #tpu.memory_space<vmem>>, vector<1x128x384xf32>
    %25 = vector.shape_cast %24 : vector<1x128x384xf32> to vector<128x384xf32>
    %cst_14 = arith.constant dense<0.000000e+00> : vector<16x384xf32>
    %26 = tpu.matmul %22, %25, %cst_14 {dimension_numbers = #tpu.dot_dimension_numbers<[1], [0], [0], [1], [0, 0, 1, 1], [], []>} : vector<16x128xf32>, vector<128x384xf32>, vector<16x384xf32> -> vector<16x384xf32>
    %c0_15 = arith.constant 0 : index
    %c0_16 = arith.constant 0 : index
    %c0_17 = arith.constant 0 : index
    %27 = vector.load %arg6[%c0_15, %c0_16, %c0_17] : memref<2x1x384xf32, #tpu.memory_space<vmem>>, vector<1x1x384xf32>
    %28 = vector.shape_cast %27 : vector<1x1x384xf32> to vector<1x384xf32>
    %29 = vector.broadcast %28 : vector<1x384xf32> to vector<16x384xf32>
    %30 = arith.addf %26, %29 : vector<16x384xf32>
    %31 = vector.extract_strided_slice %30 {offsets = [0, 0], sizes = [8, 384], strides = [1, 1]} : vector<16x384xf32> to vector<8x384xf32>
    %32 = vector.extract_strided_slice %23 {offsets = [0, 0], sizes = [1, 8], strides = [1, 1]} : vector<2x8xf32> to vector<1x8xf32>
    %33 = vector.extract_strided_slice %31 {offsets = [0, 0], sizes = [8, 64], strides = [1, 1]} : vector<8x384xf32> to vector<8x64xf32>
    %34 = vector.extract_strided_slice %31 {offsets = [0, 128], sizes = [8, 64], strides = [1, 1]} : vector<8x384xf32> to vector<8x64xf32>
    %35 = vector.extract_strided_slice %31 {offsets = [0, 256], sizes = [8, 64], strides = [1, 1]} : vector<8x384xf32> to vector<8x64xf32>
    %cst_18 = arith.constant dense<0.000000e+00> : vector<8x8xf32>
    %36 = tpu.matmul %33, %34, %cst_18 {dimension_numbers = #tpu.dot_dimension_numbers<[1], [1], [0], [0], [0, 0, 1, 0], [], []>} : vector<8x64xf32>, vector<8x64xf32>, vector<8x8xf32> -> vector<8x8xf32>
    %cst_19 = arith.constant 1.250000e-01 : f32
    %37 = vector.broadcast %cst_19 : f32 to vector<8x8xf32>
    %38 = arith.mulf %36, %37 : vector<8x8xf32>
    %39 = vector.broadcast %32 : vector<1x8xf32> to vector<8x8xf32>
    %40 = arith.addf %38, %39 : vector<8x8xf32>
    %cst_20 = arith.constant dense<0xFF800000> : vector<8xf32>
    %41 = vector.multi_reduction <maximumf>, %40, %cst_20 [1] : vector<8x8xf32> to vector<8xf32>
    %42 = vector.shape_cast %41 : vector<8xf32> to vector<8x1xf32>
    %43 = vector.broadcast %42 : vector<8x1xf32> to vector<8x8xf32>
    %44 = arith.subf %40, %43 : vector<8x8xf32>
    %45 = math.exp %44 : vector<8x8xf32>
    %cst_21 = arith.constant dense<0.000000e+00> : vector<8xf32>
    %46 = vector.multi_reduction <add>, %45, %cst_21 [1] : vector<8x8xf32> to vector<8xf32>
    %47 = vector.shape_cast %46 : vector<8xf32> to vector<8x1xf32>
    %48 = tpu.reciprocal %47 {approx = true} : vector<8x1xf32> -> vector<8x1xf32>
    %49 = vector.broadcast %48 : vector<8x1xf32> to vector<8x8xf32>
    %50 = arith.mulf %45, %49 : vector<8x8xf32>
    %cst_22 = arith.constant dense<0.000000e+00> : vector<8x64xf32>
    %51 = tpu.matmul %50, %35, %cst_22 {dimension_numbers = #tpu.dot_dimension_numbers<[1], [0], [0], [1], [0, 0, 1, 1], [], []>} : vector<8x8xf32>, vector<8x64xf32>, vector<8x64xf32> -> vector<8x64xf32>
    %52 = vector.extract_strided_slice %31 {offsets = [0, 64], sizes = [8, 64], strides = [1, 1]} : vector<8x384xf32> to vector<8x64xf32>
    %53 = vector.extract_strided_slice %31 {offsets = [0, 192], sizes = [8, 64], strides = [1, 1]} : vector<8x384xf32> to vector<8x64xf32>
    %54 = vector.extract_strided_slice %31 {offsets = [0, 320], sizes = [8, 64], strides = [1, 1]} : vector<8x384xf32> to vector<8x64xf32>
    %cst_23 = arith.constant dense<0.000000e+00> : vector<8x8xf32>
    %55 = tpu.matmul %52, %53, %cst_23 {dimension_numbers = #tpu.dot_dimension_numbers<[1], [1], [0], [0], [0, 0, 1, 0], [], []>} : vector<8x64xf32>, vector<8x64xf32>, vector<8x8xf32> -> vector<8x8xf32>
    %cst_24 = arith.constant 1.250000e-01 : f32
    %56 = vector.broadcast %cst_24 : f32 to vector<8x8xf32>
    %57 = arith.mulf %55, %56 : vector<8x8xf32>
    %58 = vector.broadcast %32 : vector<1x8xf32> to vector<8x8xf32>
    %59 = arith.addf %57, %58 : vector<8x8xf32>
    %cst_25 = arith.constant dense<0xFF800000> : vector<8xf32>
    %60 = vector.multi_reduction <maximumf>, %59, %cst_25 [1] : vector<8x8xf32> to vector<8xf32>
    %61 = vector.shape_cast %60 : vector<8xf32> to vector<8x1xf32>
    %62 = vector.broadcast %61 : vector<8x1xf32> to vector<8x8xf32>
    %63 = arith.subf %59, %62 : vector<8x8xf32>
    %64 = math.exp %63 : vector<8x8xf32>
    %cst_26 = arith.constant dense<0.000000e+00> : vector<8xf32>
    %65 = vector.multi_reduction <add>, %64, %cst_26 [1] : vector<8x8xf32> to vector<8xf32>
    %66 = vector.shape_cast %65 : vector<8xf32> to vector<8x1xf32>
    %67 = tpu.reciprocal %66 {approx = true} : vector<8x1xf32> -> vector<8x1xf32>
    %68 = vector.broadcast %67 : vector<8x1xf32> to vector<8x8xf32>
    %69 = arith.mulf %64, %68 : vector<8x8xf32>
    %cst_27 = arith.constant dense<0.000000e+00> : vector<8x64xf32>
    %70 = tpu.matmul %69, %54, %cst_27 {dimension_numbers = #tpu.dot_dimension_numbers<[1], [0], [0], [1], [0, 0, 1, 1], [], []>} : vector<8x8xf32>, vector<8x64xf32>, vector<8x64xf32> -> vector<8x64xf32>
    %71 = tpu.concatenate %51, %70 in 1 : vector<8x64xf32>, vector<8x64xf32> -> vector<8x128xf32>
    %72 = vector.extract_strided_slice %30 {offsets = [8, 0], sizes = [8, 384], strides = [1, 1]} : vector<16x384xf32> to vector<8x384xf32>
    %73 = vector.extract_strided_slice %23 {offsets = [1, 0], sizes = [1, 8], strides = [1, 1]} : vector<2x8xf32> to vector<1x8xf32>
    %74 = vector.extract_strided_slice %72 {offsets = [0, 0], sizes = [8, 64], strides = [1, 1]} : vector<8x384xf32> to vector<8x64xf32>
    %75 = vector.extract_strided_slice %72 {offsets = [0, 128], sizes = [8, 64], strides = [1, 1]} : vector<8x384xf32> to vector<8x64xf32>
    %76 = vector.extract_strided_slice %72 {offsets = [0, 256], sizes = [8, 64], strides = [1, 1]} : vector<8x384xf32> to vector<8x64xf32>
    %cst_28 = arith.constant dense<0.000000e+00> : vector<8x8xf32>
    %77 = tpu.matmul %74, %75, %cst_28 {dimension_numbers = #tpu.dot_dimension_numbers<[1], [1], [0], [0], [0, 0, 1, 0], [], []>} : vector<8x64xf32>, vector<8x64xf32>, vector<8x8xf32> -> vector<8x8xf32>
    %cst_29 = arith.constant 1.250000e-01 : f32
    %78 = vector.broadcast %cst_29 : f32 to vector<8x8xf32>
    %79 = arith.mulf %77, %78 : vector<8x8xf32>
    %80 = vector.broadcast %73 : vector<1x8xf32> to vector<8x8xf32>
    %81 = arith.addf %79, %80 : vector<8x8xf32>
    %cst_30 = arith.constant dense<0xFF800000> : vector<8xf32>
    %82 = vector.multi_reduction <maximumf>, %81, %cst_30 [1] : vector<8x8xf32> to vector<8xf32>
    %83 = vector.shape_cast %82 : vector<8xf32> to vector<8x1xf32>
    %84 = vector.broadcast %83 : vector<8x1xf32> to vector<8x8xf32>
    %85 = arith.subf %81, %84 : vector<8x8xf32>
    %86 = math.exp %85 : vector<8x8xf32>
    %cst_31 = arith.constant dense<0.000000e+00> : vector<8xf32>
    %87 = vector.multi_reduction <add>, %86, %cst_31 [1] : vector<8x8xf32> to vector<8xf32>
    %88 = vector.shape_cast %87 : vector<8xf32> to vector<8x1xf32>
    %89 = tpu.reciprocal %88 {approx = true} : vector<8x1xf32> -> vector<8x1xf32>
    %90 = vector.broadcast %89 : vector<8x1xf32> to vector<8x8xf32>
    %91 = arith.mulf %86, %90 : vector<8x8xf32>
    %cst_32 = arith.constant dense<0.000000e+00> : vector<8x64xf32>
    %92 = tpu.matmul %91, %76, %cst_32 {dimension_numbers = #tpu.dot_dimension_numbers<[1], [0], [0], [1], [0, 0, 1, 1], [], []>} : vector<8x8xf32>, vector<8x64xf32>, vector<8x64xf32> -> vector<8x64xf32>
    %93 = vector.extract_strided_slice %72 {offsets = [0, 64], sizes = [8, 64], strides = [1, 1]} : vector<8x384xf32> to vector<8x64xf32>
    %94 = vector.extract_strided_slice %72 {offsets = [0, 192], sizes = [8, 64], strides = [1, 1]} : vector<8x384xf32> to vector<8x64xf32>
    %95 = vector.extract_strided_slice %72 {offsets = [0, 320], sizes = [8, 64], strides = [1, 1]} : vector<8x384xf32> to vector<8x64xf32>
    %cst_33 = arith.constant dense<0.000000e+00> : vector<8x8xf32>
    %96 = tpu.matmul %93, %94, %cst_33 {dimension_numbers = #tpu.dot_dimension_numbers<[1], [1], [0], [0], [0, 0, 1, 0], [], []>} : vector<8x64xf32>, vector<8x64xf32>, vector<8x8xf32> -> vector<8x8xf32>
    %cst_34 = arith.constant 1.250000e-01 : f32
    %97 = vector.broadcast %cst_34 : f32 to vector<8x8xf32>
    %98 = arith.mulf %96, %97 : vector<8x8xf32>
    %99 = vector.broadcast %73 : vector<1x8xf32> to vector<8x8xf32>
    %100 = arith.addf %98, %99 : vector<8x8xf32>
    %cst_35 = arith.constant dense<0xFF800000> : vector<8xf32>
    %101 = vector.multi_reduction <maximumf>, %100, %cst_35 [1] : vector<8x8xf32> to vector<8xf32>
    %102 = vector.shape_cast %101 : vector<8xf32> to vector<8x1xf32>
    %103 = vector.broadcast %102 : vector<8x1xf32> to vector<8x8xf32>
    %104 = arith.subf %100, %103 : vector<8x8xf32>
    %105 = math.exp %104 : vector<8x8xf32>
    %cst_36 = arith.constant dense<0.000000e+00> : vector<8xf32>
    %106 = vector.multi_reduction <add>, %105, %cst_36 [1] : vector<8x8xf32> to vector<8xf32>
    %107 = vector.shape_cast %106 : vector<8xf32> to vector<8x1xf32>
    %108 = tpu.reciprocal %107 {approx = true} : vector<8x1xf32> -> vector<8x1xf32>
    %109 = vector.broadcast %108 : vector<8x1xf32> to vector<8x8xf32>
    %110 = arith.mulf %105, %109 : vector<8x8xf32>
    %cst_37 = arith.constant dense<0.000000e+00> : vector<8x64xf32>
    %111 = tpu.matmul %110, %95, %cst_37 {dimension_numbers = #tpu.dot_dimension_numbers<[1], [0], [0], [1], [0, 0, 1, 1], [], []>} : vector<8x8xf32>, vector<8x64xf32>, vector<8x64xf32> -> vector<8x64xf32>
    %112 = tpu.concatenate %92, %111 in 1 : vector<8x64xf32>, vector<8x64xf32> -> vector<8x128xf32>
    %113 = tpu.concatenate %71, %112 in 0 : vector<8x128xf32>, vector<8x128xf32> -> vector<16x128xf32>
    %c0_38 = arith.constant 0 : index
    %c0_39 = arith.constant 0 : index
    %c0_40 = arith.constant 0 : index
    %114 = vector.load %arg7[%c0_38, %c0_39, %c0_40] : memref<2x128x128xf32, #tpu.memory_space<vmem>>, vector<1x128x128xf32>
    %115 = vector.shape_cast %114 : vector<1x128x128xf32> to vector<128x128xf32>
    %cst_41 = arith.constant dense<0.000000e+00> : vector<16x128xf32>
    %116 = tpu.matmul %113, %115, %cst_41 {dimension_numbers = #tpu.dot_dimension_numbers<[1], [0], [0], [1], [0, 0, 1, 1], [], []>} : vector<16x128xf32>, vector<128x128xf32>, vector<16x128xf32> -> vector<16x128xf32>
    %c0_42 = arith.constant 0 : index
    %c0_43 = arith.constant 0 : index
    %c0_44 = arith.constant 0 : index
    %117 = vector.load %arg8[%c0_42, %c0_43, %c0_44] : memref<2x1x128xf32, #tpu.memory_space<vmem>>, vector<1x1x128xf32>
    %118 = vector.shape_cast %117 : vector<1x1x128xf32> to vector<1x128xf32>
    %119 = vector.broadcast %118 : vector<1x128xf32> to vector<16x128xf32>
    %120 = arith.addf %116, %119 : vector<16x128xf32>
    %121 = arith.addf %120, %22 : vector<16x128xf32>
    %c0_45 = arith.constant 0 : index
    %c0_46 = arith.constant 0 : index
    %c0_47 = arith.constant 0 : index
    %122 = vector.load %arg9[%c0_45, %c0_46, %c0_47] : memref<2x1x128xf32, #tpu.memory_space<vmem>>, vector<1x1x128xf32>
    %123 = vector.shape_cast %122 : vector<1x1x128xf32> to vector<1x128xf32>
    %c0_48 = arith.constant 0 : index
    %c0_49 = arith.constant 0 : index
    %c0_50 = arith.constant 0 : index
    %124 = vector.load %arg10[%c0_48, %c0_49, %c0_50] : memref<2x1x128xf32, #tpu.memory_space<vmem>>, vector<1x1x128xf32>
    %125 = vector.shape_cast %124 : vector<1x1x128xf32> to vector<1x128xf32>
    %cst_51 = arith.constant dense<0.000000e+00> : vector<16xf32>
    %126 = vector.multi_reduction <add>, %121, %cst_51 [1] : vector<16x128xf32> to vector<16xf32>
    %127 = vector.shape_cast %126 : vector<16xf32> to vector<16x1xf32>
    %cst_52 = arith.constant 1.280000e+02 : f32
    %128 = vector.broadcast %cst_52 : f32 to vector<16x1xf32>
    %129 = arith.divf %127, %128 : vector<16x1xf32>
    %130 = vector.broadcast %129 : vector<16x1xf32> to vector<16x128xf32>
    %131 = arith.subf %121, %130 : vector<16x128xf32>
    %132 = arith.mulf %131, %131 : vector<16x128xf32>
    %cst_53 = arith.constant dense<0.000000e+00> : vector<16xf32>
    %133 = vector.multi_reduction <add>, %132, %cst_53 [1] : vector<16x128xf32> to vector<16xf32>
    %134 = vector.shape_cast %133 : vector<16xf32> to vector<16x1xf32>
    %cst_54 = arith.constant 1.280000e+02 : f32
    %135 = vector.broadcast %cst_54 : f32 to vector<16x1xf32>
    %136 = arith.divf %134, %135 : vector<16x1xf32>
    %cst_55 = arith.constant 9.99999996E-13 : f32
    %137 = vector.broadcast %cst_55 : f32 to vector<16x1xf32>
    %138 = arith.addf %136, %137 : vector<16x1xf32>
    %139 = math.rsqrt %138 : vector<16x1xf32>
    %140 = vector.broadcast %139 : vector<16x1xf32> to vector<16x128xf32>
    %141 = arith.mulf %131, %140 : vector<16x128xf32>
    %142 = vector.broadcast %123 : vector<1x128xf32> to vector<16x128xf32>
    %143 = arith.mulf %141, %142 : vector<16x128xf32>
    %144 = vector.broadcast %125 : vector<1x128xf32> to vector<16x128xf32>
    %145 = arith.addf %143, %144 : vector<16x128xf32>
    %c0_56 = arith.constant 0 : index
    %c0_57 = arith.constant 0 : index
    %c0_58 = arith.constant 0 : index
    %146 = vector.load %arg11[%c0_56, %c0_57, %c0_58] : memref<2x128x256xf32, #tpu.memory_space<vmem>>, vector<1x128x256xf32>
    %147 = vector.shape_cast %146 : vector<1x128x256xf32> to vector<128x256xf32>
    %cst_59 = arith.constant dense<0.000000e+00> : vector<16x256xf32>
    %148 = tpu.matmul %145, %147, %cst_59 {dimension_numbers = #tpu.dot_dimension_numbers<[1], [0], [0], [1], [0, 0, 1, 1], [], []>} : vector<16x128xf32>, vector<128x256xf32>, vector<16x256xf32> -> vector<16x256xf32>
    %c0_60 = arith.constant 0 : index
    %c0_61 = arith.constant 0 : index
    %c0_62 = arith.constant 0 : index
    %149 = vector.load %arg12[%c0_60, %c0_61, %c0_62] : memref<2x1x256xf32, #tpu.memory_space<vmem>>, vector<1x1x256xf32>
    %150 = vector.shape_cast %149 : vector<1x1x256xf32> to vector<1x256xf32>
    %151 = vector.broadcast %150 : vector<1x256xf32> to vector<16x256xf32>
    %152 = arith.addf %148, %151 : vector<16x256xf32>
    %cst_63 = arith.constant 5.000000e-01 : f32
    %153 = vector.broadcast %cst_63 : f32 to vector<16x256xf32>
    %154 = arith.mulf %153, %152 : vector<16x256xf32>
    %cst_64 = arith.constant 4.471500e-02 : f32
    %155 = vector.broadcast %cst_64 : f32 to vector<16x256xf32>
    %156 = arith.mulf %155, %152 : vector<16x256xf32>
    %157 = arith.mulf %156, %152 : vector<16x256xf32>
    %158 = arith.mulf %157, %152 : vector<16x256xf32>
    %159 = arith.addf %152, %158 : vector<16x256xf32>
    %cst_65 = arith.constant 0.797884583 : f32
    %160 = vector.broadcast %cst_65 : f32 to vector<16x256xf32>
    %161 = arith.mulf %160, %159 : vector<16x256xf32>
    %162 = math.tanh %161 : vector<16x256xf32>
    %cst_66 = arith.constant 1.000000e+00 : f32
    %163 = vector.broadcast %cst_66 : f32 to vector<16x256xf32>
    %164 = arith.addf %163, %162 : vector<16x256xf32>
    %165 = arith.mulf %154, %164 : vector<16x256xf32>
    %c0_67 = arith.constant 0 : index
    %c0_68 = arith.constant 0 : index
    %c0_69 = arith.constant 0 : index
    %166 = vector.load %arg13[%c0_67, %c0_68, %c0_69] : memref<2x256x128xf32, #tpu.memory_space<vmem>>, vector<1x256x128xf32>
    %167 = vector.shape_cast %166 : vector<1x256x128xf32> to vector<256x128xf32>
    %cst_70 = arith.constant dense<0.000000e+00> : vector<16x128xf32>
    %168 = tpu.matmul %165, %167, %cst_70 {dimension_numbers = #tpu.dot_dimension_numbers<[1], [0], [0], [1], [0, 0, 1, 1], [], []>} : vector<16x256xf32>, vector<256x128xf32>, vector<16x128xf32> -> vector<16x128xf32>
    %c0_71 = arith.constant 0 : index
    %c0_72 = arith.constant 0 : index
    %c0_73 = arith.constant 0 : index
    %169 = vector.load %arg14[%c0_71, %c0_72, %c0_73] : memref<2x1x128xf32, #tpu.memory_space<vmem>>, vector<1x1x128xf32>
    %170 = vector.shape_cast %169 : vector<1x1x128xf32> to vector<1x128xf32>
    %171 = vector.broadcast %170 : vector<1x128xf32> to vector<16x128xf32>
    %172 = arith.addf %168, %171 : vector<16x128xf32>
    %173 = arith.addf %172, %145 : vector<16x128xf32>
    %c0_74 = arith.constant 0 : index
    %c0_75 = arith.constant 0 : index
    %c0_76 = arith.constant 0 : index
    %174 = vector.load %arg15[%c0_74, %c0_75, %c0_76] : memref<2x1x128xf32, #tpu.memory_space<vmem>>, vector<1x1x128xf32>
    %175 = vector.shape_cast %174 : vector<1x1x128xf32> to vector<1x128xf32>
    %c0_77 = arith.constant 0 : index
    %c0_78 = arith.constant 0 : index
    %c0_79 = arith.constant 0 : index
    %176 = vector.load %arg16[%c0_77, %c0_78, %c0_79] : memref<2x1x128xf32, #tpu.memory_space<vmem>>, vector<1x1x128xf32>
    %177 = vector.shape_cast %176 : vector<1x1x128xf32> to vector<1x128xf32>
    %cst_80 = arith.constant dense<0.000000e+00> : vector<16xf32>
    %178 = vector.multi_reduction <add>, %173, %cst_80 [1] : vector<16x128xf32> to vector<16xf32>
    %179 = vector.shape_cast %178 : vector<16xf32> to vector<16x1xf32>
    %cst_81 = arith.constant 1.280000e+02 : f32
    %180 = vector.broadcast %cst_81 : f32 to vector<16x1xf32>
    %181 = arith.divf %179, %180 : vector<16x1xf32>
    %182 = vector.broadcast %181 : vector<16x1xf32> to vector<16x128xf32>
    %183 = arith.subf %173, %182 : vector<16x128xf32>
    %184 = arith.mulf %183, %183 : vector<16x128xf32>
    %cst_82 = arith.constant dense<0.000000e+00> : vector<16xf32>
    %185 = vector.multi_reduction <add>, %184, %cst_82 [1] : vector<16x128xf32> to vector<16xf32>
    %186 = vector.shape_cast %185 : vector<16xf32> to vector<16x1xf32>
    %cst_83 = arith.constant 1.280000e+02 : f32
    %187 = vector.broadcast %cst_83 : f32 to vector<16x1xf32>
    %188 = arith.divf %186, %187 : vector<16x1xf32>
    %cst_84 = arith.constant 9.99999996E-13 : f32
    %189 = vector.broadcast %cst_84 : f32 to vector<16x1xf32>
    %190 = arith.addf %188, %189 : vector<16x1xf32>
    %191 = math.rsqrt %190 : vector<16x1xf32>
    %192 = vector.broadcast %191 : vector<16x1xf32> to vector<16x128xf32>
    %193 = arith.mulf %183, %192 : vector<16x128xf32>
    %194 = vector.broadcast %175 : vector<1x128xf32> to vector<16x128xf32>
    %195 = arith.mulf %193, %194 : vector<16x128xf32>
    %196 = vector.broadcast %177 : vector<1x128xf32> to vector<16x128xf32>
    %197 = arith.addf %195, %196 : vector<16x128xf32>
    %c1 = arith.constant 1 : index
    %c0_85 = arith.constant 0 : index
    %c0_86 = arith.constant 0 : index
    %198 = vector.load %arg5[%c1, %c0_85, %c0_86] : memref<2x128x384xf32, #tpu.memory_space<vmem>>, vector<1x128x384xf32>
    %199 = vector.shape_cast %198 : vector<1x128x384xf32> to vector<128x384xf32>
    %cst_87 = arith.constant dense<0.000000e+00> : vector<16x384xf32>
    %200 = tpu.matmul %197, %199, %cst_87 {dimension_numbers = #tpu.dot_dimension_numbers<[1], [0], [0], [1], [0, 0, 1, 1], [], []>} : vector<16x128xf32>, vector<128x384xf32>, vector<16x384xf32> -> vector<16x384xf32>
    %c1_88 = arith.constant 1 : index
    %c0_89 = arith.constant 0 : index
    %c0_90 = arith.constant 0 : index
    %201 = vector.load %arg6[%c1_88, %c0_89, %c0_90] : memref<2x1x384xf32, #tpu.memory_space<vmem>>, vector<1x1x384xf32>
    %202 = vector.shape_cast %201 : vector<1x1x384xf32> to vector<1x384xf32>
    %203 = vector.broadcast %202 : vector<1x384xf32> to vector<16x384xf32>
    %204 = arith.addf %200, %203 : vector<16x384xf32>
    %205 = vector.extract_strided_slice %204 {offsets = [0, 0], sizes = [8, 384], strides = [1, 1]} : vector<16x384xf32> to vector<8x384xf32>
    %206 = vector.extract_strided_slice %23 {offsets = [0, 0], sizes = [1, 8], strides = [1, 1]} : vector<2x8xf32> to vector<1x8xf32>
    %207 = vector.extract_strided_slice %205 {offsets = [0, 0], sizes = [8, 64], strides = [1, 1]} : vector<8x384xf32> to vector<8x64xf32>
    %208 = vector.extract_strided_slice %205 {offsets = [0, 128], sizes = [8, 64], strides = [1, 1]} : vector<8x384xf32> to vector<8x64xf32>
    %209 = vector.extract_strided_slice %205 {offsets = [0, 256], sizes = [8, 64], strides = [1, 1]} : vector<8x384xf32> to vector<8x64xf32>
    %cst_91 = arith.constant dense<0.000000e+00> : vector<8x8xf32>
    %210 = tpu.matmul %207, %208, %cst_91 {dimension_numbers = #tpu.dot_dimension_numbers<[1], [1], [0], [0], [0, 0, 1, 0], [], []>} : vector<8x64xf32>, vector<8x64xf32>, vector<8x8xf32> -> vector<8x8xf32>
    %cst_92 = arith.constant 1.250000e-01 : f32
    %211 = vector.broadcast %cst_92 : f32 to vector<8x8xf32>
    %212 = arith.mulf %210, %211 : vector<8x8xf32>
    %213 = vector.broadcast %206 : vector<1x8xf32> to vector<8x8xf32>
    %214 = arith.addf %212, %213 : vector<8x8xf32>
    %cst_93 = arith.constant dense<0xFF800000> : vector<8xf32>
    %215 = vector.multi_reduction <maximumf>, %214, %cst_93 [1] : vector<8x8xf32> to vector<8xf32>
    %216 = vector.shape_cast %215 : vector<8xf32> to vector<8x1xf32>
    %217 = vector.broadcast %216 : vector<8x1xf32> to vector<8x8xf32>
    %218 = arith.subf %214, %217 : vector<8x8xf32>
    %219 = math.exp %218 : vector<8x8xf32>
    %cst_94 = arith.constant dense<0.000000e+00> : vector<8xf32>
    %220 = vector.multi_reduction <add>, %219, %cst_94 [1] : vector<8x8xf32> to vector<8xf32>
    %221 = vector.shape_cast %220 : vector<8xf32> to vector<8x1xf32>
    %222 = tpu.reciprocal %221 {approx = true} : vector<8x1xf32> -> vector<8x1xf32>
    %223 = vector.broadcast %222 : vector<8x1xf32> to vector<8x8xf32>
    %224 = arith.mulf %219, %223 : vector<8x8xf32>
    %cst_95 = arith.constant dense<0.000000e+00> : vector<8x64xf32>
    %225 = tpu.matmul %224, %209, %cst_95 {dimension_numbers = #tpu.dot_dimension_numbers<[1], [0], [0], [1], [0, 0, 1, 1], [], []>} : vector<8x8xf32>, vector<8x64xf32>, vector<8x64xf32> -> vector<8x64xf32>
    %226 = vector.extract_strided_slice %205 {offsets = [0, 64], sizes = [8, 64], strides = [1, 1]} : vector<8x384xf32> to vector<8x64xf32>
    %227 = vector.extract_strided_slice %205 {offsets = [0, 192], sizes = [8, 64], strides = [1, 1]} : vector<8x384xf32> to vector<8x64xf32>
    %228 = vector.extract_strided_slice %205 {offsets = [0, 320], sizes = [8, 64], strides = [1, 1]} : vector<8x384xf32> to vector<8x64xf32>
    %cst_96 = arith.constant dense<0.000000e+00> : vector<8x8xf32>
    %229 = tpu.matmul %226, %227, %cst_96 {dimension_numbers = #tpu.dot_dimension_numbers<[1], [1], [0], [0], [0, 0, 1, 0], [], []>} : vector<8x64xf32>, vector<8x64xf32>, vector<8x8xf32> -> vector<8x8xf32>
    %cst_97 = arith.constant 1.250000e-01 : f32
    %230 = vector.broadcast %cst_97 : f32 to vector<8x8xf32>
    %231 = arith.mulf %229, %230 : vector<8x8xf32>
    %232 = vector.broadcast %206 : vector<1x8xf32> to vector<8x8xf32>
    %233 = arith.addf %231, %232 : vector<8x8xf32>
    %cst_98 = arith.constant dense<0xFF800000> : vector<8xf32>
    %234 = vector.multi_reduction <maximumf>, %233, %cst_98 [1] : vector<8x8xf32> to vector<8xf32>
    %235 = vector.shape_cast %234 : vector<8xf32> to vector<8x1xf32>
    %236 = vector.broadcast %235 : vector<8x1xf32> to vector<8x8xf32>
    %237 = arith.subf %233, %236 : vector<8x8xf32>
    %238 = math.exp %237 : vector<8x8xf32>
    %cst_99 = arith.constant dense<0.000000e+00> : vector<8xf32>
    %239 = vector.multi_reduction <add>, %238, %cst_99 [1] : vector<8x8xf32> to vector<8xf32>
    %240 = vector.shape_cast %239 : vector<8xf32> to vector<8x1xf32>
    %241 = tpu.reciprocal %240 {approx = true} : vector<8x1xf32> -> vector<8x1xf32>
    %242 = vector.broadcast %241 : vector<8x1xf32> to vector<8x8xf32>
    %243 = arith.mulf %238, %242 : vector<8x8xf32>
    %cst_100 = arith.constant dense<0.000000e+00> : vector<8x64xf32>
    %244 = tpu.matmul %243, %228, %cst_100 {dimension_numbers = #tpu.dot_dimension_numbers<[1], [0], [0], [1], [0, 0, 1, 1], [], []>} : vector<8x8xf32>, vector<8x64xf32>, vector<8x64xf32> -> vector<8x64xf32>
    %245 = tpu.concatenate %225, %244 in 1 : vector<8x64xf32>, vector<8x64xf32> -> vector<8x128xf32>
    %246 = vector.extract_strided_slice %204 {offsets = [8, 0], sizes = [8, 384], strides = [1, 1]} : vector<16x384xf32> to vector<8x384xf32>
    %247 = vector.extract_strided_slice %23 {offsets = [1, 0], sizes = [1, 8], strides = [1, 1]} : vector<2x8xf32> to vector<1x8xf32>
    %248 = vector.extract_strided_slice %246 {offsets = [0, 0], sizes = [8, 64], strides = [1, 1]} : vector<8x384xf32> to vector<8x64xf32>
    %249 = vector.extract_strided_slice %246 {offsets = [0, 128], sizes = [8, 64], strides = [1, 1]} : vector<8x384xf32> to vector<8x64xf32>
    %250 = vector.extract_strided_slice %246 {offsets = [0, 256], sizes = [8, 64], strides = [1, 1]} : vector<8x384xf32> to vector<8x64xf32>
    %cst_101 = arith.constant dense<0.000000e+00> : vector<8x8xf32>
    %251 = tpu.matmul %248, %249, %cst_101 {dimension_numbers = #tpu.dot_dimension_numbers<[1], [1], [0], [0], [0, 0, 1, 0], [], []>} : vector<8x64xf32>, vector<8x64xf32>, vector<8x8xf32> -> vector<8x8xf32>
    %cst_102 = arith.constant 1.250000e-01 : f32
    %252 = vector.broadcast %cst_102 : f32 to vector<8x8xf32>
    %253 = arith.mulf %251, %252 : vector<8x8xf32>
    %254 = vector.broadcast %247 : vector<1x8xf32> to vector<8x8xf32>
    %255 = arith.addf %253, %254 : vector<8x8xf32>
    %cst_103 = arith.constant dense<0xFF800000> : vector<8xf32>
    %256 = vector.multi_reduction <maximumf>, %255, %cst_103 [1] : vector<8x8xf32> to vector<8xf32>
    %257 = vector.shape_cast %256 : vector<8xf32> to vector<8x1xf32>
    %258 = vector.broadcast %257 : vector<8x1xf32> to vector<8x8xf32>
    %259 = arith.subf %255, %258 : vector<8x8xf32>
    %260 = math.exp %259 : vector<8x8xf32>
    %cst_104 = arith.constant dense<0.000000e+00> : vector<8xf32>
    %261 = vector.multi_reduction <add>, %260, %cst_104 [1] : vector<8x8xf32> to vector<8xf32>
    %262 = vector.shape_cast %261 : vector<8xf32> to vector<8x1xf32>
    %263 = tpu.reciprocal %262 {approx = true} : vector<8x1xf32> -> vector<8x1xf32>
    %264 = vector.broadcast %263 : vector<8x1xf32> to vector<8x8xf32>
    %265 = arith.mulf %260, %264 : vector<8x8xf32>
    %cst_105 = arith.constant dense<0.000000e+00> : vector<8x64xf32>
    %266 = tpu.matmul %265, %250, %cst_105 {dimension_numbers = #tpu.dot_dimension_numbers<[1], [0], [0], [1], [0, 0, 1, 1], [], []>} : vector<8x8xf32>, vector<8x64xf32>, vector<8x64xf32> -> vector<8x64xf32>
    %267 = vector.extract_strided_slice %246 {offsets = [0, 64], sizes = [8, 64], strides = [1, 1]} : vector<8x384xf32> to vector<8x64xf32>
    %268 = vector.extract_strided_slice %246 {offsets = [0, 192], sizes = [8, 64], strides = [1, 1]} : vector<8x384xf32> to vector<8x64xf32>
    %269 = vector.extract_strided_slice %246 {offsets = [0, 320], sizes = [8, 64], strides = [1, 1]} : vector<8x384xf32> to vector<8x64xf32>
    %cst_106 = arith.constant dense<0.000000e+00> : vector<8x8xf32>
    %270 = tpu.matmul %267, %268, %cst_106 {dimension_numbers = #tpu.dot_dimension_numbers<[1], [1], [0], [0], [0, 0, 1, 0], [], []>} : vector<8x64xf32>, vector<8x64xf32>, vector<8x8xf32> -> vector<8x8xf32>
    %cst_107 = arith.constant 1.250000e-01 : f32
    %271 = vector.broadcast %cst_107 : f32 to vector<8x8xf32>
    %272 = arith.mulf %270, %271 : vector<8x8xf32>
    %273 = vector.broadcast %247 : vector<1x8xf32> to vector<8x8xf32>
    %274 = arith.addf %272, %273 : vector<8x8xf32>
    %cst_108 = arith.constant dense<0xFF800000> : vector<8xf32>
    %275 = vector.multi_reduction <maximumf>, %274, %cst_108 [1] : vector<8x8xf32> to vector<8xf32>
    %276 = vector.shape_cast %275 : vector<8xf32> to vector<8x1xf32>
    %277 = vector.broadcast %276 : vector<8x1xf32> to vector<8x8xf32>
    %278 = arith.subf %274, %277 : vector<8x8xf32>
    %279 = math.exp %278 : vector<8x8xf32>
    %cst_109 = arith.constant dense<0.000000e+00> : vector<8xf32>
    %280 = vector.multi_reduction <add>, %279, %cst_109 [1] : vector<8x8xf32> to vector<8xf32>
    %281 = vector.shape_cast %280 : vector<8xf32> to vector<8x1xf32>
    %282 = tpu.reciprocal %281 {approx = true} : vector<8x1xf32> -> vector<8x1xf32>
    %283 = vector.broadcast %282 : vector<8x1xf32> to vector<8x8xf32>
    %284 = arith.mulf %279, %283 : vector<8x8xf32>
    %cst_110 = arith.constant dense<0.000000e+00> : vector<8x64xf32>
    %285 = tpu.matmul %284, %269, %cst_110 {dimension_numbers = #tpu.dot_dimension_numbers<[1], [0], [0], [1], [0, 0, 1, 1], [], []>} : vector<8x8xf32>, vector<8x64xf32>, vector<8x64xf32> -> vector<8x64xf32>
    %286 = tpu.concatenate %266, %285 in 1 : vector<8x64xf32>, vector<8x64xf32> -> vector<8x128xf32>
    %287 = tpu.concatenate %245, %286 in 0 : vector<8x128xf32>, vector<8x128xf32> -> vector<16x128xf32>
    %c1_111 = arith.constant 1 : index
    %c0_112 = arith.constant 0 : index
    %c0_113 = arith.constant 0 : index
    %288 = vector.load %arg7[%c1_111, %c0_112, %c0_113] : memref<2x128x128xf32, #tpu.memory_space<vmem>>, vector<1x128x128xf32>
    %289 = vector.shape_cast %288 : vector<1x128x128xf32> to vector<128x128xf32>
    %cst_114 = arith.constant dense<0.000000e+00> : vector<16x128xf32>
    %290 = tpu.matmul %287, %289, %cst_114 {dimension_numbers = #tpu.dot_dimension_numbers<[1], [0], [0], [1], [0, 0, 1, 1], [], []>} : vector<16x128xf32>, vector<128x128xf32>, vector<16x128xf32> -> vector<16x128xf32>
    %c1_115 = arith.constant 1 : index
    %c0_116 = arith.constant 0 : index
    %c0_117 = arith.constant 0 : index
    %291 = vector.load %arg8[%c1_115, %c0_116, %c0_117] : memref<2x1x128xf32, #tpu.memory_space<vmem>>, vector<1x1x128xf32>
    %292 = vector.shape_cast %291 : vector<1x1x128xf32> to vector<1x128xf32>
    %293 = vector.broadcast %292 : vector<1x128xf32> to vector<16x128xf32>
    %294 = arith.addf %290, %293 : vector<16x128xf32>
    %295 = arith.addf %294, %197 : vector<16x128xf32>
    %c1_118 = arith.constant 1 : index
    %c0_119 = arith.constant 0 : index
    %c0_120 = arith.constant 0 : index
    %296 = vector.load %arg9[%c1_118, %c0_119, %c0_120] : memref<2x1x128xf32, #tpu.memory_space<vmem>>, vector<1x1x128xf32>
    %297 = vector.shape_cast %296 : vector<1x1x128xf32> to vector<1x128xf32>
    %c1_121 = arith.constant 1 : index
    %c0_122 = arith.constant 0 : index
    %c0_123 = arith.constant 0 : index
    %298 = vector.load %arg10[%c1_121, %c0_122, %c0_123] : memref<2x1x128xf32, #tpu.memory_space<vmem>>, vector<1x1x128xf32>
    %299 = vector.shape_cast %298 : vector<1x1x128xf32> to vector<1x128xf32>
    %cst_124 = arith.constant dense<0.000000e+00> : vector<16xf32>
    %300 = vector.multi_reduction <add>, %295, %cst_124 [1] : vector<16x128xf32> to vector<16xf32>
    %301 = vector.shape_cast %300 : vector<16xf32> to vector<16x1xf32>
    %cst_125 = arith.constant 1.280000e+02 : f32
    %302 = vector.broadcast %cst_125 : f32 to vector<16x1xf32>
    %303 = arith.divf %301, %302 : vector<16x1xf32>
    %304 = vector.broadcast %303 : vector<16x1xf32> to vector<16x128xf32>
    %305 = arith.subf %295, %304 : vector<16x128xf32>
    %306 = arith.mulf %305, %305 : vector<16x128xf32>
    %cst_126 = arith.constant dense<0.000000e+00> : vector<16xf32>
    %307 = vector.multi_reduction <add>, %306, %cst_126 [1] : vector<16x128xf32> to vector<16xf32>
    %308 = vector.shape_cast %307 : vector<16xf32> to vector<16x1xf32>
    %cst_127 = arith.constant 1.280000e+02 : f32
    %309 = vector.broadcast %cst_127 : f32 to vector<16x1xf32>
    %310 = arith.divf %308, %309 : vector<16x1xf32>
    %cst_128 = arith.constant 9.99999996E-13 : f32
    %311 = vector.broadcast %cst_128 : f32 to vector<16x1xf32>
    %312 = arith.addf %310, %311 : vector<16x1xf32>
    %313 = math.rsqrt %312 : vector<16x1xf32>
    %314 = vector.broadcast %313 : vector<16x1xf32> to vector<16x128xf32>
    %315 = arith.mulf %305, %314 : vector<16x128xf32>
    %316 = vector.broadcast %297 : vector<1x128xf32> to vector<16x128xf32>
    %317 = arith.mulf %315, %316 : vector<16x128xf32>
    %318 = vector.broadcast %299 : vector<1x128xf32> to vector<16x128xf32>
    %319 = arith.addf %317, %318 : vector<16x128xf32>
    %c1_129 = arith.constant 1 : index
    %c0_130 = arith.constant 0 : index
    %c0_131 = arith.constant 0 : index
    %320 = vector.load %arg11[%c1_129, %c0_130, %c0_131] : memref<2x128x256xf32, #tpu.memory_space<vmem>>, vector<1x128x256xf32>
    %321 = vector.shape_cast %320 : vector<1x128x256xf32> to vector<128x256xf32>
    %cst_132 = arith.constant dense<0.000000e+00> : vector<16x256xf32>
    %322 = tpu.matmul %319, %321, %cst_132 {dimension_numbers = #tpu.dot_dimension_numbers<[1], [0], [0], [1], [0, 0, 1, 1], [], []>} : vector<16x128xf32>, vector<128x256xf32>, vector<16x256xf32> -> vector<16x256xf32>
    %c1_133 = arith.constant 1 : index
    %c0_134 = arith.constant 0 : index
    %c0_135 = arith.constant 0 : index
    %323 = vector.load %arg12[%c1_133, %c0_134, %c0_135] : memref<2x1x256xf32, #tpu.memory_space<vmem>>, vector<1x1x256xf32>
    %324 = vector.shape_cast %323 : vector<1x1x256xf32> to vector<1x256xf32>
    %325 = vector.broadcast %324 : vector<1x256xf32> to vector<16x256xf32>
    %326 = arith.addf %322, %325 : vector<16x256xf32>
    %cst_136 = arith.constant 5.000000e-01 : f32
    %327 = vector.broadcast %cst_136 : f32 to vector<16x256xf32>
    %328 = arith.mulf %327, %326 : vector<16x256xf32>
    %cst_137 = arith.constant 4.471500e-02 : f32
    %329 = vector.broadcast %cst_137 : f32 to vector<16x256xf32>
    %330 = arith.mulf %329, %326 : vector<16x256xf32>
    %331 = arith.mulf %330, %326 : vector<16x256xf32>
    %332 = arith.mulf %331, %326 : vector<16x256xf32>
    %333 = arith.addf %326, %332 : vector<16x256xf32>
    %cst_138 = arith.constant 0.797884583 : f32
    %334 = vector.broadcast %cst_138 : f32 to vector<16x256xf32>
    %335 = arith.mulf %334, %333 : vector<16x256xf32>
    %336 = math.tanh %335 : vector<16x256xf32>
    %cst_139 = arith.constant 1.000000e+00 : f32
    %337 = vector.broadcast %cst_139 : f32 to vector<16x256xf32>
    %338 = arith.addf %337, %336 : vector<16x256xf32>
    %339 = arith.mulf %328, %338 : vector<16x256xf32>
    %c1_140 = arith.constant 1 : index
    %c0_141 = arith.constant 0 : index
    %c0_142 = arith.constant 0 : index
    %340 = vector.load %arg13[%c1_140, %c0_141, %c0_142] : memref<2x256x128xf32, #tpu.memory_space<vmem>>, vector<1x256x128xf32>
    %341 = vector.shape_cast %340 : vector<1x256x128xf32> to vector<256x128xf32>
    %cst_143 = arith.constant dense<0.000000e+00> : vector<16x128xf32>
    %342 = tpu.matmul %339, %341, %cst_143 {dimension_numbers = #tpu.dot_dimension_numbers<[1], [0], [0], [1], [0, 0, 1, 1], [], []>} : vector<16x256xf32>, vector<256x128xf32>, vector<16x128xf32> -> vector<16x128xf32>
    %c1_144 = arith.constant 1 : index
    %c0_145 = arith.constant 0 : index
    %c0_146 = arith.constant 0 : index
    %343 = vector.load %arg14[%c1_144, %c0_145, %c0_146] : memref<2x1x128xf32, #tpu.memory_space<vmem>>, vector<1x1x128xf32>
    %344 = vector.shape_cast %343 : vector<1x1x128xf32> to vector<1x128xf32>
    %345 = vector.broadcast %344 : vector<1x128xf32> to vector<16x128xf32>
    %346 = arith.addf %342, %345 : vector<16x128xf32>
    %347 = arith.addf %346, %319 : vector<16x128xf32>
    %c1_147 = arith.constant 1 : index
    %c0_148 = arith.constant 0 : index
    %c0_149 = arith.constant 0 : index
    %348 = vector.load %arg15[%c1_147, %c0_148, %c0_149] : memref<2x1x128xf32, #tpu.memory_space<vmem>>, vector<1x1x128xf32>
    %349 = vector.shape_cast %348 : vector<1x1x128xf32> to vector<1x128xf32>
    %c1_150 = arith.constant 1 : index
    %c0_151 = arith.constant 0 : index
    %c0_152 = arith.constant 0 : index
    %350 = vector.load %arg16[%c1_150, %c0_151, %c0_152] : memref<2x1x128xf32, #tpu.memory_space<vmem>>, vector<1x1x128xf32>
    %351 = vector.shape_cast %350 : vector<1x1x128xf32> to vector<1x128xf32>
    %cst_153 = arith.constant dense<0.000000e+00> : vector<16xf32>
    %352 = vector.multi_reduction <add>, %347, %cst_153 [1] : vector<16x128xf32> to vector<16xf32>
    %353 = vector.shape_cast %352 : vector<16xf32> to vector<16x1xf32>
    %cst_154 = arith.constant 1.280000e+02 : f32
    %354 = vector.broadcast %cst_154 : f32 to vector<16x1xf32>
    %355 = arith.divf %353, %354 : vector<16x1xf32>
    %356 = vector.broadcast %355 : vector<16x1xf32> to vector<16x128xf32>
    %357 = arith.subf %347, %356 : vector<16x128xf32>
    %358 = arith.mulf %357, %357 : vector<16x128xf32>
    %cst_155 = arith.constant dense<0.000000e+00> : vector<16xf32>
    %359 = vector.multi_reduction <add>, %358, %cst_155 [1] : vector<16x128xf32> to vector<16xf32>
    %360 = vector.shape_cast %359 : vector<16xf32> to vector<16x1xf32>
    %cst_156 = arith.constant 1.280000e+02 : f32
    %361 = vector.broadcast %cst_156 : f32 to vector<16x1xf32>
    %362 = arith.divf %360, %361 : vector<16x1xf32>
    %cst_157 = arith.constant 9.99999996E-13 : f32
    %363 = vector.broadcast %cst_157 : f32 to vector<16x1xf32>
    %364 = arith.addf %362, %363 : vector<16x1xf32>
    %365 = math.rsqrt %364 : vector<16x1xf32>
    %366 = vector.broadcast %365 : vector<16x1xf32> to vector<16x128xf32>
    %367 = arith.mulf %357, %366 : vector<16x128xf32>
    %368 = vector.broadcast %349 : vector<1x128xf32> to vector<16x128xf32>
    %369 = arith.mulf %367, %368 : vector<16x128xf32>
    %370 = vector.broadcast %351 : vector<1x128xf32> to vector<16x128xf32>
    %371 = arith.addf %369, %370 : vector<16x128xf32>
    %372 = vector.extract_strided_slice %371 {offsets = [0, 0], sizes = [1, 128], strides = [1, 1]} : vector<16x128xf32> to vector<1x128xf32>
    %373 = vector.extract_strided_slice %371 {offsets = [8, 0], sizes = [1, 128], strides = [1, 1]} : vector<16x128xf32> to vector<1x128xf32>
    %374 = tpu.concatenate %372, %373 in 0 : vector<1x128xf32>, vector<1x128xf32> -> vector<2x128xf32>
    %c0_158 = arith.constant 0 : index
    %c0_159 = arith.constant 0 : index
    %375 = vector.load %arg17[%c0_158, %c0_159] : memref<128x128xf32, #tpu.memory_space<vmem>>, vector<128x128xf32>
    %cst_160 = arith.constant dense<0.000000e+00> : vector<2x128xf32>
    %376 = tpu.matmul %374, %375, %cst_160 {dimension_numbers = #tpu.dot_dimension_numbers<[1], [0], [0], [1], [0, 0, 1, 1], [], []>} : vector<2x128xf32>, vector<128x128xf32>, vector<2x128xf32> -> vector<2x128xf32>
    %c0_161 = arith.constant 0 : index
    %c0_162 = arith.constant 0 : index
    %377 = vector.load %arg18[%c0_161, %c0_162] : memref<1x128xf32, #tpu.memory_space<vmem>>, vector<1x128xf32>
    %378 = vector.broadcast %377 : vector<1x128xf32> to vector<2x128xf32>
    %379 = arith.addf %376, %378 : vector<2x128xf32>
    %380 = math.tanh %379 : vector<2x128xf32>
    %c0_163 = arith.constant 0 : index
    %c0_164 = arith.constant 0 : index
    %381 = vector.load %arg19[%c0_163, %c0_164] : memref<128x128xf32, #tpu.memory_space<vmem>>, vector<128x128xf32>
    %cst_165 = arith.constant dense<0.000000e+00> : vector<2x128xf32>
    %382 = tpu.matmul %380, %381, %cst_165 {dimension_numbers = #tpu.dot_dimension_numbers<[1], [0], [0], [1], [0, 0, 1, 1], [], []>} : vector<2x128xf32>, vector<128x128xf32>, vector<2x128xf32> -> vector<2x128xf32>
    %c0_166 = arith.constant 0 : index
    %c0_167 = arith.constant 0 : index
    %383 = vector.load %arg20[%c0_166, %c0_167] : memref<1x128xf32, #tpu.memory_space<vmem>>, vector<1x128xf32>
    %384 = vector.broadcast %383 : vector<1x128xf32> to vector<2x128xf32>
    %385 = arith.addf %382, %384 : vector<2x128xf32>
    %c0_168 = arith.constant 0 : index
    %c0_169 = arith.constant 0 : index
    %386 = vector.load %arg21[%c0_168, %c0_169] : memref<2x128xf32, #tpu.memory_space<vmem>>, vector<2x128xf32>
    tpu.vector_store %arg21[%c0_168, %c0_169], %385 {strides = array<i32>} : memref<2x128xf32, #tpu.memory_space<vmem>>, vector<2x128xf32>,
    return
  }
  func.func @transform_0(%arg0: i32) -> (i32, i32) {
    %c0_i32 = arith.constant 0 : i32
    %c0_i32_0 = arith.constant 0 : i32
    %c0_i32_1 = arith.constant 0 : i32
    return %c0_i32, %c0_i32_0 : i32, i32
  }
  func.func @transform_1(%arg0: i32) -> (i32, i32) {
    %c0_i32 = arith.constant 0 : i32
    %c0_i32_0 = arith.constant 0 : i32
    %c0_i32_1 = arith.constant 0 : i32
    return %c0_i32, %c0_i32_0 : i32, i32
  }
  func.func @transform_2(%arg0: i32) -> (i32, i32) {
    %c0_i32 = arith.constant 0 : i32
    %c0_i32_0 = arith.constant 0 : i32
    %c0_i32_1 = arith.constant 0 : i32
    return %c0_i32, %c0_i32_0 : i32, i32
  }
  func.func @transform_3(%arg0: i32) -> (i32, i32) {
    %c0_i32 = arith.constant 0 : i32
    %c0_i32_0 = arith.constant 0 : i32
    %c0_i32_1 = arith.constant 0 : i32
    return %c0_i32, %c0_i32_0 : i32, i32
  }
  func.func @transform_4(%arg0: i32) -> (i32, i32, i32) {
    %c0_i32 = arith.constant 0 : i32
    %c0_i32_0 = arith.constant 0 : i32
    %c0_i32_1 = arith.constant 0 : i32
    %c0_i32_2 = arith.constant 0 : i32
    return %c0_i32, %c0_i32_0, %c0_i32_1 : i32, i32, i32
  }
  func.func @transform_5(%arg0: i32) -> (i32, i32, i32) {
    %c0_i32 = arith.constant 0 : i32
    %c0_i32_0 = arith.constant 0 : i32
    %c0_i32_1 = arith.constant 0 : i32
    %c0_i32_2 = arith.constant 0 : i32
    return %c0_i32, %c0_i32_0, %c0_i32_1 : i32, i32, i32
  }
  func.func @transform_6(%arg0: i32) -> (i32, i32, i32) {
    %c0_i32 = arith.constant 0 : i32
    %c0_i32_0 = arith.constant 0 : i32
    %c0_i32_1 = arith.constant 0 : i32
    %c0_i32_2 = arith.constant 0 : i32
    return %c0_i32, %c0_i32_0, %c0_i32_1 : i32, i32, i32
  }
  func.func @transform_7(%arg0: i32) -> (i32, i32, i32) {
    %c0_i32 = arith.constant 0 : i32
    %c0_i32_0 = arith.constant 0 : i32
    %c0_i32_1 = arith.constant 0 : i32
    %c0_i32_2 = arith.constant 0 : i32
    return %c0_i32, %c0_i32_0, %c0_i32_1 : i32, i32, i32
  }
  func.func @transform_8(%arg0: i32) -> (i32, i32, i32) {
    %c0_i32 = arith.constant 0 : i32
    %c0_i32_0 = arith.constant 0 : i32
    %c0_i32_1 = arith.constant 0 : i32
    %c0_i32_2 = arith.constant 0 : i32
    return %c0_i32, %c0_i32_0, %c0_i32_1 : i32, i32, i32
  }
  func.func @transform_9(%arg0: i32) -> (i32, i32, i32) {
    %c0_i32 = arith.constant 0 : i32
    %c0_i32_0 = arith.constant 0 : i32
    %c0_i32_1 = arith.constant 0 : i32
    %c0_i32_2 = arith.constant 0 : i32
    return %c0_i32, %c0_i32_0, %c0_i32_1 : i32, i32, i32
  }
  func.func @transform_10(%arg0: i32) -> (i32, i32, i32) {
    %c0_i32 = arith.constant 0 : i32
    %c0_i32_0 = arith.constant 0 : i32
    %c0_i32_1 = arith.constant 0 : i32
    %c0_i32_2 = arith.constant 0 : i32
    return %c0_i32, %c0_i32_0, %c0_i32_1 : i32, i32, i32
  }
  func.func @transform_11(%arg0: i32) -> (i32, i32, i32) {
    %c0_i32 = arith.constant 0 : i32
    %c0_i32_0 = arith.constant 0 : i32
    %c0_i32_1 = arith.constant 0 : i32
    %c0_i32_2 = arith.constant 0 : i32
    return %c0_i32, %c0_i32_0, %c0_i32_1 : i32, i32, i32
  }
  func.func @transform_12(%arg0: i32) -> (i32, i32, i32) {
    %c0_i32 = arith.constant 0 : i32
    %c0_i32_0 = arith.constant 0 : i32
    %c0_i32_1 = arith.constant 0 : i32
    %c0_i32_2 = arith.constant 0 : i32
    return %c0_i32, %c0_i32_0, %c0_i32_1 : i32, i32, i32
  }
  func.func @transform_13(%arg0: i32) -> (i32, i32, i32) {
    %c0_i32 = arith.constant 0 : i32
    %c0_i32_0 = arith.constant 0 : i32
    %c0_i32_1 = arith.constant 0 : i32
    %c0_i32_2 = arith.constant 0 : i32
    return %c0_i32, %c0_i32_0, %c0_i32_1 : i32, i32, i32
  }
  func.func @transform_14(%arg0: i32) -> (i32, i32, i32) {
    %c0_i32 = arith.constant 0 : i32
    %c0_i32_0 = arith.constant 0 : i32
    %c0_i32_1 = arith.constant 0 : i32
    %c0_i32_2 = arith.constant 0 : i32
    return %c0_i32, %c0_i32_0, %c0_i32_1 : i32, i32, i32
  }
  func.func @transform_15(%arg0: i32) -> (i32, i32, i32) {
    %c0_i32 = arith.constant 0 : i32
    %c0_i32_0 = arith.constant 0 : i32
    %c0_i32_1 = arith.constant 0 : i32
    %c0_i32_2 = arith.constant 0 : i32
    return %c0_i32, %c0_i32_0, %c0_i32_1 : i32, i32, i32
  }
  func.func @transform_16(%arg0: i32) -> (i32, i32) {
    %c0_i32 = arith.constant 0 : i32
    %c0_i32_0 = arith.constant 0 : i32
    %c0_i32_1 = arith.constant 0 : i32
    return %c0_i32, %c0_i32_0 : i32, i32
  }
  func.func @transform_17(%arg0: i32) -> (i32, i32) {
    %c0_i32 = arith.constant 0 : i32
    %c0_i32_0 = arith.constant 0 : i32
    %c0_i32_1 = arith.constant 0 : i32
    return %c0_i32, %c0_i32_0 : i32, i32
  }
  func.func @transform_18(%arg0: i32) -> (i32, i32) {
    %c0_i32 = arith.constant 0 : i32
    %c0_i32_0 = arith.constant 0 : i32
    %c0_i32_1 = arith.constant 0 : i32
    return %c0_i32, %c0_i32_0 : i32, i32
  }
  func.func @transform_19(%arg0: i32) -> (i32, i32) {
    %c0_i32 = arith.constant 0 : i32
    %c0_i32_0 = arith.constant 0 : i32
    %c0_i32_1 = arith.constant 0 : i32
    return %c0_i32, %c0_i32_0 : i32, i32
  }
  func.func @transform_20(%arg0: i32) -> (i32, i32) {
    %c0_i32 = arith.constant 0 : i32
    %c0_i32_0 = arith.constant 0 : i32
    %c0_i32_1 = arith.constant 0 : i32
    return %c0_i32, %c0_i32_0 : i32, i32
  }
}

</mosaic_0001>

<llo_original>
// kernel: bert_multidim_regression_forward.1
$region0: #{bert_multidim_regression_forward.1}
  #allocation0 [shape = 'u32[]', space=smem, size = 0x4, offset = 0x4, fixed_abs, tag = 'smem constant byte address 0x4 - core index']
  #allocation1 [shape = 'u32[144,128]{1,0:T(1,128)}', space=vmem, size = 0x12000, scoped, tag = 'internal scratch']
  %s0 = inlined_call_operand.vmem [shape: f32[16,128], index: 0, kind: input, shape index: {}]
  %s1 = inlined_call_operand.vmem [shape: f32[2,8], index: 1, kind: input, shape index: {}]
  %s2 = inlined_call_operand.vmem [shape: f32[1,128], index: 2, kind: input, shape index: {}]
  %s3 = inlined_call_operand.vmem [shape: f32[1,128], index: 3, kind: input, shape index: {}]
  %s4 = inlined_call_operand.hbm [shape: f32[2,128,384], index: 4, kind: input, shape index: {}]
  %s5 = inlined_call_operand.vmem [shape: f32[2,1,384], index: 5, kind: input, shape index: {}]
  %s6 = inlined_call_operand.vmem [shape: f32[2,128,128], index: 6, kind: input, shape index: {}]
  %s7 = inlined_call_operand.vmem [shape: f32[2,1,128], index: 7, kind: input, shape index: {}]
  %s8 = inlined_call_operand.vmem [shape: f32[2,1,128], index: 8, kind: input, shape index: {}]
  %s9 = inlined_call_operand.vmem [shape: f32[2,1,128], index: 9, kind: input, shape index: {}]
  %s10 = inlined_call_operand.hbm [shape: f32[2,128,256], index: 10, kind: input, shape index: {}]
  %s11 = inlined_call_operand.vmem [shape: f32[2,1,256], index: 11, kind: input, shape index: {}]
  %s12 = inlined_call_operand.hbm [shape: f32[2,256,128], index: 12, kind: input, shape index: {}]
  %s13 = inlined_call_operand.vmem [shape: f32[2,1,128], index: 13, kind: input, shape index: {}]
  %s14 = inlined_call_operand.vmem [shape: f32[2,1,128], index: 14, kind: input, shape index: {}]
  %s15 = inlined_call_operand.vmem [shape: f32[2,1,128], index: 15, kind: input, shape index: {}]
  %s16 = inlined_call_operand.hbm [shape: f32[128,128], index: 16, kind: input, shape index: {}]
  %s17 = inlined_call_operand.vmem [shape: f32[1,128], index: 17, kind: input, shape index: {}]
  %s18 = inlined_call_operand.hbm [shape: f32[128,128], index: 18, kind: input, shape index: {}]
  %s19 = inlined_call_operand.vmem [shape: f32[1,128], index: 19, kind: input, shape index: {}]
  %s20 = inlined_call_operand.hbm [shape: f32[2,128], index: 20, kind: output, shape index: {}]
  %s21 = sld [smem:[#allocation0]]
  $region110: #{bert_multidim_regression_forward.1} parent=0
    _
  %s23 = ssub.s32 1, %s21
  %s24 = scalar_select 0, %s23, %s21
  $region1: #{bert_multidim_regression_forward.1} parent=0
    #allocation2 [shape = 'u8[393216]{0}', space=vmem, size = 0x60000, scoped, tag = 'input window, operand 4, single buffered']
    #allocation3 [shape = 's32[1]{0}', space=sflag, size = 0x4, scoped, tag = 'scoped memory for bert_multidim_regression_forward.1']
    #allocation4 [shape = 's32[1]{0}', space=sflag, size = 0x4, scoped, tag = 'scoped memory for bert_multidim_regression_forward.1']
    #allocation5 [shape = 'u8[262144]{0}', space=vmem, size = 0x40000, scoped, tag = 'input window, operand 10, single buffered']
    #allocation6 [shape = 's32[1]{0}', space=sflag, size = 0x4, scoped, tag = 'scoped memory for bert_multidim_regression_forward.1']
    #allocation7 [shape = 'u8[262144]{0}', space=vmem, size = 0x40000, scoped, tag = 'input window, operand 12, single buffered']
    #allocation8 [shape = 'u8[65536]{0}', space=vmem, size = 0x10000, scoped, tag = 'input window, operand 16, single buffered']
    #allocation9 [shape = 's32[1]{0}', space=sflag, size = 0x4, scoped, tag = 'scoped memory for bert_multidim_regression_forward.1']
    #allocation10 [shape = 'u8[65536]{0}', space=vmem, size = 0x10000, scoped, tag = 'input window, operand 18, single buffered']
    #allocation11 [shape = 'u8[1024]{0}', space=vmem, size = 0x400, scoped, tag = 'output window, operand 0, single buffered']
    %25 = vsyncpa [#allocation3], 0
    %26 = vsyncpa [#allocation6], 0
    %27 = vsyncpa [#allocation9], 0
    %28 = vsyncpa [#allocation4], 0
    // Predicated region
    $region2: #{bert_multidim_regression_forward.1} parent=1 // pred_check
      _
    $region3: #{bert_multidim_regression_forward.1} parent=1 // pred_check_branch
      %30 = sbr.rel (0) target = $region5
    $region4: #{bert_multidim_regression_forward.1} parent=1 // pred_region
      _
    $region5: #{bert_multidim_regression_forward.1} parent=1 // pred_fallthru
      _
    // Predicated region
    $region6: #{bert_multidim_regression_forward.1} parent=1 // pred_check
      _
    $region7: #{bert_multidim_regression_forward.1} parent=1 // pred_check_branch
      %32 = sbr.rel (0) target = $region9
    $region8: #{bert_multidim_regression_forward.1} parent=1 // pred_region
      _
    $region9: #{bert_multidim_regression_forward.1} parent=1 // pred_fallthru
      _
    // Predicated region
    $region10: #{bert_multidim_regression_forward.1} parent=1 // pred_check
      _
    $region11: #{bert_multidim_regression_forward.1} parent=1 // pred_check_branch
      %34 = sbr.rel (0) target = $region13
    $region12: #{bert_multidim_regression_forward.1} parent=1 // pred_region
      _
    $region13: #{bert_multidim_regression_forward.1} parent=1 // pred_fallthru
      _
    // Predicated region
    $region14: #{bert_multidim_regression_forward.1} parent=1 // pred_check
      _
    $region15: #{bert_multidim_regression_forward.1} parent=1 // pred_check_branch
      %36 = sbr.rel (0) target = $region17
    $region16: #{bert_multidim_regression_forward.1} parent=1 // pred_region
      _
    $region17: #{bert_multidim_regression_forward.1} parent=1 // pred_fallthru
      _
    // Predicated region
    $region18: #{bert_multidim_regression_forward.1} parent=1 // pred_check
      _
    $region19: #{bert_multidim_regression_forward.1} parent=1 // pred_check_branch
      %38 = sbr.rel (0) target = $region21
    $region20: #{bert_multidim_regression_forward.1} parent=1 // pred_region
      %s40 = ssub.s32 12288, 12288
      %41 = vsyncadd [#allocation3], %s40
      %s42 = sshll.u32 [#allocation2], 4
      %s43 = int_to_ptr.vmem [resolvable:$true] %s42
      %48 = dma.hbm_to_vmem [thread:$0]  %s4, 12288, %s43, [#allocation3], 384, 384, 24
    $region21: #{bert_multidim_regression_forward.1} parent=1 // pred_fallthru
      _
    // Predicated region
    $region22: #{bert_multidim_regression_forward.1} parent=1 // pred_check
      _
    $region23: #{bert_multidim_regression_forward.1} parent=1 // pred_check_branch
      %50 = sbr.rel (0) target = $region25
    $region24: #{bert_multidim_regression_forward.1} parent=1 // pred_region
      _
    $region25: #{bert_multidim_regression_forward.1} parent=1 // pred_fallthru
      _
    // Predicated region
    $region26: #{bert_multidim_regression_forward.1} parent=1 // pred_check
      _
    $region27: #{bert_multidim_regression_forward.1} parent=1 // pred_check_branch
      %52 = sbr.rel (0) target = $region29
    $region28: #{bert_multidim_regression_forward.1} parent=1 // pred_region
      _
    $region29: #{bert_multidim_regression_forward.1} parent=1 // pred_fallthru
      _
    // Predicated region
    $region30: #{bert_multidim_regression_forward.1} parent=1 // pred_check
      _
    $region31: #{bert_multidim_regression_forward.1} parent=1 // pred_check_branch
      %54 = sbr.rel (0) target = $region33
    $region32: #{bert_multidim_regression_forward.1} parent=1 // pred_region
      _
    $region33: #{bert_multidim_regression_forward.1} parent=1 // pred_fallthru
      _
    // Predicated region
    $region34: #{bert_multidim_regression_forward.1} parent=1 // pred_check
      _
    $region35: #{bert_multidim_regression_forward.1} parent=1 // pred_check_branch
      %56 = sbr.rel (0) target = $region37
    $region36: #{bert_multidim_regression_forward.1} parent=1 // pred_region
      _
    $region37: #{bert_multidim_regression_forward.1} parent=1 // pred_fallthru
      _
    // Predicated region
    $region38: #{bert_multidim_regression_forward.1} parent=1 // pred_check
      _
    $region39: #{bert_multidim_regression_forward.1} parent=1 // pred_check_branch
      %58 = sbr.rel (0) target = $region41
    $region40: #{bert_multidim_regression_forward.1} parent=1 // pred_region
      _
    $region41: #{bert_multidim_regression_forward.1} parent=1 // pred_fallthru
      _
    // Predicated region
    $region42: #{bert_multidim_regression_forward.1} parent=1 // pred_check
      _
    $region43: #{bert_multidim_regression_forward.1} parent=1 // pred_check_branch
      %60 = sbr.rel (0) target = $region45
    $region44: #{bert_multidim_regression_forward.1} parent=1 // pred_region
      %s62 = ssub.s32 8192, 8192
      %63 = vsyncadd [#allocation6], %s62
      %s64 = sshll.u32 [#allocation5], 4
      %s65 = int_to_ptr.vmem [resolvable:$true] %s64
      %70 = dma.hbm_to_vmem [thread:$0]  %s10, 8192, %s65, [#allocation6], 256, 256, 16
    $region45: #{bert_multidim_regression_forward.1} parent=1 // pred_fallthru
      _
    // Predicated region
    $region46: #{bert_multidim_regression_forward.1} parent=1 // pred_check
      _
    $region47: #{bert_multidim_regression_forward.1} parent=1 // pred_check_branch
      %72 = sbr.rel (0) target = $region49
    $region48: #{bert_multidim_regression_forward.1} parent=1 // pred_region
      _
    $region49: #{bert_multidim_regression_forward.1} parent=1 // pred_fallthru
      _
    // Predicated region
    $region50: #{bert_multidim_regression_forward.1} parent=1 // pred_check
      _
    $region51: #{bert_multidim_regression_forward.1} parent=1 // pred_check_branch
      %74 = sbr.rel (0) target = $region53
    $region52: #{bert_multidim_regression_forward.1} parent=1 // pred_region
      %s76 = ssub.s32 8192, 8192
      %77 = vsyncadd [#allocation6], %s76
      %s78 = sshll.u32 [#allocation7], 4
      %s79 = int_to_ptr.vmem [resolvable:$true] %s78
      %84 = dma.hbm_to_vmem [thread:$0]  %s12, 8192, %s79, [#allocation6], 128, 128, 8
    $region53: #{bert_multidim_regression_forward.1} parent=1 // pred_fallthru
      _
    // Predicated region
    $region54: #{bert_multidim_regression_forward.1} parent=1 // pred_check
      _
    $region55: #{bert_multidim_regression_forward.1} parent=1 // pred_check_branch
      %86 = sbr.rel (0) target = $region57
    $region56: #{bert_multidim_regression_forward.1} parent=1 // pred_region
      _
    $region57: #{bert_multidim_regression_forward.1} parent=1 // pred_fallthru
      _
    // Predicated region
    $region58: #{bert_multidim_regression_forward.1} parent=1 // pred_check
      _
    $region59: #{bert_multidim_regression_forward.1} parent=1 // pred_check_branch
      %88 = sbr.rel (0) target = $region61
    $region60: #{bert_multidim_regression_forward.1} parent=1 // pred_region
      _
    $region61: #{bert_multidim_regression_forward.1} parent=1 // pred_fallthru
      _
    // Predicated region
    $region62: #{bert_multidim_regression_forward.1} parent=1 // pred_check
      _
    $region63: #{bert_multidim_regression_forward.1} parent=1 // pred_check_branch
      %90 = sbr.rel (0) target = $region65
    $region64: #{bert_multidim_regression_forward.1} parent=1 // pred_region
      _
    $region65: #{bert_multidim_regression_forward.1} parent=1 // pred_fallthru
      _
    // Predicated region
    $region66: #{bert_multidim_regression_forward.1} parent=1 // pred_check
      _
    $region67: #{bert_multidim_regression_forward.1} parent=1 // pred_check_branch
      %92 = sbr.rel (0) target = $region69
    $region68: #{bert_multidim_regression_forward.1} parent=1 // pred_region
      %s94 = ssub.s32 2048, 2048
      %95 = vsyncadd [#allocation9], %s94
      %s96 = sshll.u32 [#allocation8], 4
      %s97 = int_to_ptr.vmem [resolvable:$true] %s96
      %102 = dma.hbm_to_vmem [thread:$0]  %s16, 2048, %s97, [#allocation9], 128, 128, 8
    $region69: #{bert_multidim_regression_forward.1} parent=1 // pred_fallthru
      _
    // Predicated region
    $region70: #{bert_multidim_regression_forward.1} parent=1 // pred_check
      _
    $region71: #{bert_multidim_regression_forward.1} parent=1 // pred_check_branch
      %104 = sbr.rel (0) target = $region73
    $region72: #{bert_multidim_regression_forward.1} parent=1 // pred_region
      _
    $region73: #{bert_multidim_regression_forward.1} parent=1 // pred_fallthru
      _
    // Predicated region
    $region74: #{bert_multidim_regression_forward.1} parent=1 // pred_check
      _
    $region75: #{bert_multidim_regression_forward.1} parent=1 // pred_check_branch
      %106 = sbr.rel (0) target = $region77
    $region76: #{bert_multidim_regression_forward.1} parent=1 // pred_region
      %s108 = ssub.s32 2048, 2048
      %109 = vsyncadd [#allocation9], %s108
      %s110 = sshll.u32 [#allocation10], 4
      %s111 = int_to_ptr.vmem [resolvable:$true] %s110
      %116 = dma.hbm_to_vmem [thread:$0]  %s18, 2048, %s111, [#allocation9], 128, 128, 8
    $region77: #{bert_multidim_regression_forward.1} parent=1 // pred_fallthru
      _
    // Predicated region
    $region78: #{bert_multidim_regression_forward.1} parent=1 // pred_check
      _
    $region79: #{bert_multidim_regression_forward.1} parent=1 // pred_check_branch
      %118 = sbr.rel (0) target = $region81
    $region80: #{bert_multidim_regression_forward.1} parent=1 // pred_region
      _
    $region81: #{bert_multidim_regression_forward.1} parent=1 // pred_fallthru
      _
    // Predicated region
    $region82: #{bert_multidim_regression_forward.1} parent=1 // pred_check
      _
    $region83: #{bert_multidim_regression_forward.1} parent=1 // pred_check_branch
      %120 = sbr.rel (0) target = $region85
    $region84: #{bert_multidim_regression_forward.1} parent=1 // pred_region
      %121 = dma.done [#allocation3], 12288
    $region85: #{bert_multidim_regression_forward.1} parent=1 // pred_fallthru
      _
    // Predicated region
    $region86: #{bert_multidim_regression_forward.1} parent=1 // pred_check
      _
    $region87: #{bert_multidim_regression_forward.1} parent=1 // pred_check_branch
      %123 = sbr.rel (0) target = $region89
    $region88: #{bert_multidim_regression_forward.1} parent=1 // pred_region
      %124 = dma.done [#allocation6], 8192
    $region89: #{bert_multidim_regression_forward.1} parent=1 // pred_fallthru
      _
    // Predicated region
    $region90: #{bert_multidim_regression_forward.1} parent=1 // pred_check
      _
    $region91: #{bert_multidim_regression_forward.1} parent=1 // pred_check_branch
      %126 = sbr.rel (0) target = $region93
    $region92: #{bert_multidim_regression_forward.1} parent=1 // pred_region
      %127 = dma.done [#allocation6], 8192
    $region93: #{bert_multidim_regression_forward.1} parent=1 // pred_fallthru
      _
    // Predicated region
    $region94: #{bert_multidim_regression_forward.1} parent=1 // pred_check
      _
    $region95: #{bert_multidim_regression_forward.1} parent=1 // pred_check_branch
      %129 = sbr.rel (0) target = $region97
    $region96: #{bert_multidim_regression_forward.1} parent=1 // pred_region
      %130 = dma.done [#allocation9], 2048
    $region97: #{bert_multidim_regression_forward.1} parent=1 // pred_fallthru
      _
    // Predicated region
    $region98: #{bert_multidim_regression_forward.1} parent=1 // pred_check
      _
    $region99: #{bert_multidim_regression_forward.1} parent=1 // pred_check_branch
      %132 = sbr.rel (0) target = $region101
    $region100: #{bert_multidim_regression_forward.1} parent=1 // pred_region
      %133 = dma.done [#allocation9], 2048
    $region101: #{bert_multidim_regression_forward.1} parent=1 // pred_fallthru
      _
    %v134 = vld [vmem:[%s0] sm:$0xff]
    %v135 = vld [vmem:[%s0 + $0x8] sm:$0xff]
    %v136 = vld [vmem:[%s2] sm:$0x1]
    %v137 = vld [vmem:[%s3] sm:$0x1]
    %138 = vadd.xlane.f32.xlu0 %v134
    %v139 = vpop.xlane.xlu0 %138
    %140 = vadd.xlane.f32.xlu0 %v135
    %v141 = vpop.xlane.xlu0 %140
    %v142 = vrcp.pop 128.0
    %v143 = vmul.f32 %v139, %v142
    %v144 = vmul.f32 %v141, %v142
    %v145 = vsub.f32 %v134, %v143
    %v146 = vsub.f32 %v135, %v144
    %v147 = vmul.f32 %v145, %v145
    %v148 = vmul.f32 %v146, %v146
    %149 = vadd.xlane.f32.xlu0 %v147
    %v150 = vpop.xlane.xlu0 %149
    %151 = vadd.xlane.f32.xlu0 %v148
    %v152 = vpop.xlane.xlu0 %151
    %v153 = vmul.f32 %v150, %v142
    %v154 = vmul.f32 %v152, %v142
    %v155 = vadd.f32 %v153, 1e-12
    %v156 = vadd.f32 %v154, 1e-12
    %v157 = vrsqrt.pop %v155
    %v158 = vrsqrt.pop %v156
    %v159 = vmul.f32 %v145, %v157
    %v160 = vmul.f32 %v146, %v158
    %v162 = vlaneseq
    %v163 = vshrl.u32 %v162, 7
    %v164 = vsub.s32 0, %v163
    %v165 = vrot.slane %v136, %v164
    %v167 = vmul.f32 %v159, %v165
    %v168 = vmul.f32 %v160, %v165
    %v170 = vlaneseq
    %v171 = vshrl.u32 %v170, 7
    %v172 = vsub.s32 0, %v171
    %v173 = vrot.slane %v137, %v172
    %v175 = vadd.f32 %v167, %v173
    %v176 = vadd.f32 %v168, %v173
    %v177 = vld [vmem:[%s1] sm:$0x3]
    %v178 = vld [vmem:[#allocation2] sm:$0xff]
    %v179 = vld [vmem:[#allocation2 + $0x8] sm:$0xff]
    %v180 = vld [vmem:[#allocation2 + $0x10] sm:$0xff]
    %v181 = vld [vmem:[#allocation2 + $0x18] sm:$0xff]
    %v182 = vld [vmem:[#allocation2 + $0x20] sm:$0xff]
    %v183 = vld [vmem:[#allocation2 + $0x28] sm:$0xff]
    %v184 = vld [vmem:[#allocation2 + $0x30] sm:$0xff]
    %v185 = vld [vmem:[#allocation2 + $0x38] sm:$0xff]
    %v186 = vld [vmem:[#allocation2 + $0x40] sm:$0xff]
    %v187 = vld [vmem:[#allocation2 + $0x48] sm:$0xff]
    %v188 = vld [vmem:[#allocation2 + $0x50] sm:$0xff]
    %v189 = vld [vmem:[#allocation2 + $0x58] sm:$0xff]
    %v190 = vld [vmem:[#allocation2 + $0x60] sm:$0xff]
    %v191 = vld [vmem:[#allocation2 + $0x68] sm:$0xff]
    %v192 = vld [vmem:[#allocation2 + $0x70] sm:$0xff]
    %v193 = vld [vmem:[#allocation2 + $0x78] sm:$0xff]
    %v194 = vld [vmem:[#allocation2 + $0x80] sm:$0xff]
    %v195 = vld [vmem:[#allocation2 + $0x88] sm:$0xff]
    %v196 = vld [vmem:[#allocation2 + $0x90] sm:$0xff]
    %v197 = vld [vmem:[#allocation2 + $0x98] sm:$0xff]
    %v198 = vld [vmem:[#allocation2 + $0xa0] sm:$0xff]
    %v199 = vld [vmem:[#allocation2 + $0xa8] sm:$0xff]
    %v200 = vld [vmem:[#allocation2 + $0xb0] sm:$0xff]
    %v201 = vld [vmem:[#allocation2 + $0xb8] sm:$0xff]
    %v202 = vld [vmem:[#allocation2 + $0xc0] sm:$0xff]
    %v203 = vld [vmem:[#allocation2 + $0xc8] sm:$0xff]
    %v204 = vld [vmem:[#allocation2 + $0xd0] sm:$0xff]
    %v205 = vld [vmem:[#allocation2 + $0xd8] sm:$0xff]
    %v206 = vld [vmem:[#allocation2 + $0xe0] sm:$0xff]
    %v207 = vld [vmem:[#allocation2 + $0xe8] sm:$0xff]
    %v208 = vld [vmem:[#allocation2 + $0xf0] sm:$0xff]
    %v209 = vld [vmem:[#allocation2 + $0xf8] sm:$0xff]
    %v210 = vld [vmem:[#allocation2 + $0x100] sm:$0xff]
    %v211 = vld [vmem:[#allocation2 + $0x108] sm:$0xff]
    %v212 = vld [vmem:[#allocation2 + $0x110] sm:$0xff]
    %v213 = vld [vmem:[#allocation2 + $0x118] sm:$0xff]
    %v214 = vld [vmem:[#allocation2 + $0x120] sm:$0xff]
    %v215 = vld [vmem:[#allocation2 + $0x128] sm:$0xff]
    %v216 = vld [vmem:[#allocation2 + $0x130] sm:$0xff]
    %v217 = vld [vmem:[#allocation2 + $0x138] sm:$0xff]
    %v218 = vld [vmem:[#allocation2 + $0x140] sm:$0xff]
    %v219 = vld [vmem:[#allocation2 + $0x148] sm:$0xff]
    %v220 = vld [vmem:[#allocation2 + $0x150] sm:$0xff]
    %v221 = vld [vmem:[#allocation2 + $0x158] sm:$0xff]
    %v222 = vld [vmem:[#allocation2 + $0x160] sm:$0xff]
    %v223 = vld [vmem:[#allocation2 + $0x168] sm:$0xff]
    %v224 = vld [vmem:[#allocation2 + $0x170] sm:$0xff]
    %v225 = vld [vmem:[#allocation2 + $0x178] sm:$0xff]
    %v226 = vld [vmem:[%s5] sm:$0x7]
    %v228 = vlaneseq
    %v229 = vshrl.u32 %v228, 7
    %v230 = vsub.s32 0, %v229
    %v231 = vrot.slane %v226, %v230
    %v232 = vlaneseq
    %v233 = vshrl.u32 %v232, 7
    %v234 = vsub.s32 1, %v233
    %v235 = vrot.slane %v226, %v234
    %v236 = vlaneseq
    %v237 = vshrl.u32 %v236, 7
    %v238 = vsub.s32 2, %v237
    %v239 = vrot.slane %v226, %v238
    %243 = vmatprep.subr.mxu0 %v179
    %244 = vmatpush1.msra.mxu0 %v178
    %245 = vmatprep.subr.mxu0 %v182
    %246 = vmatpush1.msra.mxu0 %v181
    %247 = vmatprep.subr.mxu0 %v185
    %248 = vmatpush1.msra.mxu0 %v184
    %249 = vmatprep.subr.mxu0 %v188
    %250 = vmatpush1.msra.mxu0 %v187
    %251 = vmatprep.subr.mxu0 %v191
    %252 = vmatpush1.msra.mxu0 %v190
    %253 = vmatprep.subr.mxu0 %v194
    %254 = vmatpush1.msra.mxu0 %v193
    %255 = vmatprep.subr.mxu0 %v197
    %256 = vmatpush1.msra.mxu0 %v196
    %257 = vmatprep.subr.mxu0 %v200
    %258 = vmatpush1.msra.mxu0 %v199
    %259 = vmatprep.subr.mxu0 %v203
    %260 = vmatpush1.msra.mxu0 %v202
    %261 = vmatprep.subr.mxu0 %v206
    %262 = vmatpush1.msra.mxu0 %v205
    %263 = vmatprep.subr.mxu0 %v209
    %264 = vmatpush1.msra.mxu0 %v208
    %265 = vmatprep.subr.mxu0 %v212
    %266 = vmatpush1.msra.mxu0 %v211
    %267 = vmatprep.subr.mxu0 %v215
    %268 = vmatpush1.msra.mxu0 %v214
    %269 = vmatprep.subr.mxu0 %v218
    %270 = vmatpush1.msra.mxu0 %v217
    %271 = vmatprep.subr.mxu0 %v221
    %272 = vmatpush1.msra.mxu0 %v220
    %273 = vmatprep.subr.mxu0 %v224
    %274 = vmatpush1.msra.mxu0 %v223
    %275 = vmatprep.subr.mxu0 0.0
    %276 = vmatpush1.msra.mxu0 0.0
    %277 = vmatprep.subr.mxu0 0.0
    %278 = vmatpush1.msra.mxu0 0.0
    %279 = vmatprep.subr.mxu0 0.0
    %280 = vmatpush1.msra.mxu0 0.0
    %281 = vmatprep.subr.mxu0 0.0
    %282 = vmatpush1.msra.mxu0 0.0
    %283 = vmatprep.subr.mxu0 0.0
    %284 = vmatpush1.msra.mxu0 0.0
    %285 = vmatprep.subr.mxu0 0.0
    %286 = vmatpush1.msra.mxu0 0.0
    %287 = vmatprep.subr.mxu0 0.0
    %288 = vmatpush1.msra.mxu0 0.0
    %289 = vmatprep.subr.mxu0 0.0
    %290 = vmatpush1.msra.mxu0 0.0
    %291 = vmatprep.subr.mxu0 0.0
    %292 = vmatpush1.msra.mxu0 0.0
    %293 = vmatprep.subr.mxu0 0.0
    %294 = vmatpush1.msra.mxu0 0.0
    %295 = vmatprep.subr.mxu0 0.0
    %296 = vmatpush1.msra.mxu0 0.0
    %297 = vmatprep.subr.mxu0 0.0
    %298 = vmatpush1.msra.mxu0 0.0
    %299 = vmatprep.subr.mxu0 0.0
    %300 = vmatpush1.msra.mxu0 0.0
    %301 = vmatprep.subr.mxu0 0.0
    %302 = vmatpush1.msra.mxu0 0.0
    %303 = vmatprep.subr.mxu0 0.0
    %304 = vmatpush1.msra.mxu0 0.0
    %305 = vmatprep.subr.mxu0 0.0
    %306 = vmatpush1.msra.mxu0 0.0
    %307 = vmatprep.mubr.f32.mxu0 0.0
    %308 = vmatmul.mubr.f32.gmra.mrb[0].mxu0 %v175
    %v309 = vpop.f32.mrb[0].mxu0
    %v310 = vadd.f32 %v231, %v309
    %v311 = vpop.f32.mrb[0].mxu0
    %v312 = vadd.f32 %v235, %v311
    %313 = vmatprep.mubr.f32.mxu0 0.0
    %314 = vmatmul.mubr.f32.gmra.mrb[0].mxu0 %v176
    %v315 = vpop.f32.mrb[0].mxu0
    %v316 = vadd.f32 %v231, %v315
    %v317 = vpop.f32.mrb[0].mxu0
    %v318 = vadd.f32 %v235, %v317
    %319 = vdwg.mxu0
    %320 = vmatprep.subr.mxu0 0.0
    %321 = vmatpush1.msra.mxu0 %v180
    %322 = vmatprep.subr.mxu0 0.0
    %323 = vmatpush1.msra.mxu0 %v183
    %324 = vmatprep.subr.mxu0 0.0
    %325 = vmatpush1.msra.mxu0 %v186
    %326 = vmatprep.subr.mxu0 0.0
    %327 = vmatpush1.msra.mxu0 %v189
    %328 = vmatprep.subr.mxu0 0.0
    %329 = vmatpush1.msra.mxu0 %v192
    %330 = vmatprep.subr.mxu0 0.0
    %331 = vmatpush1.msra.mxu0 %v195
    %332 = vmatprep.subr.mxu0 0.0
    %333 = vmatpush1.msra.mxu0 %v198
    %334 = vmatprep.subr.mxu0 0.0
    %335 = vmatpush1.msra.mxu0 %v201
    %336 = vmatprep.subr.mxu0 0.0
    %337 = vmatpush1.msra.mxu0 %v204
    %338 = vmatprep.subr.mxu0 0.0
    %339 = vmatpush1.msra.mxu0 %v207
    %340 = vmatprep.subr.mxu0 0.0
    %341 = vmatpush1.msra.mxu0 %v210
    %342 = vmatprep.subr.mxu0 0.0
    %343 = vmatpush1.msra.mxu0 %v213
    %344 = vmatprep.subr.mxu0 0.0
    %345 = vmatpush1.msra.mxu0 %v216
    %346 = vmatprep.subr.mxu0 0.0
    %347 = vmatpush1.msra.mxu0 %v219
    %348 = vmatprep.subr.mxu0 0.0
    %349 = vmatpush1.msra.mxu0 %v222
    %350 = vmatprep.subr.mxu0 0.0
    %351 = vmatpush1.msra.mxu0 %v225
    %352 = vmatprep.subr.mxu0 0.0
    %353 = vmatpush1.msra.mxu0 0.0
    %354 = vmatprep.subr.mxu0 0.0
    %355 = vmatpush1.msra.mxu0 0.0
    %356 = vmatprep.subr.mxu0 0.0
    %357 = vmatpush1.msra.mxu0 0.0
    %358 = vmatprep.subr.mxu0 0.0
    %359 = vmatpush1.msra.mxu0 0.0
    %360 = vmatprep.subr.mxu0 0.0
    %361 = vmatpush1.msra.mxu0 0.0
    %362 = vmatprep.subr.mxu0 0.0
    %363 = vmatpush1.msra.mxu0 0.0
    %364 = vmatprep.subr.mxu0 0.0
    %365 = vmatpush1.msra.mxu0 0.0
    %366 = vmatprep.subr.mxu0 0.0
    %367 = vmatpush1.msra.mxu0 0.0
    %368 = vmatprep.subr.mxu0 0.0
    %369 = vmatpush1.msra.mxu0 0.0
    %370 = vmatprep.subr.mxu0 0.0
    %371 = vmatpush1.msra.mxu0 0.0
    %372 = vmatprep.subr.mxu0 0.0
    %373 = vmatpush1.msra.mxu0 0.0
    %374 = vmatprep.subr.mxu0 0.0
    %375 = vmatpush1.msra.mxu0 0.0
    %376 = vmatprep.subr.mxu0 0.0
    %377 = vmatpush1.msra.mxu0 0.0
    %378 = vmatprep.subr.mxu0 0.0
    %379 = vmatpush1.msra.mxu0 0.0
    %380 = vmatprep.subr.mxu0 0.0
    %381 = vmatpush1.msra.mxu0 0.0
    %382 = vmatprep.subr.mxu0 0.0
    %383 = vmatpush1.msra.mxu0 0.0
    %384 = vmatprep.mubr.f32.mxu0 0.0
    %385 = vmatmul.mubr.f32.gmra.mrb[0].mxu0 %v175
    %v386 = vpop.f32.mrb[0].mxu0
    %v387 = vadd.f32 %v239, %v386
    %v388 = vpop.f32.mrb[0].mxu0
    %389 = vmatprep.mubr.f32.mxu0 0.0
    %390 = vmatmul.mubr.f32.gmra.mrb[0].mxu0 %v176
    %v391 = vpop.f32.mrb[0].mxu0
    %v392 = vadd.f32 %v239, %v391
    %v393 = vpop.f32.mrb[0].mxu0
    %394 = vdwg.mxu0
    %vm395 = vcmask 523264
    %v397 = vsel %vm395, %v310, 0
    %v400 = vsel %vm395, %v312, 0
    %402 = vmatprep.subr.mxu0 0.0
    %403 = vmatpush1.xpose.msra.mxu0 %v400
    %404 = vmatprep.subr.mxu0 0.0
    %405 = vmatpush1.xpose.msra.mxu0 0.0
    %406 = vmatprep.subr.mxu0 0.0
    %407 = vmatpush1.xpose.msra.mxu0 0.0
    %408 = vmatprep.subr.mxu0 0.0
    %409 = vmatpush1.xpose.msra.mxu0 0.0
    %410 = vmatprep.subr.mxu0 0.0
    %411 = vmatpush1.xpose.msra.mxu0 0.0
    %412 = vmatprep.subr.mxu0 0.0
    %413 = vmatpush1.xpose.msra.mxu0 0.0
    %414 = vmatprep.subr.mxu0 0.0
    %415 = vmatpush1.xpose.msra.mxu0 0.0
    %416 = vmatprep.subr.mxu0 0.0
    %417 = vmatpush1.xpose.msra.mxu0 0.0
    %418 = vmatprep.subr.mxu0 0.0
    %419 = vmatpush1.xpose.msra.mxu0 0.0
    %420 = vmatprep.subr.mxu0 0.0
    %421 = vmatpush1.xpose.msra.mxu0 0.0
    %422 = vmatprep.subr.mxu0 0.0
    %423 = vmatpush1.xpose.msra.mxu0 0.0
    %424 = vmatprep.subr.mxu0 0.0
    %425 = vmatpush1.xpose.msra.mxu0 0.0
    %426 = vmatprep.subr.mxu0 0.0
    %427 = vmatpush1.xpose.msra.mxu0 0.0
    %428 = vmatprep.subr.mxu0 0.0
    %429 = vmatpush1.xpose.msra.mxu0 0.0
    %430 = vmatprep.subr.mxu0 0.0
    %431 = vmatpush1.xpose.msra.mxu0 0.0
    %432 = vmatprep.subr.mxu0 0.0
    %433 = vmatpush1.xpose.msra.mxu0 0.0
    %434 = vmatprep.subr.mxu0 0.0
    %435 = vmatpush1.xpose.msra.mxu0 0.0
    %436 = vmatprep.subr.mxu0 0.0
    %437 = vmatpush1.xpose.msra.mxu0 0.0
    %438 = vmatprep.subr.mxu0 0.0
    %439 = vmatpush1.xpose.msra.mxu0 0.0
    %440 = vmatprep.subr.mxu0 0.0
    %441 = vmatpush1.xpose.msra.mxu0 0.0
    %442 = vmatprep.subr.mxu0 0.0
    %443 = vmatpush1.xpose.msra.mxu0 0.0
    %444 = vmatprep.subr.mxu0 0.0
    %445 = vmatpush1.xpose.msra.mxu0 0.0
    %446 = vmatprep.subr.mxu0 0.0
    %447 = vmatpush1.xpose.msra.mxu0 0.0
    %448 = vmatprep.subr.mxu0 0.0
    %449 = vmatpush1.xpose.msra.mxu0 0.0
    %450 = vmatprep.subr.mxu0 0.0
    %451 = vmatpush1.xpose.msra.mxu0 0.0
    %452 = vmatprep.subr.mxu0 0.0
    %453 = vmatpush1.xpose.msra.mxu0 0.0
    %454 = vmatprep.subr.mxu0 0.0
    %455 = vmatpush1.xpose.msra.mxu0 0.0
    %456 = vmatprep.subr.mxu0 0.0
    %457 = vmatpush1.xpose.msra.mxu0 0.0
    %458 = vmatprep.subr.mxu0 0.0
    %459 = vmatpush1.xpose.msra.mxu0 0.0
    %460 = vmatprep.subr.mxu0 0.0
    %461 = vmatpush1.xpose.msra.mxu0 0.0
    %462 = vmatprep.subr.mxu0 0.0
    %463 = vmatpush1.xpose.msra.mxu0 0.0
    %464 = vmatprep.subr.mxu0 0.0
    %465 = vmatpush1.xpose.msra.mxu0 0.0
    %466 = vmatprep.mubr.f32.mxu0 0.0
    %467 = vmatmul.mubr.f32.gmra.mrb[0].mxu0 %v397
    %v468 = vpop.f32.mrb[0].mxu0
    %v469 = vadd.f32 0.0, %v468
    %v470 = vpop.f32.mrb[0].mxu0
    %471 = vdwg.mxu0
    %v472 = vmul.f32 %v469, 0.125
    %v473 = vlaneseq
    %v474 = vshrl.u32 %v473, 7
    %v475 = vsub.s32 0, %v474
    %v476 = vrot.slane %v177, %v475
    %v477 = vadd.f32 %v472, %v476
    %vm478 = vcmask 64512
    %v479 = vsel %vm478, %v477, -inf
    %480 = vmax.xlane.f32.xlu0 %v479
    %v481 = vpop.xlane.xlu0 %480
    %v482 = vsub.f32 %v477, %v481
    %v483 = vmul.f32 %v482, 1.442695
    %v484 = vpow.pop %v483
    %v485 = vsel %vm478, %v484, 0.0
    %486 = vadd.xlane.f32.xlu0 %v485
    %v487 = vpop.xlane.xlu0 %486
    %v488 = vrcp.pop %v487
    %v489 = vmul.f32 %v484, %v488
    %v491 = vsel %vm478, %v489, 0
    %493 = vmatprep.subr.mxu0 0.0
    %494 = vmatpush1.msra.mxu0 %v387
    %495 = vmatprep.subr.mxu0 0.0
    %496 = vmatpush1.msra.mxu0 0.0
    %497 = vmatprep.subr.mxu0 0.0
    %498 = vmatpush1.msra.mxu0 0.0
    %499 = vmatprep.subr.mxu0 0.0
    %500 = vmatpush1.msra.mxu0 0.0
    %501 = vmatprep.subr.mxu0 0.0
    %502 = vmatpush1.msra.mxu0 0.0
    %503 = vmatprep.subr.mxu0 0.0
    %504 = vmatpush1.msra.mxu0 0.0
    %505 = vmatprep.subr.mxu0 0.0
    %506 = vmatpush1.msra.mxu0 0.0
    %507 = vmatprep.subr.mxu0 0.0
    %508 = vmatpush1.msra.mxu0 0.0
    %509 = vmatprep.subr.mxu0 0.0
    %510 = vmatpush1.msra.mxu0 0.0
    %511 = vmatprep.subr.mxu0 0.0
    %512 = vmatpush1.msra.mxu0 0.0
    %513 = vmatprep.subr.mxu0 0.0
    %514 = vmatpush1.msra.mxu0 0.0
    %515 = vmatprep.subr.mxu0 0.0
    %516 = vmatpush1.msra.mxu0 0.0
    %517 = vmatprep.subr.mxu0 0.0
    %518 = vmatpush1.msra.mxu0 0.0
    %519 = vmatprep.subr.mxu0 0.0
    %520 = vmatpush1.msra.mxu0 0.0
    %521 = vmatprep.subr.mxu0 0.0
    %522 = vmatpush1.msra.mxu0 0.0
    %523 = vmatprep.subr.mxu0 0.0
    %524 = vmatpush1.msra.mxu0 0.0
    %525 = vmatprep.subr.mxu0 0.0
    %526 = vmatpush1.msra.mxu0 0.0
    %527 = vmatprep.subr.mxu0 0.0
    %528 = vmatpush1.msra.mxu0 0.0
    %529 = vmatprep.subr.mxu0 0.0
    %530 = vmatpush1.msra.mxu0 0.0
    %531 = vmatprep.subr.mxu0 0.0
    %532 = vmatpush1.msra.mxu0 0.0
    %533 = vmatprep.subr.mxu0 0.0
    %534 = vmatpush1.msra.mxu0 0.0
    %535 = vmatprep.subr.mxu0 0.0
    %536 = vmatpush1.msra.mxu0 0.0
    %537 = vmatprep.subr.mxu0 0.0
    %538 = vmatpush1.msra.mxu0 0.0
    %539 = vmatprep.subr.mxu0 0.0
    %540 = vmatpush1.msra.mxu0 0.0
    %541 = vmatprep.subr.mxu0 0.0
    %542 = vmatpush1.msra.mxu0 0.0
    %543 = vmatprep.subr.mxu0 0.0
    %544 = vmatpush1.msra.mxu0 0.0
    %545 = vmatprep.subr.mxu0 0.0
    %546 = vmatpush1.msra.mxu0 0.0
    %547 = vmatprep.subr.mxu0 0.0
    %548 = vmatpush1.msra.mxu0 0.0
    %549 = vmatprep.subr.mxu0 0.0
    %550 = vmatpush1.msra.mxu0 0.0
    %551 = vmatprep.subr.mxu0 0.0
    %552 = vmatpush1.msra.mxu0 0.0
    %553 = vmatprep.subr.mxu0 0.0
    %554 = vmatpush1.msra.mxu0 0.0
    %555 = vmatprep.subr.mxu0 0.0
    %556 = vmatpush1.msra.mxu0 0.0
    %557 = vmatprep.mubr.f32.mxu0 0.0
    %558 = vmatmul.mubr.f32.gmra.mrb[0].mxu0 %v491
    %v559 = vpop.f32.mrb[0].mxu0
    %v560 = vadd.f32 0.0, %v559
    %v561 = vpop.f32.mrb[0].mxu0
    %562 = vdwg.mxu0
    %563 = vrot.lane.b32.xlu0 %v310, 64
    %v564 = vpop.permute.xlu0 %563
    %565 = vrot.lane.b32.xlu0 %v312, 64
    %v566 = vpop.permute.xlu0 %565
    %v567 = vsel %vm395, %v564, 0
    %v569 = vsel %vm395, %v566, 0
    %571 = vmatprep.subr.mxu0 0.0
    %572 = vmatpush1.xpose.msra.mxu0 %v569
    %573 = vmatprep.subr.mxu0 0.0
    %574 = vmatpush1.xpose.msra.mxu0 0.0
    %575 = vmatprep.subr.mxu0 0.0
    %576 = vmatpush1.xpose.msra.mxu0 0.0
    %577 = vmatprep.subr.mxu0 0.0
    %578 = vmatpush1.xpose.msra.mxu0 0.0
    %579 = vmatprep.subr.mxu0 0.0
    %580 = vmatpush1.xpose.msra.mxu0 0.0
    %581 = vmatprep.subr.mxu0 0.0
    %582 = vmatpush1.xpose.msra.mxu0 0.0
    %583 = vmatprep.subr.mxu0 0.0
    %584 = vmatpush1.xpose.msra.mxu0 0.0
    %585 = vmatprep.subr.mxu0 0.0
    %586 = vmatpush1.xpose.msra.mxu0 0.0
    %587 = vmatprep.subr.mxu0 0.0
    %588 = vmatpush1.xpose.msra.mxu0 0.0
    %589 = vmatprep.subr.mxu0 0.0
    %590 = vmatpush1.xpose.msra.mxu0 0.0
    %591 = vmatprep.subr.mxu0 0.0
    %592 = vmatpush1.xpose.msra.mxu0 0.0
    %593 = vmatprep.subr.mxu0 0.0
    %594 = vmatpush1.xpose.msra.mxu0 0.0
    %595 = vmatprep.subr.mxu0 0.0
    %596 = vmatpush1.xpose.msra.mxu0 0.0
    %597 = vmatprep.subr.mxu0 0.0
    %598 = vmatpush1.xpose.msra.mxu0 0.0
    %599 = vmatprep.subr.mxu0 0.0
    %600 = vmatpush1.xpose.msra.mxu0 0.0
    %601 = vmatprep.subr.mxu0 0.0
    %602 = vmatpush1.xpose.msra.mxu0 0.0
    %603 = vmatprep.subr.mxu0 0.0
    %604 = vmatpush1.xpose.msra.mxu0 0.0
    %605 = vmatprep.subr.mxu0 0.0
    %606 = vmatpush1.xpose.msra.mxu0 0.0
    %607 = vmatprep.subr.mxu0 0.0
    %608 = vmatpush1.xpose.msra.mxu0 0.0
    %609 = vmatprep.subr.mxu0 0.0
    %610 = vmatpush1.xpose.msra.mxu0 0.0
    %611 = vmatprep.subr.mxu0 0.0
    %612 = vmatpush1.xpose.msra.mxu0 0.0
    %613 = vmatprep.subr.mxu0 0.0
    %614 = vmatpush1.xpose.msra.mxu0 0.0
    %615 = vmatprep.subr.mxu0 0.0
    %616 = vmatpush1.xpose.msra.mxu0 0.0
    %617 = vmatprep.subr.mxu0 0.0
    %618 = vmatpush1.xpose.msra.mxu0 0.0
    %619 = vmatprep.subr.mxu0 0.0
    %620 = vmatpush1.xpose.msra.mxu0 0.0
    %621 = vmatprep.subr.mxu0 0.0
    %622 = vmatpush1.xpose.msra.mxu0 0.0
    %623 = vmatprep.subr.mxu0 0.0
    %624 = vmatpush1.xpose.msra.mxu0 0.0
    %625 = vmatprep.subr.mxu0 0.0
    %626 = vmatpush1.xpose.msra.mxu0 0.0
    %627 = vmatprep.subr.mxu0 0.0
    %628 = vmatpush1.xpose.msra.mxu0 0.0
    %629 = vmatprep.subr.mxu0 0.0
    %630 = vmatpush1.xpose.msra.mxu0 0.0
    %631 = vmatprep.subr.mxu0 0.0
    %632 = vmatpush1.xpose.msra.mxu0 0.0
    %633 = vmatprep.subr.mxu0 0.0
    %634 = vmatpush1.xpose.msra.mxu0 0.0
    %635 = vmatprep.mubr.f32.mxu0 0.0
    %636 = vmatmul.mubr.f32.gmra.mrb[0].mxu0 %v567
    %v637 = vpop.f32.mrb[0].mxu0
    %v638 = vadd.f32 0.0, %v637
    %v639 = vpop.f32.mrb[0].mxu0
    %640 = vdwg.mxu0
    %v641 = vmul.f32 %v638, 0.125
    %v642 = vadd.f32 %v641, %v476
    %v643 = vsel %vm478, %v642, -inf
    %644 = vmax.xlane.f32.xlu0 %v643
    %v645 = vpop.xlane.xlu0 %644
    %v646 = vsub.f32 %v642, %v645
    %v647 = vmul.f32 %v646, 1.442695
    %v648 = vpow.pop %v647
    %v649 = vsel %vm478, %v648, 0.0
    %650 = vadd.xlane.f32.xlu0 %v649
    %v651 = vpop.xlane.xlu0 %650
    %v652 = vrcp.pop %v651
    %v653 = vmul.f32 %v648, %v652
    %655 = vrot.lane.b32.xlu0 %v387, 64
    %v656 = vpop.permute.xlu0 %655
    %v659 = vsel %vm478, %v653, 0
    %661 = vmatprep.subr.mxu0 0.0
    %662 = vmatpush1.msra.mxu0 %v656
    %663 = vmatprep.subr.mxu0 0.0
    %664 = vmatpush1.msra.mxu0 0.0
    %665 = vmatprep.subr.mxu0 0.0
    %666 = vmatpush1.msra.mxu0 0.0
    %667 = vmatprep.subr.mxu0 0.0
    %668 = vmatpush1.msra.mxu0 0.0
    %669 = vmatprep.subr.mxu0 0.0
    %670 = vmatpush1.msra.mxu0 0.0
    %671 = vmatprep.subr.mxu0 0.0
    %672 = vmatpush1.msra.mxu0 0.0
    %673 = vmatprep.subr.mxu0 0.0
    %674 = vmatpush1.msra.mxu0 0.0
    %675 = vmatprep.subr.mxu0 0.0
    %676 = vmatpush1.msra.mxu0 0.0
    %677 = vmatprep.subr.mxu0 0.0
    %678 = vmatpush1.msra.mxu0 0.0
    %679 = vmatprep.subr.mxu0 0.0
    %680 = vmatpush1.msra.mxu0 0.0
    %681 = vmatprep.subr.mxu0 0.0
    %682 = vmatpush1.msra.mxu0 0.0
    %683 = vmatprep.subr.mxu0 0.0
    %684 = vmatpush1.msra.mxu0 0.0
    %685 = vmatprep.subr.mxu0 0.0
    %686 = vmatpush1.msra.mxu0 0.0
    %687 = vmatprep.subr.mxu0 0.0
    %688 = vmatpush1.msra.mxu0 0.0
    %689 = vmatprep.subr.mxu0 0.0
    %690 = vmatpush1.msra.mxu0 0.0
    %691 = vmatprep.subr.mxu0 0.0
    %692 = vmatpush1.msra.mxu0 0.0
    %693 = vmatprep.subr.mxu0 0.0
    %694 = vmatpush1.msra.mxu0 0.0
    %695 = vmatprep.subr.mxu0 0.0
    %696 = vmatpush1.msra.mxu0 0.0
    %697 = vmatprep.subr.mxu0 0.0
    %698 = vmatpush1.msra.mxu0 0.0
    %699 = vmatprep.subr.mxu0 0.0
    %700 = vmatpush1.msra.mxu0 0.0
    %701 = vmatprep.subr.mxu0 0.0
    %702 = vmatpush1.msra.mxu0 0.0
    %703 = vmatprep.subr.mxu0 0.0
    %704 = vmatpush1.msra.mxu0 0.0
    %705 = vmatprep.subr.mxu0 0.0
    %706 = vmatpush1.msra.mxu0 0.0
    %707 = vmatprep.subr.mxu0 0.0
    %708 = vmatpush1.msra.mxu0 0.0
    %709 = vmatprep.subr.mxu0 0.0
    %710 = vmatpush1.msra.mxu0 0.0
    %711 = vmatprep.subr.mxu0 0.0
    %712 = vmatpush1.msra.mxu0 0.0
    %713 = vmatprep.subr.mxu0 0.0
    %714 = vmatpush1.msra.mxu0 0.0
    %715 = vmatprep.subr.mxu0 0.0
    %716 = vmatpush1.msra.mxu0 0.0
    %717 = vmatprep.subr.mxu0 0.0
    %718 = vmatpush1.msra.mxu0 0.0
    %719 = vmatprep.subr.mxu0 0.0
    %720 = vmatpush1.msra.mxu0 0.0
    %721 = vmatprep.subr.mxu0 0.0
    %722 = vmatpush1.msra.mxu0 0.0
    %723 = vmatprep.subr.mxu0 0.0
    %724 = vmatpush1.msra.mxu0 0.0
    %725 = vmatprep.mubr.f32.mxu0 0.0
    %726 = vmatmul.mubr.f32.gmra.mrb[0].mxu0 %v659
    %v727 = vpop.f32.mrb[0].mxu0
    %v728 = vadd.f32 0.0, %v727
    %v729 = vpop.f32.mrb[0].mxu0
    %730 = vdwg.mxu0
    %732 = vrot.lane.b32.xlu0 %v728, 64
    %v733 = vpop.permute.xlu0 %732
    %v735 = vsel %vm395, %v560, %v733
    %v737 = vsel %vm395, %v316, 0
    %v740 = vsel %vm395, %v318, 0
    %742 = vmatprep.subr.mxu0 0.0
    %743 = vmatpush1.xpose.msra.mxu0 %v740
    %744 = vmatprep.subr.mxu0 0.0
    %745 = vmatpush1.xpose.msra.mxu0 0.0
    %746 = vmatprep.subr.mxu0 0.0
    %747 = vmatpush1.xpose.msra.mxu0 0.0
    %748 = vmatprep.subr.mxu0 0.0
    %749 = vmatpush1.xpose.msra.mxu0 0.0
    %750 = vmatprep.subr.mxu0 0.0
    %751 = vmatpush1.xpose.msra.mxu0 0.0
    %752 = vmatprep.subr.mxu0 0.0
    %753 = vmatpush1.xpose.msra.mxu0 0.0
    %754 = vmatprep.subr.mxu0 0.0
    %755 = vmatpush1.xpose.msra.mxu0 0.0
    %756 = vmatprep.subr.mxu0 0.0
    %757 = vmatpush1.xpose.msra.mxu0 0.0
    %758 = vmatprep.subr.mxu0 0.0
    %759 = vmatpush1.xpose.msra.mxu0 0.0
    %760 = vmatprep.subr.mxu0 0.0
    %761 = vmatpush1.xpose.msra.mxu0 0.0
    %762 = vmatprep.subr.mxu0 0.0
    %763 = vmatpush1.xpose.msra.mxu0 0.0
    %764 = vmatprep.subr.mxu0 0.0
    %765 = vmatpush1.xpose.msra.mxu0 0.0
    %766 = vmatprep.subr.mxu0 0.0
    %767 = vmatpush1.xpose.msra.mxu0 0.0
    %768 = vmatprep.subr.mxu0 0.0
    %769 = vmatpush1.xpose.msra.mxu0 0.0
    %770 = vmatprep.subr.mxu0 0.0
    %771 = vmatpush1.xpose.msra.mxu0 0.0
    %772 = vmatprep.subr.mxu0 0.0
    %773 = vmatpush1.xpose.msra.mxu0 0.0
    %774 = vmatprep.subr.mxu0 0.0
    %775 = vmatpush1.xpose.msra.mxu0 0.0
    %776 = vmatprep.subr.mxu0 0.0
    %777 = vmatpush1.xpose.msra.mxu0 0.0
    %778 = vmatprep.subr.mxu0 0.0
    %779 = vmatpush1.xpose.msra.mxu0 0.0
    %780 = vmatprep.subr.mxu0 0.0
    %781 = vmatpush1.xpose.msra.mxu0 0.0
    %782 = vmatprep.subr.mxu0 0.0
    %783 = vmatpush1.xpose.msra.mxu0 0.0
    %784 = vmatprep.subr.mxu0 0.0
    %785 = vmatpush1.xpose.msra.mxu0 0.0
    %786 = vmatprep.subr.mxu0 0.0
    %787 = vmatpush1.xpose.msra.mxu0 0.0
    %788 = vmatprep.subr.mxu0 0.0
    %789 = vmatpush1.xpose.msra.mxu0 0.0
    %790 = vmatprep.subr.mxu0 0.0
    %791 = vmatpush1.xpose.msra.mxu0 0.0
    %792 = vmatprep.subr.mxu0 0.0
    %793 = vmatpush1.xpose.msra.mxu0 0.0
    %794 = vmatprep.subr.mxu0 0.0
    %795 = vmatpush1.xpose.msra.mxu0 0.0
    %796 = vmatprep.subr.mxu0 0.0
    %797 = vmatpush1.xpose.msra.mxu0 0.0
    %798 = vmatprep.subr.mxu0 0.0
    %799 = vmatpush1.xpose.msra.mxu0 0.0
    %800 = vmatprep.subr.mxu0 0.0
    %801 = vmatpush1.xpose.msra.mxu0 0.0
    %802 = vmatprep.subr.mxu0 0.0
    %803 = vmatpush1.xpose.msra.mxu0 0.0
    %804 = vmatprep.subr.mxu0 0.0
    %805 = vmatpush1.xpose.msra.mxu0 0.0
    %806 = vmatprep.mubr.f32.mxu0 0.0
    %807 = vmatmul.mubr.f32.gmra.mrb[0].mxu0 %v737
    %v808 = vpop.f32.mrb[0].mxu0
    %v809 = vadd.f32 0.0, %v808
    %v810 = vpop.f32.mrb[0].mxu0
    %811 = vdwg.mxu0
    %v812 = vmul.f32 %v809, 0.125
    %v813 = vlaneseq
    %v814 = vshrl.u32 %v813, 7
    %v815 = vsub.s32 1, %v814
    %v816 = vrot.slane %v177, %v815
    %v817 = vadd.f32 %v812, %v816
    %v818 = vsel %vm478, %v817, -inf
    %819 = vmax.xlane.f32.xlu0 %v818
    %v820 = vpop.xlane.xlu0 %819
    %v821 = vsub.f32 %v817, %v820
    %v822 = vmul.f32 %v821, 1.442695
    %v823 = vpow.pop %v822
    %v824 = vsel %vm478, %v823, 0.0
    %825 = vadd.xlane.f32.xlu0 %v824
    %v826 = vpop.xlane.xlu0 %825
    %v827 = vrcp.pop %v826
    %v828 = vmul.f32 %v823, %v827
    %v830 = vsel %vm478, %v828, 0
    %832 = vmatprep.subr.mxu0 0.0
    %833 = vmatpush1.msra.mxu0 %v392
    %834 = vmatprep.subr.mxu0 0.0
    %835 = vmatpush1.msra.mxu0 0.0
    %836 = vmatprep.subr.mxu0 0.0
    %837 = vmatpush1.msra.mxu0 0.0
    %838 = vmatprep.subr.mxu0 0.0
    %839 = vmatpush1.msra.mxu0 0.0
    %840 = vmatprep.subr.mxu0 0.0
    %841 = vmatpush1.msra.mxu0 0.0
    %842 = vmatprep.subr.mxu0 0.0
    %843 = vmatpush1.msra.mxu0 0.0
    %844 = vmatprep.subr.mxu0 0.0
    %845 = vmatpush1.msra.mxu0 0.0
    %846 = vmatprep.subr.mxu0 0.0
    %847 = vmatpush1.msra.mxu0 0.0
    %848 = vmatprep.subr.mxu0 0.0
    %849 = vmatpush1.msra.mxu0 0.0
    %850 = vmatprep.subr.mxu0 0.0
    %851 = vmatpush1.msra.mxu0 0.0
    %852 = vmatprep.subr.mxu0 0.0
    %853 = vmatpush1.msra.mxu0 0.0
    %854 = vmatprep.subr.mxu0 0.0
    %855 = vmatpush1.msra.mxu0 0.0
    %856 = vmatprep.subr.mxu0 0.0
    %857 = vmatpush1.msra.mxu0 0.0
    %858 = vmatprep.subr.mxu0 0.0
    %859 = vmatpush1.msra.mxu0 0.0
    %860 = vmatprep.subr.mxu0 0.0
    %861 = vmatpush1.msra.mxu0 0.0
    %862 = vmatprep.subr.mxu0 0.0
    %863 = vmatpush1.msra.mxu0 0.0
    %864 = vmatprep.subr.mxu0 0.0
    %865 = vmatpush1.msra.mxu0 0.0
    %866 = vmatprep.subr.mxu0 0.0
    %867 = vmatpush1.msra.mxu0 0.0
    %868 = vmatprep.subr.mxu0 0.0
    %869 = vmatpush1.msra.mxu0 0.0
    %870 = vmatprep.subr.mxu0 0.0
    %871 = vmatpush1.msra.mxu0 0.0
    %872 = vmatprep.subr.mxu0 0.0
    %873 = vmatpush1.msra.mxu0 0.0
    %874 = vmatprep.subr.mxu0 0.0
    %875 = vmatpush1.msra.mxu0 0.0
    %876 = vmatprep.subr.mxu0 0.0
    %877 = vmatpush1.msra.mxu0 0.0
    %878 = vmatprep.subr.mxu0 0.0
    %879 = vmatpush1.msra.mxu0 0.0
    %880 = vmatprep.subr.mxu0 0.0
    %881 = vmatpush1.msra.mxu0 0.0
    %882 = vmatprep.subr.mxu0 0.0
    %883 = vmatpush1.msra.mxu0 0.0
    %884 = vmatprep.subr.mxu0 0.0
    %885 = vmatpush1.msra.mxu0 0.0
    %886 = vmatprep.subr.mxu0 0.0
    %887 = vmatpush1.msra.mxu0 0.0
    %888 = vmatprep.subr.mxu0 0.0
    %889 = vmatpush1.msra.mxu0 0.0
    %890 = vmatprep.subr.mxu0 0.0
    %891 = vmatpush1.msra.mxu0 0.0
    %892 = vmatprep.subr.mxu0 0.0
    %893 = vmatpush1.msra.mxu0 0.0
    %894 = vmatprep.subr.mxu0 0.0
    %895 = vmatpush1.msra.mxu0 0.0
    %896 = vmatprep.mubr.f32.mxu0 0.0
    %897 = vmatmul.mubr.f32.gmra.mrb[0].mxu0 %v830
    %v898 = vpop.f32.mrb[0].mxu0
    %v899 = vadd.f32 0.0, %v898
    %v900 = vpop.f32.mrb[0].mxu0
    %901 = vdwg.mxu0
    %902 = vrot.lane.b32.xlu0 %v316, 64
    %v903 = vpop.permute.xlu0 %902
    %904 = vrot.lane.b32.xlu0 %v318, 64
    %v905 = vpop.permute.xlu0 %904
    %v906 = vsel %vm395, %v903, 0
    %v908 = vsel %vm395, %v905, 0
    %910 = vmatprep.subr.mxu0 0.0
    %911 = vmatpush1.xpose.msra.mxu0 %v908
    %912 = vmatprep.subr.mxu0 0.0
    %913 = vmatpush1.xpose.msra.mxu0 0.0
    %914 = vmatprep.subr.mxu0 0.0
    %915 = vmatpush1.xpose.msra.mxu0 0.0
    %916 = vmatprep.subr.mxu0 0.0
    %917 = vmatpush1.xpose.msra.mxu0 0.0
    %918 = vmatprep.subr.mxu0 0.0
    %919 = vmatpush1.xpose.msra.mxu0 0.0
    %920 = vmatprep.subr.mxu0 0.0
    %921 = vmatpush1.xpose.msra.mxu0 0.0
    %922 = vmatprep.subr.mxu0 0.0
    %923 = vmatpush1.xpose.msra.mxu0 0.0
    %924 = vmatprep.subr.mxu0 0.0
    %925 = vmatpush1.xpose.msra.mxu0 0.0
    %926 = vmatprep.subr.mxu0 0.0
    %927 = vmatpush1.xpose.msra.mxu0 0.0
    %928 = vmatprep.subr.mxu0 0.0
    %929 = vmatpush1.xpose.msra.mxu0 0.0
    %930 = vmatprep.subr.mxu0 0.0
    %931 = vmatpush1.xpose.msra.mxu0 0.0
    %932 = vmatprep.subr.mxu0 0.0
    %933 = vmatpush1.xpose.msra.mxu0 0.0
    %934 = vmatprep.subr.mxu0 0.0
    %935 = vmatpush1.xpose.msra.mxu0 0.0
    %936 = vmatprep.subr.mxu0 0.0
    %937 = vmatpush1.xpose.msra.mxu0 0.0
    %938 = vmatprep.subr.mxu0 0.0
    %939 = vmatpush1.xpose.msra.mxu0 0.0
    %940 = vmatprep.subr.mxu0 0.0
    %941 = vmatpush1.xpose.msra.mxu0 0.0
    %942 = vmatprep.subr.mxu0 0.0
    %943 = vmatpush1.xpose.msra.mxu0 0.0
    %944 = vmatprep.subr.mxu0 0.0
    %945 = vmatpush1.xpose.msra.mxu0 0.0
    %946 = vmatprep.subr.mxu0 0.0
    %947 = vmatpush1.xpose.msra.mxu0 0.0
    %948 = vmatprep.subr.mxu0 0.0
    %949 = vmatpush1.xpose.msra.mxu0 0.0
    %950 = vmatprep.subr.mxu0 0.0
    %951 = vmatpush1.xpose.msra.mxu0 0.0
    %952 = vmatprep.subr.mxu0 0.0
    %953 = vmatpush1.xpose.msra.mxu0 0.0
    %954 = vmatprep.subr.mxu0 0.0
    %955 = vmatpush1.xpose.msra.mxu0 0.0
    %956 = vmatprep.subr.mxu0 0.0
    %957 = vmatpush1.xpose.msra.mxu0 0.0
    %958 = vmatprep.subr.mxu0 0.0
    %959 = vmatpush1.xpose.msra.mxu0 0.0
    %960 = vmatprep.subr.mxu0 0.0
    %961 = vmatpush1.xpose.msra.mxu0 0.0
    %962 = vmatprep.subr.mxu0 0.0
    %963 = vmatpush1.xpose.msra.mxu0 0.0
    %964 = vmatprep.subr.mxu0 0.0
    %965 = vmatpush1.xpose.msra.mxu0 0.0
    %966 = vmatprep.subr.mxu0 0.0
    %967 = vmatpush1.xpose.msra.mxu0 0.0
    %968 = vmatprep.subr.mxu0 0.0
    %969 = vmatpush1.xpose.msra.mxu0 0.0
    %970 = vmatprep.subr.mxu0 0.0
    %971 = vmatpush1.xpose.msra.mxu0 0.0
    %972 = vmatprep.subr.mxu0 0.0
    %973 = vmatpush1.xpose.msra.mxu0 0.0
    %974 = vmatprep.mubr.f32.mxu0 0.0
    %975 = vmatmul.mubr.f32.gmra.mrb[0].mxu0 %v906
    %v976 = vpop.f32.mrb[0].mxu0
    %v977 = vadd.f32 0.0, %v976
    %v978 = vpop.f32.mrb[0].mxu0
    %979 = vdwg.mxu0
    %v980 = vmul.f32 %v977, 0.125
    %v981 = vadd.f32 %v980, %v816
    %v982 = vsel %vm478, %v981, -inf
    %983 = vmax.xlane.f32.xlu0 %v982
    %v984 = vpop.xlane.xlu0 %983
    %v985 = vsub.f32 %v981, %v984
    %v986 = vmul.f32 %v985, 1.442695
    %v987 = vpow.pop %v986
    %v988 = vsel %vm478, %v987, 0.0
    %989 = vadd.xlane.f32.xlu0 %v988
    %v990 = vpop.xlane.xlu0 %989
    %v991 = vrcp.pop %v990
    %v992 = vmul.f32 %v987, %v991
    %994 = vrot.lane.b32.xlu0 %v392, 64
    %v995 = vpop.permute.xlu0 %994
    %v998 = vsel %vm478, %v992, 0
    %1000 = vmatprep.subr.mxu0 0.0
    %1001 = vmatpush1.msra.mxu0 %v995
    %1002 = vmatprep.subr.mxu0 0.0
    %1003 = vmatpush1.msra.mxu0 0.0
    %1004 = vmatprep.subr.mxu0 0.0
    %1005 = vmatpush1.msra.mxu0 0.0
    %1006 = vmatprep.subr.mxu0 0.0
    %1007 = vmatpush1.msra.mxu0 0.0
    %1008 = vmatprep.subr.mxu0 0.0
    %1009 = vmatpush1.msra.mxu0 0.0
    %1010 = vmatprep.subr.mxu0 0.0
    %1011 = vmatpush1.msra.mxu0 0.0
    %1012 = vmatprep.subr.mxu0 0.0
    %1013 = vmatpush1.msra.mxu0 0.0
    %1014 = vmatprep.subr.mxu0 0.0
    %1015 = vmatpush1.msra.mxu0 0.0
    %1016 = vmatprep.subr.mxu0 0.0
    %1017 = vmatpush1.msra.mxu0 0.0
    %1018 = vmatprep.subr.mxu0 0.0
    %1019 = vmatpush1.msra.mxu0 0.0
    %1020 = vmatprep.subr.mxu0 0.0
    %1021 = vmatpush1.msra.mxu0 0.0
    %1022 = vmatprep.subr.mxu0 0.0
    %1023 = vmatpush1.msra.mxu0 0.0
    %1024 = vmatprep.subr.mxu0 0.0
    %1025 = vmatpush1.msra.mxu0 0.0
    %1026 = vmatprep.subr.mxu0 0.0
    %1027 = vmatpush1.msra.mxu0 0.0
    %1028 = vmatprep.subr.mxu0 0.0
    %1029 = vmatpush1.msra.mxu0 0.0
    %1030 = vmatprep.subr.mxu0 0.0
    %1031 = vmatpush1.msra.mxu0 0.0
    %1032 = vmatprep.subr.mxu0 0.0
    %1033 = vmatpush1.msra.mxu0 0.0
    %1034 = vmatprep.subr.mxu0 0.0
    %1035 = vmatpush1.msra.mxu0 0.0
    %1036 = vmatprep.subr.mxu0 0.0
    %1037 = vmatpush1.msra.mxu0 0.0
    %1038 = vmatprep.subr.mxu0 0.0
    %1039 = vmatpush1.msra.mxu0 0.0
    %1040 = vmatprep.subr.mxu0 0.0
    %1041 = vmatpush1.msra.mxu0 0.0
    %1042 = vmatprep.subr.mxu0 0.0
    %1043 = vmatpush1.msra.mxu0 0.0
    %1044 = vmatprep.subr.mxu0 0.0
    %1045 = vmatpush1.msra.mxu0 0.0
    %1046 = vmatprep.subr.mxu0 0.0
    %1047 = vmatpush1.msra.mxu0 0.0
    %1048 = vmatprep.subr.mxu0 0.0
    %1049 = vmatpush1.msra.mxu0 0.0
    %1050 = vmatprep.subr.mxu0 0.0
    %1051 = vmatpush1.msra.mxu0 0.0
    %1052 = vmatprep.subr.mxu0 0.0
    %1053 = vmatpush1.msra.mxu0 0.0
    %1054 = vmatprep.subr.mxu0 0.0
    %1055 = vmatpush1.msra.mxu0 0.0
    %1056 = vmatprep.subr.mxu0 0.0
    %1057 = vmatpush1.msra.mxu0 0.0
    %1058 = vmatprep.subr.mxu0 0.0
    %1059 = vmatpush1.msra.mxu0 0.0
    %1060 = vmatprep.subr.mxu0 0.0
    %1061 = vmatpush1.msra.mxu0 0.0
    %1062 = vmatprep.subr.mxu0 0.0
    %1063 = vmatpush1.msra.mxu0 0.0
    %1064 = vmatprep.mubr.f32.mxu0 0.0
    %1065 = vmatmul.mubr.f32.gmra.mrb[0].mxu0 %v998
    %v1066 = vpop.f32.mrb[0].mxu0
    %v1067 = vadd.f32 0.0, %v1066
    %v1068 = vpop.f32.mrb[0].mxu0
    %1069 = vdwg.mxu0
    %1071 = vrot.lane.b32.xlu0 %v1067, 64
    %v1072 = vpop.permute.xlu0 %1071
    %v1074 = vsel %vm395, %v899, %v1072
    %v1075 = vld [vmem:[%s6] sm:$0xff]
    %v1076 = vld [vmem:[%s6 + $0x8] sm:$0xff]
    %v1077 = vld [vmem:[%s6 + $0x10] sm:$0xff]
    %v1078 = vld [vmem:[%s6 + $0x18] sm:$0xff]
    %v1079 = vld [vmem:[%s6 + $0x20] sm:$0xff]
    %v1080 = vld [vmem:[%s6 + $0x28] sm:$0xff]
    %v1081 = vld [vmem:[%s6 + $0x30] sm:$0xff]
    %v1082 = vld [vmem:[%s6 + $0x38] sm:$0xff]
    %v1083 = vld [vmem:[%s6 + $0x40] sm:$0xff]
    %v1084 = vld [vmem:[%s6 + $0x48] sm:$0xff]
    %v1085 = vld [vmem:[%s6 + $0x50] sm:$0xff]
    %v1086 = vld [vmem:[%s6 + $0x58] sm:$0xff]
    %v1087 = vld [vmem:[%s6 + $0x60] sm:$0xff]
    %v1088 = vld [vmem:[%s6 + $0x68] sm:$0xff]
    %v1089 = vld [vmem:[%s6 + $0x70] sm:$0xff]
    %v1090 = vld [vmem:[%s6 + $0x78] sm:$0xff]
    %v1091 = vld [vmem:[%s7] sm:$0x1]
    %v1093 = vlaneseq
    %v1094 = vshrl.u32 %v1093, 7
    %v1095 = vsub.s32 0, %v1094
    %v1096 = vrot.slane %v1091, %v1095
    %1098 = vmatprep.subr.mxu0 0.0
    %1099 = vmatpush1.msra.mxu0 %v1075
    %1100 = vmatprep.subr.mxu0 0.0
    %1101 = vmatpush1.msra.mxu0 %v1076
    %1102 = vmatprep.subr.mxu0 0.0
    %1103 = vmatpush1.msra.mxu0 %v1077
    %1104 = vmatprep.subr.mxu0 0.0
    %1105 = vmatpush1.msra.mxu0 %v1078
    %1106 = vmatprep.subr.mxu0 0.0
    %1107 = vmatpush1.msra.mxu0 %v1079
    %1108 = vmatprep.subr.mxu0 0.0
    %1109 = vmatpush1.msra.mxu0 %v1080
    %1110 = vmatprep.subr.mxu0 0.0
    %1111 = vmatpush1.msra.mxu0 %v1081
    %1112 = vmatprep.subr.mxu0 0.0
    %1113 = vmatpush1.msra.mxu0 %v1082
    %1114 = vmatprep.subr.mxu0 0.0
    %1115 = vmatpush1.msra.mxu0 %v1083
    %1116 = vmatprep.subr.mxu0 0.0
    %1117 = vmatpush1.msra.mxu0 %v1084
    %1118 = vmatprep.subr.mxu0 0.0
    %1119 = vmatpush1.msra.mxu0 %v1085
    %1120 = vmatprep.subr.mxu0 0.0
    %1121 = vmatpush1.msra.mxu0 %v1086
    %1122 = vmatprep.subr.mxu0 0.0
    %1123 = vmatpush1.msra.mxu0 %v1087
    %1124 = vmatprep.subr.mxu0 0.0
    %1125 = vmatpush1.msra.mxu0 %v1088
    %1126 = vmatprep.subr.mxu0 0.0
    %1127 = vmatpush1.msra.mxu0 %v1089
    %1128 = vmatprep.subr.mxu0 0.0
    %1129 = vmatpush1.msra.mxu0 %v1090
    %1130 = vmatprep.subr.mxu0 0.0
    %1131 = vmatpush1.msra.mxu0 0.0
    %1132 = vmatprep.subr.mxu0 0.0
    %1133 = vmatpush1.msra.mxu0 0.0
    %1134 = vmatprep.subr.mxu0 0.0
    %1135 = vmatpush1.msra.mxu0 0.0
    %1136 = vmatprep.subr.mxu0 0.0
    %1137 = vmatpush1.msra.mxu0 0.0
    %1138 = vmatprep.subr.mxu0 0.0
    %1139 = vmatpush1.msra.mxu0 0.0
    %1140 = vmatprep.subr.mxu0 0.0
    %1141 = vmatpush1.msra.mxu0 0.0
    %1142 = vmatprep.subr.mxu0 0.0
    %1143 = vmatpush1.msra.mxu0 0.0
    %1144 = vmatprep.subr.mxu0 0.0
    %1145 = vmatpush1.msra.mxu0 0.0
    %1146 = vmatprep.subr.mxu0 0.0
    %1147 = vmatpush1.msra.mxu0 0.0
    %1148 = vmatprep.subr.mxu0 0.0
    %1149 = vmatpush1.msra.mxu0 0.0
    %1150 = vmatprep.subr.mxu0 0.0
    %1151 = vmatpush1.msra.mxu0 0.0
    %1152 = vmatprep.subr.mxu0 0.0
    %1153 = vmatpush1.msra.mxu0 0.0
    %1154 = vmatprep.subr.mxu0 0.0
    %1155 = vmatpush1.msra.mxu0 0.0
    %1156 = vmatprep.subr.mxu0 0.0
    %1157 = vmatpush1.msra.mxu0 0.0
    %1158 = vmatprep.subr.mxu0 0.0
    %1159 = vmatpush1.msra.mxu0 0.0
    %1160 = vmatprep.subr.mxu0 0.0
    %1161 = vmatpush1.msra.mxu0 0.0
    %1162 = vmatprep.mubr.f32.mxu0 0.0
    %1163 = vmatmul.mubr.f32.gmra.mrb[0].mxu0 %v735
    %v1164 = vpop.f32.mrb[0].mxu0
    %v1165 = vadd.f32 %v1096, %v1164
    %v1166 = vpop.f32.mrb[0].mxu0
    %1167 = vmatprep.mubr.f32.mxu0 0.0
    %1168 = vmatmul.mubr.f32.gmra.mrb[0].mxu0 %v1074
    %v1169 = vpop.f32.mrb[0].mxu0
    %v1170 = vadd.f32 %v1096, %v1169
    %v1171 = vpop.f32.mrb[0].mxu0
    %1172 = vdwg.mxu0
    %v1173 = vadd.f32 %v1165, %v175
    %v1174 = vadd.f32 %v1170, %v176
    %v1175 = vld [vmem:[%s8] sm:$0x1]
    %v1176 = vld [vmem:[%s9] sm:$0x1]
    %1177 = vadd.xlane.f32.xlu0 %v1173
    %v1178 = vpop.xlane.xlu0 %1177
    %1179 = vadd.xlane.f32.xlu0 %v1174
    %v1180 = vpop.xlane.xlu0 %1179
    %v1181 = vmul.f32 %v1178, %v142
    %v1182 = vmul.f32 %v1180, %v142
    %v1183 = vsub.f32 %v1173, %v1181
    %v1184 = vsub.f32 %v1174, %v1182
    %v1185 = vmul.f32 %v1183, %v1183
    %v1186 = vmul.f32 %v1184, %v1184
    %1187 = vadd.xlane.f32.xlu0 %v1185
    %v1188 = vpop.xlane.xlu0 %1187
    %1189 = vadd.xlane.f32.xlu0 %v1186
    %v1190 = vpop.xlane.xlu0 %1189
    %v1191 = vmul.f32 %v1188, %v142
    %v1192 = vmul.f32 %v1190, %v142
    %v1193 = vadd.f32 %v1191, 1e-12
    %v1194 = vadd.f32 %v1192, 1e-12
    %v1195 = vrsqrt.pop %v1193
    %v1196 = vrsqrt.pop %v1194
    %v1197 = vmul.f32 %v1183, %v1195
    %v1198 = vmul.f32 %v1184, %v1196
    %v1200 = vlaneseq
    %v1201 = vshrl.u32 %v1200, 7
    %v1202 = vsub.s32 0, %v1201
    %v1203 = vrot.slane %v1175, %v1202
    %v1205 = vmul.f32 %v1197, %v1203
    %v1206 = vmul.f32 %v1198, %v1203
    %v1208 = vlaneseq
    %v1209 = vshrl.u32 %v1208, 7
    %v1210 = vsub.s32 0, %v1209
    %v1211 = vrot.slane %v1176, %v1210
    %v1213 = vadd.f32 %v1205, %v1211
    %v1214 = vadd.f32 %v1206, %v1211
    %v1215 = vld [vmem:[#allocation5] sm:$0xff]
    %v1216 = vld [vmem:[#allocation5 + $0x8] sm:$0xff]
    %v1217 = vld [vmem:[#allocation5 + $0x10] sm:$0xff]
    %v1218 = vld [vmem:[#allocation5 + $0x18] sm:$0xff]
    %v1219 = vld [vmem:[#allocation5 + $0x20] sm:$0xff]
    %v1220 = vld [vmem:[#allocation5 + $0x28] sm:$0xff]
    %v1221 = vld [vmem:[#allocation5 + $0x30] sm:$0xff]
    %v1222 = vld [vmem:[#allocation5 + $0x38] sm:$0xff]
    %v1223 = vld [vmem:[#allocation5 + $0x40] sm:$0xff]
    %v1224 = vld [vmem:[#allocation5 + $0x48] sm:$0xff]
    %v1225 = vld [vmem:[#allocation5 + $0x50] sm:$0xff]
    %v1226 = vld [vmem:[#allocation5 + $0x58] sm:$0xff]
    %v1227 = vld [vmem:[#allocation5 + $0x60] sm:$0xff]
    %v1228 = vld [vmem:[#allocation5 + $0x68] sm:$0xff]
    %v1229 = vld [vmem:[#allocation5 + $0x70] sm:$0xff]
    %v1230 = vld [vmem:[#allocation5 + $0x78] sm:$0xff]
    %v1231 = vld [vmem:[#allocation5 + $0x80] sm:$0xff]
    %v1232 = vld [vmem:[#allocation5 + $0x88] sm:$0xff]
    %v1233 = vld [vmem:[#allocation5 + $0x90] sm:$0xff]
    %v1234 = vld [vmem:[#allocation5 + $0x98] sm:$0xff]
    %v1235 = vld [vmem:[#allocation5 + $0xa0] sm:$0xff]
    %v1236 = vld [vmem:[#allocation5 + $0xa8] sm:$0xff]
    %v1237 = vld [vmem:[#allocation5 + $0xb0] sm:$0xff]
    %v1238 = vld [vmem:[#allocation5 + $0xb8] sm:$0xff]
    %v1239 = vld [vmem:[#allocation5 + $0xc0] sm:$0xff]
    %v1240 = vld [vmem:[#allocation5 + $0xc8] sm:$0xff]
    %v1241 = vld [vmem:[#allocation5 + $0xd0] sm:$0xff]
    %v1242 = vld [vmem:[#allocation5 + $0xd8] sm:$0xff]
    %v1243 = vld [vmem:[#allocation5 + $0xe0] sm:$0xff]
    %v1244 = vld [vmem:[#allocation5 + $0xe8] sm:$0xff]
    %v1245 = vld [vmem:[#allocation5 + $0xf0] sm:$0xff]
    %v1246 = vld [vmem:[#allocation5 + $0xf8] sm:$0xff]
    %v1247 = vld [vmem:[%s11] sm:$0x3]
    %v1249 = vlaneseq
    %v1250 = vshrl.u32 %v1249, 7
    %v1251 = vsub.s32 0, %v1250
    %v1252 = vrot.slane %v1247, %v1251
    %v1253 = vlaneseq
    %v1254 = vshrl.u32 %v1253, 7
    %v1255 = vsub.s32 1, %v1254
    %v1256 = vrot.slane %v1247, %v1255
    %1259 = vmatprep.subr.mxu0 %v1216
    %1260 = vmatpush1.msra.mxu0 %v1215
    %1261 = vmatprep.subr.mxu0 %v1218
    %1262 = vmatpush1.msra.mxu0 %v1217
    %1263 = vmatprep.subr.mxu0 %v1220
    %1264 = vmatpush1.msra.mxu0 %v1219
    %1265 = vmatprep.subr.mxu0 %v1222
    %1266 = vmatpush1.msra.mxu0 %v1221
    %1267 = vmatprep.subr.mxu0 %v1224
    %1268 = vmatpush1.msra.mxu0 %v1223
    %1269 = vmatprep.subr.mxu0 %v1226
    %1270 = vmatpush1.msra.mxu0 %v1225
    %1271 = vmatprep.subr.mxu0 %v1228
    %1272 = vmatpush1.msra.mxu0 %v1227
    %1273 = vmatprep.subr.mxu0 %v1230
    %1274 = vmatpush1.msra.mxu0 %v1229
    %1275 = vmatprep.subr.mxu0 %v1232
    %1276 = vmatpush1.msra.mxu0 %v1231
    %1277 = vmatprep.subr.mxu0 %v1234
    %1278 = vmatpush1.msra.mxu0 %v1233
    %1279 = vmatprep.subr.mxu0 %v1236
    %1280 = vmatpush1.msra.mxu0 %v1235
    %1281 = vmatprep.subr.mxu0 %v1238
    %1282 = vmatpush1.msra.mxu0 %v1237
    %1283 = vmatprep.subr.mxu0 %v1240
    %1284 = vmatpush1.msra.mxu0 %v1239
    %1285 = vmatprep.subr.mxu0 %v1242
    %1286 = vmatpush1.msra.mxu0 %v1241
    %1287 = vmatprep.subr.mxu0 %v1244
    %1288 = vmatpush1.msra.mxu0 %v1243
    %1289 = vmatprep.subr.mxu0 %v1246
    %1290 = vmatpush1.msra.mxu0 %v1245
    %1291 = vmatprep.subr.mxu0 0.0
    %1292 = vmatpush1.msra.mxu0 0.0
    %1293 = vmatprep.subr.mxu0 0.0
    %1294 = vmatpush1.msra.mxu0 0.0
    %1295 = vmatprep.subr.mxu0 0.0
    %1296 = vmatpush1.msra.mxu0 0.0
    %1297 = vmatprep.subr.mxu0 0.0
    %1298 = vmatpush1.msra.mxu0 0.0
    %1299 = vmatprep.subr.mxu0 0.0
    %1300 = vmatpush1.msra.mxu0 0.0
    %1301 = vmatprep.subr.mxu0 0.0
    %1302 = vmatpush1.msra.mxu0 0.0
    %1303 = vmatprep.subr.mxu0 0.0
    %1304 = vmatpush1.msra.mxu0 0.0
    %1305 = vmatprep.subr.mxu0 0.0
    %1306 = vmatpush1.msra.mxu0 0.0
    %1307 = vmatprep.subr.mxu0 0.0
    %1308 = vmatpush1.msra.mxu0 0.0
    %1309 = vmatprep.subr.mxu0 0.0
    %1310 = vmatpush1.msra.mxu0 0.0
    %1311 = vmatprep.subr.mxu0 0.0
    %1312 = vmatpush1.msra.mxu0 0.0
    %1313 = vmatprep.subr.mxu0 0.0
    %1314 = vmatpush1.msra.mxu0 0.0
    %1315 = vmatprep.subr.mxu0 0.0
    %1316 = vmatpush1.msra.mxu0 0.0
    %1317 = vmatprep.subr.mxu0 0.0
    %1318 = vmatpush1.msra.mxu0 0.0
    %1319 = vmatprep.subr.mxu0 0.0
    %1320 = vmatpush1.msra.mxu0 0.0
    %1321 = vmatprep.subr.mxu0 0.0
    %1322 = vmatpush1.msra.mxu0 0.0
    %1323 = vmatprep.mubr.f32.mxu0 0.0
    %1324 = vmatmul.mubr.f32.gmra.mrb[0].mxu0 %v1213
    %v1325 = vpop.f32.mrb[0].mxu0
    %v1326 = vadd.f32 %v1252, %v1325
    %v1327 = vpop.f32.mrb[0].mxu0
    %v1328 = vadd.f32 %v1256, %v1327
    %1329 = vmatprep.mubr.f32.mxu0 0.0
    %1330 = vmatmul.mubr.f32.gmra.mrb[0].mxu0 %v1214
    %v1331 = vpop.f32.mrb[0].mxu0
    %v1332 = vadd.f32 %v1252, %v1331
    %v1333 = vpop.f32.mrb[0].mxu0
    %v1334 = vadd.f32 %v1256, %v1333
    %1335 = vdwg.mxu0
    %v1336 = vmul.f32 %v1326, 0.5
    %v1337 = vmul.f32 %v1328, 0.5
    %v1338 = vmul.f32 %v1332, 0.5
    %v1339 = vmul.f32 %v1334, 0.5
    %v1340 = vmul.f32 %v1326, 0.044715
    %v1341 = vmul.f32 %v1328, 0.044715
    %v1342 = vmul.f32 %v1332, 0.044715
    %v1343 = vmul.f32 %v1334, 0.044715
    %v1344 = vmul.f32 %v1340, %v1326
    %v1345 = vmul.f32 %v1341, %v1328
    %v1346 = vmul.f32 %v1342, %v1332
    %v1347 = vmul.f32 %v1343, %v1334
    %v1348 = vmul.f32 %v1344, %v1326
    %v1349 = vmul.f32 %v1345, %v1328
    %v1350 = vmul.f32 %v1346, %v1332
    %v1351 = vmul.f32 %v1347, %v1334
    %v1352 = vadd.f32 %v1326, %v1348
    %v1353 = vadd.f32 %v1328, %v1349
    %v1354 = vadd.f32 %v1332, %v1350
    %v1355 = vadd.f32 %v1334, %v1351
    %v1356 = vmul.f32 %v1352, 0.7978846
    %v1357 = vmul.f32 %v1353, 0.7978846
    %v1358 = vmul.f32 %v1354, 0.7978846
    %v1359 = vmul.f32 %v1355, 0.7978846
    %v1360 = vtanh.pop %v1356
    %v1361 = vtanh.pop %v1357
    %v1362 = vtanh.pop %v1358
    %v1363 = vtanh.pop %v1359
    %v1364 = vadd.f32 %v1360, 1.0
    %v1365 = vadd.f32 %v1361, 1.0
    %v1366 = vadd.f32 %v1362, 1.0
    %v1367 = vadd.f32 %v1363, 1.0
    %v1368 = vmul.f32 %v1336, %v1364
    %v1369 = vmul.f32 %v1337, %v1365
    %v1370 = vmul.f32 %v1338, %v1366
    %v1371 = vmul.f32 %v1339, %v1367
    %v1372 = vld [vmem:[#allocation7] sm:$0xff]
    %v1373 = vld [vmem:[#allocation7 + $0x8] sm:$0xff]
    %v1374 = vld [vmem:[#allocation7 + $0x10] sm:$0xff]
    %v1375 = vld [vmem:[#allocation7 + $0x18] sm:$0xff]
    %v1376 = vld [vmem:[#allocation7 + $0x20] sm:$0xff]
    %v1377 = vld [vmem:[#allocation7 + $0x28] sm:$0xff]
    %v1378 = vld [vmem:[#allocation7 + $0x30] sm:$0xff]
    %v1379 = vld [vmem:[#allocation7 + $0x38] sm:$0xff]
    %v1380 = vld [vmem:[#allocation7 + $0x40] sm:$0xff]
    %v1381 = vld [vmem:[#allocation7 + $0x48] sm:$0xff]
    %v1382 = vld [vmem:[#allocation7 + $0x50] sm:$0xff]
    %v1383 = vld [vmem:[#allocation7 + $0x58] sm:$0xff]
    %v1384 = vld [vmem:[#allocation7 + $0x60] sm:$0xff]
    %v1385 = vld [vmem:[#allocation7 + $0x68] sm:$0xff]
    %v1386 = vld [vmem:[#allocation7 + $0x70] sm:$0xff]
    %v1387 = vld [vmem:[#allocation7 + $0x78] sm:$0xff]
    %v1388 = vld [vmem:[#allocation7 + $0x80] sm:$0xff]
    %v1389 = vld [vmem:[#allocation7 + $0x88] sm:$0xff]
    %v1390 = vld [vmem:[#allocation7 + $0x90] sm:$0xff]
    %v1391 = vld [vmem:[#allocation7 + $0x98] sm:$0xff]
    %v1392 = vld [vmem:[#allocation7 + $0xa0] sm:$0xff]
    %v1393 = vld [vmem:[#allocation7 + $0xa8] sm:$0xff]
    %v1394 = vld [vmem:[#allocation7 + $0xb0] sm:$0xff]
    %v1395 = vld [vmem:[#allocation7 + $0xb8] sm:$0xff]
    %v1396 = vld [vmem:[#allocation7 + $0xc0] sm:$0xff]
    %v1397 = vld [vmem:[#allocation7 + $0xc8] sm:$0xff]
    %v1398 = vld [vmem:[#allocation7 + $0xd0] sm:$0xff]
    %v1399 = vld [vmem:[#allocation7 + $0xd8] sm:$0xff]
    %v1400 = vld [vmem:[#allocation7 + $0xe0] sm:$0xff]
    %v1401 = vld [vmem:[#allocation7 + $0xe8] sm:$0xff]
    %v1402 = vld [vmem:[#allocation7 + $0xf0] sm:$0xff]
    %v1403 = vld [vmem:[#allocation7 + $0xf8] sm:$0xff]
    %v1404 = vld [vmem:[%s13] sm:$0x1]
    %v1406 = vlaneseq
    %v1407 = vshrl.u32 %v1406, 7
    %v1408 = vsub.s32 0, %v1407
    %v1409 = vrot.slane %v1404, %v1408
    %1411 = vmatprep.subr.mxu0 0.0
    %1412 = vmatpush1.msra.mxu0 %v1372
    %1413 = vmatprep.subr.mxu0 0.0
    %1414 = vmatpush1.msra.mxu0 %v1373
    %1415 = vmatprep.subr.mxu0 0.0
    %1416 = vmatpush1.msra.mxu0 %v1374
    %1417 = vmatprep.subr.mxu0 0.0
    %1418 = vmatpush1.msra.mxu0 %v1375
    %1419 = vmatprep.subr.mxu0 0.0
    %1420 = vmatpush1.msra.mxu0 %v1376
    %1421 = vmatprep.subr.mxu0 0.0
    %1422 = vmatpush1.msra.mxu0 %v1377
    %1423 = vmatprep.subr.mxu0 0.0
    %1424 = vmatpush1.msra.mxu0 %v1378
    %1425 = vmatprep.subr.mxu0 0.0
    %1426 = vmatpush1.msra.mxu0 %v1379
    %1427 = vmatprep.subr.mxu0 0.0
    %1428 = vmatpush1.msra.mxu0 %v1380
    %1429 = vmatprep.subr.mxu0 0.0
    %1430 = vmatpush1.msra.mxu0 %v1381
    %1431 = vmatprep.subr.mxu0 0.0
    %1432 = vmatpush1.msra.mxu0 %v1382
    %1433 = vmatprep.subr.mxu0 0.0
    %1434 = vmatpush1.msra.mxu0 %v1383
    %1435 = vmatprep.subr.mxu0 0.0
    %1436 = vmatpush1.msra.mxu0 %v1384
    %1437 = vmatprep.subr.mxu0 0.0
    %1438 = vmatpush1.msra.mxu0 %v1385
    %1439 = vmatprep.subr.mxu0 0.0
    %1440 = vmatpush1.msra.mxu0 %v1386
    %1441 = vmatprep.subr.mxu0 0.0
    %1442 = vmatpush1.msra.mxu0 %v1387
    %1443 = vmatprep.subr.mxu0 0.0
    %1444 = vmatpush1.msra.mxu0 %v1388
    %1445 = vmatprep.subr.mxu0 0.0
    %1446 = vmatpush1.msra.mxu0 %v1389
    %1447 = vmatprep.subr.mxu0 0.0
    %1448 = vmatpush1.msra.mxu0 %v1390
    %1449 = vmatprep.subr.mxu0 0.0
    %1450 = vmatpush1.msra.mxu0 %v1391
    %1451 = vmatprep.subr.mxu0 0.0
    %1452 = vmatpush1.msra.mxu0 %v1392
    %1453 = vmatprep.subr.mxu0 0.0
    %1454 = vmatpush1.msra.mxu0 %v1393
    %1455 = vmatprep.subr.mxu0 0.0
    %1456 = vmatpush1.msra.mxu0 %v1394
    %1457 = vmatprep.subr.mxu0 0.0
    %1458 = vmatpush1.msra.mxu0 %v1395
    %1459 = vmatprep.subr.mxu0 0.0
    %1460 = vmatpush1.msra.mxu0 %v1396
    %1461 = vmatprep.subr.mxu0 0.0
    %1462 = vmatpush1.msra.mxu0 %v1397
    %1463 = vmatprep.subr.mxu0 0.0
    %1464 = vmatpush1.msra.mxu0 %v1398
    %1465 = vmatprep.subr.mxu0 0.0
    %1466 = vmatpush1.msra.mxu0 %v1399
    %1467 = vmatprep.subr.mxu0 0.0
    %1468 = vmatpush1.msra.mxu0 %v1400
    %1469 = vmatprep.subr.mxu0 0.0
    %1470 = vmatpush1.msra.mxu0 %v1401
    %1471 = vmatprep.subr.mxu0 0.0
    %1472 = vmatpush1.msra.mxu0 %v1402
    %1473 = vmatprep.subr.mxu0 0.0
    %1474 = vmatpush1.msra.mxu0 %v1403
    %1475 = vmatprep.mubr.f32.mxu0 %v1369
    %1476 = vmatmul.mubr.f32.gmra.mrb[0].mxu0 %v1368
    %v1477 = vpop.f32.mrb[0].mxu0
    %v1478 = vadd.f32 %v1409, %v1477
    %v1479 = vpop.f32.mrb[0].mxu0
    %1480 = vmatprep.mubr.f32.mxu0 %v1371
    %1481 = vmatmul.mubr.f32.gmra.mrb[0].mxu0 %v1370
    %v1482 = vpop.f32.mrb[0].mxu0
    %v1483 = vadd.f32 %v1409, %v1482
    %v1484 = vpop.f32.mrb[0].mxu0
    %1485 = vdwg.mxu0
    %v1486 = vadd.f32 %v1478, %v1213
    %v1487 = vadd.f32 %v1483, %v1214
    %v1488 = vld [vmem:[%s14] sm:$0x1]
    %v1489 = vld [vmem:[%s15] sm:$0x1]
    %1490 = vadd.xlane.f32.xlu0 %v1486
    %v1491 = vpop.xlane.xlu0 %1490
    %1492 = vadd.xlane.f32.xlu0 %v1487
    %v1493 = vpop.xlane.xlu0 %1492
    %v1494 = vmul.f32 %v1491, %v142
    %v1495 = vmul.f32 %v1493, %v142
    %v1496 = vsub.f32 %v1486, %v1494
    %v1497 = vsub.f32 %v1487, %v1495
    %v1498 = vmul.f32 %v1496, %v1496
    %v1499 = vmul.f32 %v1497, %v1497
    %1500 = vadd.xlane.f32.xlu0 %v1498
    %v1501 = vpop.xlane.xlu0 %1500
    %1502 = vadd.xlane.f32.xlu0 %v1499
    %v1503 = vpop.xlane.xlu0 %1502
    %v1504 = vmul.f32 %v1501, %v142
    %v1505 = vmul.f32 %v1503, %v142
    %v1506 = vadd.f32 %v1504, 1e-12
    %v1507 = vadd.f32 %v1505, 1e-12
    %v1508 = vrsqrt.pop %v1506
    %v1509 = vrsqrt.pop %v1507
    %v1510 = vmul.f32 %v1496, %v1508
    %v1511 = vmul.f32 %v1497, %v1509
    %v1513 = vlaneseq
    %v1514 = vshrl.u32 %v1513, 7
    %v1515 = vsub.s32 0, %v1514
    %v1516 = vrot.slane %v1488, %v1515
    %v1518 = vmul.f32 %v1510, %v1516
    %v1519 = vmul.f32 %v1511, %v1516
    %v1521 = vlaneseq
    %v1522 = vshrl.u32 %v1521, 7
    %v1523 = vsub.s32 0, %v1522
    %v1524 = vrot.slane %v1489, %v1523
    %v1526 = vadd.f32 %v1518, %v1524
    %v1527 = vadd.f32 %v1519, %v1524
    %s1528 = scalar_lea.vmem [#allocation2], 384
    %v1529 = vld [vmem:[%s1528] sm:$0xff]
    %v1530 = vld [vmem:[%s1528 + $0x8] sm:$0xff]
    %v1531 = vld [vmem:[%s1528 + $0x10] sm:$0xff]
    %v1532 = vld [vmem:[%s1528 + $0x18] sm:$0xff]
    %v1533 = vld [vmem:[%s1528 + $0x20] sm:$0xff]
    %v1534 = vld [vmem:[%s1528 + $0x28] sm:$0xff]
    %v1535 = vld [vmem:[%s1528 + $0x30] sm:$0xff]
    %v1536 = vld [vmem:[%s1528 + $0x38] sm:$0xff]
    %v1537 = vld [vmem:[%s1528 + $0x40] sm:$0xff]
    %v1538 = vld [vmem:[%s1528 + $0x48] sm:$0xff]
    %v1539 = vld [vmem:[%s1528 + $0x50] sm:$0xff]
    %v1540 = vld [vmem:[%s1528 + $0x58] sm:$0xff]
    %v1541 = vld [vmem:[%s1528 + $0x60] sm:$0xff]
    %v1542 = vld [vmem:[%s1528 + $0x68] sm:$0xff]
    %v1543 = vld [vmem:[%s1528 + $0x70] sm:$0xff]
    %v1544 = vld [vmem:[%s1528 + $0x78] sm:$0xff]
    %v1545 = vld [vmem:[%s1528 + $0x80] sm:$0xff]
    %v1546 = vld [vmem:[%s1528 + $0x88] sm:$0xff]
    %v1547 = vld [vmem:[%s1528 + $0x90] sm:$0xff]
    %v1548 = vld [vmem:[%s1528 + $0x98] sm:$0xff]
    %v1549 = vld [vmem:[%s1528 + $0xa0] sm:$0xff]
    %v1550 = vld [vmem:[%s1528 + $0xa8] sm:$0xff]
    %v1551 = vld [vmem:[%s1528 + $0xb0] sm:$0xff]
    %v1552 = vld [vmem:[%s1528 + $0xb8] sm:$0xff]
    %v1553 = vld [vmem:[%s1528 + $0xc0] sm:$0xff]
    %v1554 = vld [vmem:[%s1528 + $0xc8] sm:$0xff]
    %v1555 = vld [vmem:[%s1528 + $0xd0] sm:$0xff]
    %v1556 = vld [vmem:[%s1528 + $0xd8] sm:$0xff]
    %v1557 = vld [vmem:[%s1528 + $0xe0] sm:$0xff]
    %v1558 = vld [vmem:[%s1528 + $0xe8] sm:$0xff]
    %v1559 = vld [vmem:[%s1528 + $0xf0] sm:$0xff]
    %v1560 = vld [vmem:[%s1528 + $0xf8] sm:$0xff]
    %v1561 = vld [vmem:[%s1528 + $0x100] sm:$0xff]
    %v1562 = vld [vmem:[%s1528 + $0x108] sm:$0xff]
    %v1563 = vld [vmem:[%s1528 + $0x110] sm:$0xff]
    %v1564 = vld [vmem:[%s1528 + $0x118] sm:$0xff]
    %v1565 = vld [vmem:[%s1528 + $0x120] sm:$0xff]
    %v1566 = vld [vmem:[%s1528 + $0x128] sm:$0xff]
    %v1567 = vld [vmem:[%s1528 + $0x130] sm:$0xff]
    %v1568 = vld [vmem:[%s1528 + $0x138] sm:$0xff]
    %v1569 = vld [vmem:[%s1528 + $0x140] sm:$0xff]
    %v1570 = vld [vmem:[%s1528 + $0x148] sm:$0xff]
    %v1571 = vld [vmem:[%s1528 + $0x150] sm:$0xff]
    %v1572 = vld [vmem:[%s1528 + $0x158] sm:$0xff]
    %v1573 = vld [vmem:[%s1528 + $0x160] sm:$0xff]
    %v1574 = vld [vmem:[%s1528 + $0x168] sm:$0xff]
    %v1575 = vld [vmem:[%s1528 + $0x170] sm:$0xff]
    %v1576 = vld [vmem:[%s1528 + $0x178] sm:$0xff]
    %s1577 = scalar_lea.vmem %s5, 3
    %v1578 = vld [vmem:[%s1577] sm:$0x7]
    %v1580 = vlaneseq
    %v1581 = vshrl.u32 %v1580, 7
    %v1582 = vsub.s32 0, %v1581
    %v1583 = vrot.slane %v1578, %v1582
    %v1584 = vlaneseq
    %v1585 = vshrl.u32 %v1584, 7
    %v1586 = vsub.s32 1, %v1585
    %v1587 = vrot.slane %v1578, %v1586
    %v1588 = vlaneseq
    %v1589 = vshrl.u32 %v1588, 7
    %v1590 = vsub.s32 2, %v1589
    %v1591 = vrot.slane %v1578, %v1590
    %1595 = vmatprep.subr.mxu0 %v1530
    %1596 = vmatpush1.msra.mxu0 %v1529
    %1597 = vmatprep.subr.mxu0 %v1533
    %1598 = vmatpush1.msra.mxu0 %v1532
    %1599 = vmatprep.subr.mxu0 %v1536
    %1600 = vmatpush1.msra.mxu0 %v1535
    %1601 = vmatprep.subr.mxu0 %v1539
    %1602 = vmatpush1.msra.mxu0 %v1538
    %1603 = vmatprep.subr.mxu0 %v1542
    %1604 = vmatpush1.msra.mxu0 %v1541
    %1605 = vmatprep.subr.mxu0 %v1545
    %1606 = vmatpush1.msra.mxu0 %v1544
    %1607 = vmatprep.subr.mxu0 %v1548
    %1608 = vmatpush1.msra.mxu0 %v1547
    %1609 = vmatprep.subr.mxu0 %v1551
    %1610 = vmatpush1.msra.mxu0 %v1550
    %1611 = vmatprep.subr.mxu0 %v1554
    %1612 = vmatpush1.msra.mxu0 %v1553
    %1613 = vmatprep.subr.mxu0 %v1557
    %1614 = vmatpush1.msra.mxu0 %v1556
    %1615 = vmatprep.subr.mxu0 %v1560
    %1616 = vmatpush1.msra.mxu0 %v1559
    %1617 = vmatprep.subr.mxu0 %v1563
    %1618 = vmatpush1.msra.mxu0 %v1562
    %1619 = vmatprep.subr.mxu0 %v1566
    %1620 = vmatpush1.msra.mxu0 %v1565
    %1621 = vmatprep.subr.mxu0 %v1569
    %1622 = vmatpush1.msra.mxu0 %v1568
    %1623 = vmatprep.subr.mxu0 %v1572
    %1624 = vmatpush1.msra.mxu0 %v1571
    %1625 = vmatprep.subr.mxu0 %v1575
    %1626 = vmatpush1.msra.mxu0 %v1574
    %1627 = vmatprep.subr.mxu0 0.0
    %1628 = vmatpush1.msra.mxu0 0.0
    %1629 = vmatprep.subr.mxu0 0.0
    %1630 = vmatpush1.msra.mxu0 0.0
    %1631 = vmatprep.subr.mxu0 0.0
    %1632 = vmatpush1.msra.mxu0 0.0
    %1633 = vmatprep.subr.mxu0 0.0
    %1634 = vmatpush1.msra.mxu0 0.0
    %1635 = vmatprep.subr.mxu0 0.0
    %1636 = vmatpush1.msra.mxu0 0.0
    %1637 = vmatprep.subr.mxu0 0.0
    %1638 = vmatpush1.msra.mxu0 0.0
    %1639 = vmatprep.subr.mxu0 0.0
    %1640 = vmatpush1.msra.mxu0 0.0
    %1641 = vmatprep.subr.mxu0 0.0
    %1642 = vmatpush1.msra.mxu0 0.0
    %1643 = vmatprep.subr.mxu0 0.0
    %1644 = vmatpush1.msra.mxu0 0.0
    %1645 = vmatprep.subr.mxu0 0.0
    %1646 = vmatpush1.msra.mxu0 0.0
    %1647 = vmatprep.subr.mxu0 0.0
    %1648 = vmatpush1.msra.mxu0 0.0
    %1649 = vmatprep.subr.mxu0 0.0
    %1650 = vmatpush1.msra.mxu0 0.0
    %1651 = vmatprep.subr.mxu0 0.0
    %1652 = vmatpush1.msra.mxu0 0.0
    %1653 = vmatprep.subr.mxu0 0.0
    %1654 = vmatpush1.msra.mxu0 0.0
    %1655 = vmatprep.subr.mxu0 0.0
    %1656 = vmatpush1.msra.mxu0 0.0
    %1657 = vmatprep.subr.mxu0 0.0
    %1658 = vmatpush1.msra.mxu0 0.0
    %1659 = vmatprep.mubr.f32.mxu0 0.0
    %1660 = vmatmul.mubr.f32.gmra.mrb[0].mxu0 %v1526
    %v1661 = vpop.f32.mrb[0].mxu0
    %v1662 = vadd.f32 %v1583, %v1661
    %v1663 = vpop.f32.mrb[0].mxu0
    %v1664 = vadd.f32 %v1587, %v1663
    %1665 = vmatprep.mubr.f32.mxu0 0.0
    %1666 = vmatmul.mubr.f32.gmra.mrb[0].mxu0 %v1527
    %v1667 = vpop.f32.mrb[0].mxu0
    %v1668 = vadd.f32 %v1583, %v1667
    %v1669 = vpop.f32.mrb[0].mxu0
    %v1670 = vadd.f32 %v1587, %v1669
    %1671 = vdwg.mxu0
    %1672 = vmatprep.subr.mxu0 0.0
    %1673 = vmatpush1.msra.mxu0 %v1531
    %1674 = vmatprep.subr.mxu0 0.0
    %1675 = vmatpush1.msra.mxu0 %v1534
    %1676 = vmatprep.subr.mxu0 0.0
    %1677 = vmatpush1.msra.mxu0 %v1537
    %1678 = vmatprep.subr.mxu0 0.0
    %1679 = vmatpush1.msra.mxu0 %v1540
    %1680 = vmatprep.subr.mxu0 0.0
    %1681 = vmatpush1.msra.mxu0 %v1543
    %1682 = vmatprep.subr.mxu0 0.0
    %1683 = vmatpush1.msra.mxu0 %v1546
    %1684 = vmatprep.subr.mxu0 0.0
    %1685 = vmatpush1.msra.mxu0 %v1549
    %1686 = vmatprep.subr.mxu0 0.0
    %1687 = vmatpush1.msra.mxu0 %v1552
    %1688 = vmatprep.subr.mxu0 0.0
    %1689 = vmatpush1.msra.mxu0 %v1555
    %1690 = vmatprep.subr.mxu0 0.0
    %1691 = vmatpush1.msra.mxu0 %v1558
    %1692 = vmatprep.subr.mxu0 0.0
    %1693 = vmatpush1.msra.mxu0 %v1561
    %1694 = vmatprep.subr.mxu0 0.0
    %1695 = vmatpush1.msra.mxu0 %v1564
    %1696 = vmatprep.subr.mxu0 0.0
    %1697 = vmatpush1.msra.mxu0 %v1567
    %1698 = vmatprep.subr.mxu0 0.0
    %1699 = vmatpush1.msra.mxu0 %v1570
    %1700 = vmatprep.subr.mxu0 0.0
    %1701 = vmatpush1.msra.mxu0 %v1573
    %1702 = vmatprep.subr.mxu0 0.0
    %1703 = vmatpush1.msra.mxu0 %v1576
    %1704 = vmatprep.subr.mxu0 0.0
    %1705 = vmatpush1.msra.mxu0 0.0
    %1706 = vmatprep.subr.mxu0 0.0
    %1707 = vmatpush1.msra.mxu0 0.0
    %1708 = vmatprep.subr.mxu0 0.0
    %1709 = vmatpush1.msra.mxu0 0.0
    %1710 = vmatprep.subr.mxu0 0.0
    %1711 = vmatpush1.msra.mxu0 0.0
    %1712 = vmatprep.subr.mxu0 0.0
    %1713 = vmatpush1.msra.mxu0 0.0
    %1714 = vmatprep.subr.mxu0 0.0
    %1715 = vmatpush1.msra.mxu0 0.0
    %1716 = vmatprep.subr.mxu0 0.0
    %1717 = vmatpush1.msra.mxu0 0.0
    %1718 = vmatprep.subr.mxu0 0.0
    %1719 = vmatpush1.msra.mxu0 0.0
    %1720 = vmatprep.subr.mxu0 0.0
    %1721 = vmatpush1.msra.mxu0 0.0
    %1722 = vmatprep.subr.mxu0 0.0
    %1723 = vmatpush1.msra.mxu0 0.0
    %1724 = vmatprep.subr.mxu0 0.0
    %1725 = vmatpush1.msra.mxu0 0.0
    %1726 = vmatprep.subr.mxu0 0.0
    %1727 = vmatpush1.msra.mxu0 0.0
    %1728 = vmatprep.subr.mxu0 0.0
    %1729 = vmatpush1.msra.mxu0 0.0
    %1730 = vmatprep.subr.mxu0 0.0
    %1731 = vmatpush1.msra.mxu0 0.0
    %1732 = vmatprep.subr.mxu0 0.0
    %1733 = vmatpush1.msra.mxu0 0.0
    %1734 = vmatprep.subr.mxu0 0.0
    %1735 = vmatpush1.msra.mxu0 0.0
    %1736 = vmatprep.mubr.f32.mxu0 0.0
    %1737 = vmatmul.mubr.f32.gmra.mrb[0].mxu0 %v1526
    %v1738 = vpop.f32.mrb[0].mxu0
    %v1739 = vadd.f32 %v1591, %v1738
    %v1740 = vpop.f32.mrb[0].mxu0
    %1741 = vmatprep.mubr.f32.mxu0 0.0
    %1742 = vmatmul.mubr.f32.gmra.mrb[0].mxu0 %v1527
    %v1743 = vpop.f32.mrb[0].mxu0
    %v1744 = vadd.f32 %v1591, %v1743
    %v1745 = vpop.f32.mrb[0].mxu0
    %1746 = vdwg.mxu0
    %v1748 = vsel %vm395, %v1662, 0
    %v1751 = vsel %vm395, %v1664, 0
    %1753 = vmatprep.subr.mxu0 0.0
    %1754 = vmatpush1.xpose.msra.mxu0 %v1751
    %1755 = vmatprep.subr.mxu0 0.0
    %1756 = vmatpush1.xpose.msra.mxu0 0.0
    %1757 = vmatprep.subr.mxu0 0.0
    %1758 = vmatpush1.xpose.msra.mxu0 0.0
    %1759 = vmatprep.subr.mxu0 0.0
    %1760 = vmatpush1.xpose.msra.mxu0 0.0
    %1761 = vmatprep.subr.mxu0 0.0
    %1762 = vmatpush1.xpose.msra.mxu0 0.0
    %1763 = vmatprep.subr.mxu0 0.0
    %1764 = vmatpush1.xpose.msra.mxu0 0.0
    %1765 = vmatprep.subr.mxu0 0.0
    %1766 = vmatpush1.xpose.msra.mxu0 0.0
    %1767 = vmatprep.subr.mxu0 0.0
    %1768 = vmatpush1.xpose.msra.mxu0 0.0
    %1769 = vmatprep.subr.mxu0 0.0
    %1770 = vmatpush1.xpose.msra.mxu0 0.0
    %1771 = vmatprep.subr.mxu0 0.0
    %1772 = vmatpush1.xpose.msra.mxu0 0.0
    %1773 = vmatprep.subr.mxu0 0.0
    %1774 = vmatpush1.xpose.msra.mxu0 0.0
    %1775 = vmatprep.subr.mxu0 0.0
    %1776 = vmatpush1.xpose.msra.mxu0 0.0
    %1777 = vmatprep.subr.mxu0 0.0
    %1778 = vmatpush1.xpose.msra.mxu0 0.0
    %1779 = vmatprep.subr.mxu0 0.0
    %1780 = vmatpush1.xpose.msra.mxu0 0.0
    %1781 = vmatprep.subr.mxu0 0.0
    %1782 = vmatpush1.xpose.msra.mxu0 0.0
    %1783 = vmatprep.subr.mxu0 0.0
    %1784 = vmatpush1.xpose.msra.mxu0 0.0
    %1785 = vmatprep.subr.mxu0 0.0
    %1786 = vmatpush1.xpose.msra.mxu0 0.0
    %1787 = vmatprep.subr.mxu0 0.0
    %1788 = vmatpush1.xpose.msra.mxu0 0.0
    %1789 = vmatprep.subr.mxu0 0.0
    %1790 = vmatpush1.xpose.msra.mxu0 0.0
    %1791 = vmatprep.subr.mxu0 0.0
    %1792 = vmatpush1.xpose.msra.mxu0 0.0
    %1793 = vmatprep.subr.mxu0 0.0
    %1794 = vmatpush1.xpose.msra.mxu0 0.0
    %1795 = vmatprep.subr.mxu0 0.0
    %1796 = vmatpush1.xpose.msra.mxu0 0.0
    %1797 = vmatprep.subr.mxu0 0.0
    %1798 = vmatpush1.xpose.msra.mxu0 0.0
    %1799 = vmatprep.subr.mxu0 0.0
    %1800 = vmatpush1.xpose.msra.mxu0 0.0
    %1801 = vmatprep.subr.mxu0 0.0
    %1802 = vmatpush1.xpose.msra.mxu0 0.0
    %1803 = vmatprep.subr.mxu0 0.0
    %1804 = vmatpush1.xpose.msra.mxu0 0.0
    %1805 = vmatprep.subr.mxu0 0.0
    %1806 = vmatpush1.xpose.msra.mxu0 0.0
    %1807 = vmatprep.subr.mxu0 0.0
    %1808 = vmatpush1.xpose.msra.mxu0 0.0
    %1809 = vmatprep.subr.mxu0 0.0
    %1810 = vmatpush1.xpose.msra.mxu0 0.0
    %1811 = vmatprep.subr.mxu0 0.0
    %1812 = vmatpush1.xpose.msra.mxu0 0.0
    %1813 = vmatprep.subr.mxu0 0.0
    %1814 = vmatpush1.xpose.msra.mxu0 0.0
    %1815 = vmatprep.subr.mxu0 0.0
    %1816 = vmatpush1.xpose.msra.mxu0 0.0
    %1817 = vmatprep.mubr.f32.mxu0 0.0
    %1818 = vmatmul.mubr.f32.gmra.mrb[0].mxu0 %v1748
    %v1819 = vpop.f32.mrb[0].mxu0
    %v1820 = vadd.f32 0.0, %v1819
    %v1821 = vpop.f32.mrb[0].mxu0
    %1822 = vdwg.mxu0
    %v1823 = vmul.f32 %v1820, 0.125
    %v1824 = vadd.f32 %v1823, %v476
    %v1825 = vsel %vm478, %v1824, -inf
    %1826 = vmax.xlane.f32.xlu0 %v1825
    %v1827 = vpop.xlane.xlu0 %1826
    %v1828 = vsub.f32 %v1824, %v1827
    %v1829 = vmul.f32 %v1828, 1.442695
    %v1830 = vpow.pop %v1829
    %v1831 = vsel %vm478, %v1830, 0.0
    %1832 = vadd.xlane.f32.xlu0 %v1831
    %v1833 = vpop.xlane.xlu0 %1832
    %v1834 = vrcp.pop %v1833
    %v1835 = vmul.f32 %v1830, %v1834
    %v1837 = vsel %vm478, %v1835, 0
    %1839 = vmatprep.subr.mxu0 0.0
    %1840 = vmatpush1.msra.mxu0 %v1739
    %1841 = vmatprep.subr.mxu0 0.0
    %1842 = vmatpush1.msra.mxu0 0.0
    %1843 = vmatprep.subr.mxu0 0.0
    %1844 = vmatpush1.msra.mxu0 0.0
    %1845 = vmatprep.subr.mxu0 0.0
    %1846 = vmatpush1.msra.mxu0 0.0
    %1847 = vmatprep.subr.mxu0 0.0
    %1848 = vmatpush1.msra.mxu0 0.0
    %1849 = vmatprep.subr.mxu0 0.0
    %1850 = vmatpush1.msra.mxu0 0.0
    %1851 = vmatprep.subr.mxu0 0.0
    %1852 = vmatpush1.msra.mxu0 0.0
    %1853 = vmatprep.subr.mxu0 0.0
    %1854 = vmatpush1.msra.mxu0 0.0
    %1855 = vmatprep.subr.mxu0 0.0
    %1856 = vmatpush1.msra.mxu0 0.0
    %1857 = vmatprep.subr.mxu0 0.0
    %1858 = vmatpush1.msra.mxu0 0.0
    %1859 = vmatprep.subr.mxu0 0.0
    %1860 = vmatpush1.msra.mxu0 0.0
    %1861 = vmatprep.subr.mxu0 0.0
    %1862 = vmatpush1.msra.mxu0 0.0
    %1863 = vmatprep.subr.mxu0 0.0
    %1864 = vmatpush1.msra.mxu0 0.0
    %1865 = vmatprep.subr.mxu0 0.0
    %1866 = vmatpush1.msra.mxu0 0.0
    %1867 = vmatprep.subr.mxu0 0.0
    %1868 = vmatpush1.msra.mxu0 0.0
    %1869 = vmatprep.subr.mxu0 0.0
    %1870 = vmatpush1.msra.mxu0 0.0
    %1871 = vmatprep.subr.mxu0 0.0
    %1872 = vmatpush1.msra.mxu0 0.0
    %1873 = vmatprep.subr.mxu0 0.0
    %1874 = vmatpush1.msra.mxu0 0.0
    %1875 = vmatprep.subr.mxu0 0.0
    %1876 = vmatpush1.msra.mxu0 0.0
    %1877 = vmatprep.subr.mxu0 0.0
    %1878 = vmatpush1.msra.mxu0 0.0
    %1879 = vmatprep.subr.mxu0 0.0
    %1880 = vmatpush1.msra.mxu0 0.0
    %1881 = vmatprep.subr.mxu0 0.0
    %1882 = vmatpush1.msra.mxu0 0.0
    %1883 = vmatprep.subr.mxu0 0.0
    %1884 = vmatpush1.msra.mxu0 0.0
    %1885 = vmatprep.subr.mxu0 0.0
    %1886 = vmatpush1.msra.mxu0 0.0
    %1887 = vmatprep.subr.mxu0 0.0
    %1888 = vmatpush1.msra.mxu0 0.0
    %1889 = vmatprep.subr.mxu0 0.0
    %1890 = vmatpush1.msra.mxu0 0.0
    %1891 = vmatprep.subr.mxu0 0.0
    %1892 = vmatpush1.msra.mxu0 0.0
    %1893 = vmatprep.subr.mxu0 0.0
    %1894 = vmatpush1.msra.mxu0 0.0
    %1895 = vmatprep.subr.mxu0 0.0
    %1896 = vmatpush1.msra.mxu0 0.0
    %1897 = vmatprep.subr.mxu0 0.0
    %1898 = vmatpush1.msra.mxu0 0.0
    %1899 = vmatprep.subr.mxu0 0.0
    %1900 = vmatpush1.msra.mxu0 0.0
    %1901 = vmatprep.subr.mxu0 0.0
    %1902 = vmatpush1.msra.mxu0 0.0
    %1903 = vmatprep.mubr.f32.mxu0 0.0
    %1904 = vmatmul.mubr.f32.gmra.mrb[0].mxu0 %v1837
    %v1905 = vpop.f32.mrb[0].mxu0
    %v1906 = vadd.f32 0.0, %v1905
    %v1907 = vpop.f32.mrb[0].mxu0
    %1908 = vdwg.mxu0
    %1909 = vrot.lane.b32.xlu0 %v1662, 64
    %v1910 = vpop.permute.xlu0 %1909
    %1911 = vrot.lane.b32.xlu0 %v1664, 64
    %v1912 = vpop.permute.xlu0 %1911
    %v1913 = vsel %vm395, %v1910, 0
    %v1915 = vsel %vm395, %v1912, 0
    %1917 = vmatprep.subr.mxu0 0.0
    %1918 = vmatpush1.xpose.msra.mxu0 %v1915
    %1919 = vmatprep.subr.mxu0 0.0
    %1920 = vmatpush1.xpose.msra.mxu0 0.0
    %1921 = vmatprep.subr.mxu0 0.0
    %1922 = vmatpush1.xpose.msra.mxu0 0.0
    %1923 = vmatprep.subr.mxu0 0.0
    %1924 = vmatpush1.xpose.msra.mxu0 0.0
    %1925 = vmatprep.subr.mxu0 0.0
    %1926 = vmatpush1.xpose.msra.mxu0 0.0
    %1927 = vmatprep.subr.mxu0 0.0
    %1928 = vmatpush1.xpose.msra.mxu0 0.0
    %1929 = vmatprep.subr.mxu0 0.0
    %1930 = vmatpush1.xpose.msra.mxu0 0.0
    %1931 = vmatprep.subr.mxu0 0.0
    %1932 = vmatpush1.xpose.msra.mxu0 0.0
    %1933 = vmatprep.subr.mxu0 0.0
    %1934 = vmatpush1.xpose.msra.mxu0 0.0
    %1935 = vmatprep.subr.mxu0 0.0
    %1936 = vmatpush1.xpose.msra.mxu0 0.0
    %1937 = vmatprep.subr.mxu0 0.0
    %1938 = vmatpush1.xpose.msra.mxu0 0.0
    %1939 = vmatprep.subr.mxu0 0.0
    %1940 = vmatpush1.xpose.msra.mxu0 0.0
    %1941 = vmatprep.subr.mxu0 0.0
    %1942 = vmatpush1.xpose.msra.mxu0 0.0
    %1943 = vmatprep.subr.mxu0 0.0
    %1944 = vmatpush1.xpose.msra.mxu0 0.0
    %1945 = vmatprep.subr.mxu0 0.0
    %1946 = vmatpush1.xpose.msra.mxu0 0.0
    %1947 = vmatprep.subr.mxu0 0.0
    %1948 = vmatpush1.xpose.msra.mxu0 0.0
    %1949 = vmatprep.subr.mxu0 0.0
    %1950 = vmatpush1.xpose.msra.mxu0 0.0
    %1951 = vmatprep.subr.mxu0 0.0
    %1952 = vmatpush1.xpose.msra.mxu0 0.0
    %1953 = vmatprep.subr.mxu0 0.0
    %1954 = vmatpush1.xpose.msra.mxu0 0.0
    %1955 = vmatprep.subr.mxu0 0.0
    %1956 = vmatpush1.xpose.msra.mxu0 0.0
    %1957 = vmatprep.subr.mxu0 0.0
    %1958 = vmatpush1.xpose.msra.mxu0 0.0
    %1959 = vmatprep.subr.mxu0 0.0
    %1960 = vmatpush1.xpose.msra.mxu0 0.0
    %1961 = vmatprep.subr.mxu0 0.0
    %1962 = vmatpush1.xpose.msra.mxu0 0.0
    %1963 = vmatprep.subr.mxu0 0.0
    %1964 = vmatpush1.xpose.msra.mxu0 0.0
    %1965 = vmatprep.subr.mxu0 0.0
    %1966 = vmatpush1.xpose.msra.mxu0 0.0
    %1967 = vmatprep.subr.mxu0 0.0
    %1968 = vmatpush1.xpose.msra.mxu0 0.0
    %1969 = vmatprep.subr.mxu0 0.0
    %1970 = vmatpush1.xpose.msra.mxu0 0.0
    %1971 = vmatprep.subr.mxu0 0.0
    %1972 = vmatpush1.xpose.msra.mxu0 0.0
    %1973 = vmatprep.subr.mxu0 0.0
    %1974 = vmatpush1.xpose.msra.mxu0 0.0
    %1975 = vmatprep.subr.mxu0 0.0
    %1976 = vmatpush1.xpose.msra.mxu0 0.0
    %1977 = vmatprep.subr.mxu0 0.0
    %1978 = vmatpush1.xpose.msra.mxu0 0.0
    %1979 = vmatprep.subr.mxu0 0.0
    %1980 = vmatpush1.xpose.msra.mxu0 0.0
    %1981 = vmatprep.mubr.f32.mxu0 0.0
    %1982 = vmatmul.mubr.f32.gmra.mrb[0].mxu0 %v1913
    %v1983 = vpop.f32.mrb[0].mxu0
    %v1984 = vadd.f32 0.0, %v1983
    %v1985 = vpop.f32.mrb[0].mxu0
    %1986 = vdwg.mxu0
    %v1987 = vmul.f32 %v1984, 0.125
    %v1988 = vadd.f32 %v1987, %v476
    %v1989 = vsel %vm478, %v1988, -inf
    %1990 = vmax.xlane.f32.xlu0 %v1989
    %v1991 = vpop.xlane.xlu0 %1990
    %v1992 = vsub.f32 %v1988, %v1991
    %v1993 = vmul.f32 %v1992, 1.442695
    %v1994 = vpow.pop %v1993
    %v1995 = vsel %vm478, %v1994, 0.0
    %1996 = vadd.xlane.f32.xlu0 %v1995
    %v1997 = vpop.xlane.xlu0 %1996
    %v1998 = vrcp.pop %v1997
    %v1999 = vmul.f32 %v1994, %v1998
    %2001 = vrot.lane.b32.xlu0 %v1739, 64
    %v2002 = vpop.permute.xlu0 %2001
    %v2005 = vsel %vm478, %v1999, 0
    %2007 = vmatprep.subr.mxu0 0.0
    %2008 = vmatpush1.msra.mxu0 %v2002
    %2009 = vmatprep.subr.mxu0 0.0
    %2010 = vmatpush1.msra.mxu0 0.0
    %2011 = vmatprep.subr.mxu0 0.0
    %2012 = vmatpush1.msra.mxu0 0.0
    %2013 = vmatprep.subr.mxu0 0.0
    %2014 = vmatpush1.msra.mxu0 0.0
    %2015 = vmatprep.subr.mxu0 0.0
    %2016 = vmatpush1.msra.mxu0 0.0
    %2017 = vmatprep.subr.mxu0 0.0
    %2018 = vmatpush1.msra.mxu0 0.0
    %2019 = vmatprep.subr.mxu0 0.0
    %2020 = vmatpush1.msra.mxu0 0.0
    %2021 = vmatprep.subr.mxu0 0.0
    %2022 = vmatpush1.msra.mxu0 0.0
    %2023 = vmatprep.subr.mxu0 0.0
    %2024 = vmatpush1.msra.mxu0 0.0
    %2025 = vmatprep.subr.mxu0 0.0
    %2026 = vmatpush1.msra.mxu0 0.0
    %2027 = vmatprep.subr.mxu0 0.0
    %2028 = vmatpush1.msra.mxu0 0.0
    %2029 = vmatprep.subr.mxu0 0.0
    %2030 = vmatpush1.msra.mxu0 0.0
    %2031 = vmatprep.subr.mxu0 0.0
    %2032 = vmatpush1.msra.mxu0 0.0
    %2033 = vmatprep.subr.mxu0 0.0
    %2034 = vmatpush1.msra.mxu0 0.0
    %2035 = vmatprep.subr.mxu0 0.0
    %2036 = vmatpush1.msra.mxu0 0.0
    %2037 = vmatprep.subr.mxu0 0.0
    %2038 = vmatpush1.msra.mxu0 0.0
    %2039 = vmatprep.subr.mxu0 0.0
    %2040 = vmatpush1.msra.mxu0 0.0
    %2041 = vmatprep.subr.mxu0 0.0
    %2042 = vmatpush1.msra.mxu0 0.0
    %2043 = vmatprep.subr.mxu0 0.0
    %2044 = vmatpush1.msra.mxu0 0.0
    %2045 = vmatprep.subr.mxu0 0.0
    %2046 = vmatpush1.msra.mxu0 0.0
    %2047 = vmatprep.subr.mxu0 0.0
    %2048 = vmatpush1.msra.mxu0 0.0
    %2049 = vmatprep.subr.mxu0 0.0
    %2050 = vmatpush1.msra.mxu0 0.0
    %2051 = vmatprep.subr.mxu0 0.0
    %2052 = vmatpush1.msra.mxu0 0.0
    %2053 = vmatprep.subr.mxu0 0.0
    %2054 = vmatpush1.msra.mxu0 0.0
    %2055 = vmatprep.subr.mxu0 0.0
    %2056 = vmatpush1.msra.mxu0 0.0
    %2057 = vmatprep.subr.mxu0 0.0
    %2058 = vmatpush1.msra.mxu0 0.0
    %2059 = vmatprep.subr.mxu0 0.0
    %2060 = vmatpush1.msra.mxu0 0.0
    %2061 = vmatprep.subr.mxu0 0.0
    %2062 = vmatpush1.msra.mxu0 0.0
    %2063 = vmatprep.subr.mxu0 0.0
    %2064 = vmatpush1.msra.mxu0 0.0
    %2065 = vmatprep.subr.mxu0 0.0
    %2066 = vmatpush1.msra.mxu0 0.0
    %2067 = vmatprep.subr.mxu0 0.0
    %2068 = vmatpush1.msra.mxu0 0.0
    %2069 = vmatprep.subr.mxu0 0.0
    %2070 = vmatpush1.msra.mxu0 0.0
    %2071 = vmatprep.mubr.f32.mxu0 0.0
    %2072 = vmatmul.mubr.f32.gmra.mrb[0].mxu0 %v2005
    %v2073 = vpop.f32.mrb[0].mxu0
    %v2074 = vadd.f32 0.0, %v2073
    %v2075 = vpop.f32.mrb[0].mxu0
    %2076 = vdwg.mxu0
    %2078 = vrot.lane.b32.xlu0 %v2074, 64
    %v2079 = vpop.permute.xlu0 %2078
    %v2081 = vsel %vm395, %v1906, %v2079
    %v2083 = vsel %vm395, %v1668, 0
    %v2086 = vsel %vm395, %v1670, 0
    %2088 = vmatprep.subr.mxu0 0.0
    %2089 = vmatpush1.xpose.msra.mxu0 %v2086
    %2090 = vmatprep.subr.mxu0 0.0
    %2091 = vmatpush1.xpose.msra.mxu0 0.0
    %2092 = vmatprep.subr.mxu0 0.0
    %2093 = vmatpush1.xpose.msra.mxu0 0.0
    %2094 = vmatprep.subr.mxu0 0.0
    %2095 = vmatpush1.xpose.msra.mxu0 0.0
    %2096 = vmatprep.subr.mxu0 0.0
    %2097 = vmatpush1.xpose.msra.mxu0 0.0
    %2098 = vmatprep.subr.mxu0 0.0
    %2099 = vmatpush1.xpose.msra.mxu0 0.0
    %2100 = vmatprep.subr.mxu0 0.0
    %2101 = vmatpush1.xpose.msra.mxu0 0.0
    %2102 = vmatprep.subr.mxu0 0.0
    %2103 = vmatpush1.xpose.msra.mxu0 0.0
    %2104 = vmatprep.subr.mxu0 0.0
    %2105 = vmatpush1.xpose.msra.mxu0 0.0
    %2106 = vmatprep.subr.mxu0 0.0
    %2107 = vmatpush1.xpose.msra.mxu0 0.0
    %2108 = vmatprep.subr.mxu0 0.0
    %2109 = vmatpush1.xpose.msra.mxu0 0.0
    %2110 = vmatprep.subr.mxu0 0.0
    %2111 = vmatpush1.xpose.msra.mxu0 0.0
    %2112 = vmatprep.subr.mxu0 0.0
    %2113 = vmatpush1.xpose.msra.mxu0 0.0
    %2114 = vmatprep.subr.mxu0 0.0
    %2115 = vmatpush1.xpose.msra.mxu0 0.0
    %2116 = vmatprep.subr.mxu0 0.0
    %2117 = vmatpush1.xpose.msra.mxu0 0.0
    %2118 = vmatprep.subr.mxu0 0.0
    %2119 = vmatpush1.xpose.msra.mxu0 0.0
    %2120 = vmatprep.subr.mxu0 0.0
    %2121 = vmatpush1.xpose.msra.mxu0 0.0
    %2122 = vmatprep.subr.mxu0 0.0
    %2123 = vmatpush1.xpose.msra.mxu0 0.0
    %2124 = vmatprep.subr.mxu0 0.0
    %2125 = vmatpush1.xpose.msra.mxu0 0.0
    %2126 = vmatprep.subr.mxu0 0.0
    %2127 = vmatpush1.xpose.msra.mxu0 0.0
    %2128 = vmatprep.subr.mxu0 0.0
    %2129 = vmatpush1.xpose.msra.mxu0 0.0
    %2130 = vmatprep.subr.mxu0 0.0
    %2131 = vmatpush1.xpose.msra.mxu0 0.0
    %2132 = vmatprep.subr.mxu0 0.0
    %2133 = vmatpush1.xpose.msra.mxu0 0.0
    %2134 = vmatprep.subr.mxu0 0.0
    %2135 = vmatpush1.xpose.msra.mxu0 0.0
    %2136 = vmatprep.subr.mxu0 0.0
    %2137 = vmatpush1.xpose.msra.mxu0 0.0
    %2138 = vmatprep.subr.mxu0 0.0
    %2139 = vmatpush1.xpose.msra.mxu0 0.0
    %2140 = vmatprep.subr.mxu0 0.0
    %2141 = vmatpush1.xpose.msra.mxu0 0.0
    %2142 = vmatprep.subr.mxu0 0.0
    %2143 = vmatpush1.xpose.msra.mxu0 0.0
    %2144 = vmatprep.subr.mxu0 0.0
    %2145 = vmatpush1.xpose.msra.mxu0 0.0
    %2146 = vmatprep.subr.mxu0 0.0
    %2147 = vmatpush1.xpose.msra.mxu0 0.0
    %2148 = vmatprep.subr.mxu0 0.0
    %2149 = vmatpush1.xpose.msra.mxu0 0.0
    %2150 = vmatprep.subr.mxu0 0.0
    %2151 = vmatpush1.xpose.msra.mxu0 0.0
    %2152 = vmatprep.mubr.f32.mxu0 0.0
    %2153 = vmatmul.mubr.f32.gmra.mrb[0].mxu0 %v2083
    %v2154 = vpop.f32.mrb[0].mxu0
    %v2155 = vadd.f32 0.0, %v2154
    %v2156 = vpop.f32.mrb[0].mxu0
    %2157 = vdwg.mxu0
    %v2158 = vmul.f32 %v2155, 0.125
    %v2159 = vadd.f32 %v2158, %v816
    %v2160 = vsel %vm478, %v2159, -inf
    %2161 = vmax.xlane.f32.xlu0 %v2160
    %v2162 = vpop.xlane.xlu0 %2161
    %v2163 = vsub.f32 %v2159, %v2162
    %v2164 = vmul.f32 %v2163, 1.442695
    %v2165 = vpow.pop %v2164
    %v2166 = vsel %vm478, %v2165, 0.0
    %2167 = vadd.xlane.f32.xlu0 %v2166
    %v2168 = vpop.xlane.xlu0 %2167
    %v2169 = vrcp.pop %v2168
    %v2170 = vmul.f32 %v2165, %v2169
    %v2172 = vsel %vm478, %v2170, 0
    %2174 = vmatprep.subr.mxu0 0.0
    %2175 = vmatpush1.msra.mxu0 %v1744
    %2176 = vmatprep.subr.mxu0 0.0
    %2177 = vmatpush1.msra.mxu0 0.0
    %2178 = vmatprep.subr.mxu0 0.0
    %2179 = vmatpush1.msra.mxu0 0.0
    %2180 = vmatprep.subr.mxu0 0.0
    %2181 = vmatpush1.msra.mxu0 0.0
    %2182 = vmatprep.subr.mxu0 0.0
    %2183 = vmatpush1.msra.mxu0 0.0
    %2184 = vmatprep.subr.mxu0 0.0
    %2185 = vmatpush1.msra.mxu0 0.0
    %2186 = vmatprep.subr.mxu0 0.0
    %2187 = vmatpush1.msra.mxu0 0.0
    %2188 = vmatprep.subr.mxu0 0.0
    %2189 = vmatpush1.msra.mxu0 0.0
    %2190 = vmatprep.subr.mxu0 0.0
    %2191 = vmatpush1.msra.mxu0 0.0
    %2192 = vmatprep.subr.mxu0 0.0
    %2193 = vmatpush1.msra.mxu0 0.0
    %2194 = vmatprep.subr.mxu0 0.0
    %2195 = vmatpush1.msra.mxu0 0.0
    %2196 = vmatprep.subr.mxu0 0.0
    %2197 = vmatpush1.msra.mxu0 0.0
    %2198 = vmatprep.subr.mxu0 0.0
    %2199 = vmatpush1.msra.mxu0 0.0
    %2200 = vmatprep.subr.mxu0 0.0
    %2201 = vmatpush1.msra.mxu0 0.0
    %2202 = vmatprep.subr.mxu0 0.0
    %2203 = vmatpush1.msra.mxu0 0.0
    %2204 = vmatprep.subr.mxu0 0.0
    %2205 = vmatpush1.msra.mxu0 0.0
    %2206 = vmatprep.subr.mxu0 0.0
    %2207 = vmatpush1.msra.mxu0 0.0
    %2208 = vmatprep.subr.mxu0 0.0
    %2209 = vmatpush1.msra.mxu0 0.0
    %2210 = vmatprep.subr.mxu0 0.0
    %2211 = vmatpush1.msra.mxu0 0.0
    %2212 = vmatprep.subr.mxu0 0.0
    %2213 = vmatpush1.msra.mxu0 0.0
    %2214 = vmatprep.subr.mxu0 0.0
    %2215 = vmatpush1.msra.mxu0 0.0
    %2216 = vmatprep.subr.mxu0 0.0
    %2217 = vmatpush1.msra.mxu0 0.0
    %2218 = vmatprep.subr.mxu0 0.0
    %2219 = vmatpush1.msra.mxu0 0.0
    %2220 = vmatprep.subr.mxu0 0.0
    %2221 = vmatpush1.msra.mxu0 0.0
    %2222 = vmatprep.subr.mxu0 0.0
    %2223 = vmatpush1.msra.mxu0 0.0
    %2224 = vmatprep.subr.mxu0 0.0
    %2225 = vmatpush1.msra.mxu0 0.0
    %2226 = vmatprep.subr.mxu0 0.0
    %2227 = vmatpush1.msra.mxu0 0.0
    %2228 = vmatprep.subr.mxu0 0.0
    %2229 = vmatpush1.msra.mxu0 0.0
    %2230 = vmatprep.subr.mxu0 0.0
    %2231 = vmatpush1.msra.mxu0 0.0
    %2232 = vmatprep.subr.mxu0 0.0
    %2233 = vmatpush1.msra.mxu0 0.0
    %2234 = vmatprep.subr.mxu0 0.0
    %2235 = vmatpush1.msra.mxu0 0.0
    %2236 = vmatprep.subr.mxu0 0.0
    %2237 = vmatpush1.msra.mxu0 0.0
    %2238 = vmatprep.mubr.f32.mxu0 0.0
    %2239 = vmatmul.mubr.f32.gmra.mrb[0].mxu0 %v2172
    %v2240 = vpop.f32.mrb[0].mxu0
    %v2241 = vadd.f32 0.0, %v2240
    %v2242 = vpop.f32.mrb[0].mxu0
    %2243 = vdwg.mxu0
    %2244 = vrot.lane.b32.xlu0 %v1668, 64
    %v2245 = vpop.permute.xlu0 %2244
    %2246 = vrot.lane.b32.xlu0 %v1670, 64
    %v2247 = vpop.permute.xlu0 %2246
    %v2248 = vsel %vm395, %v2245, 0
    %v2250 = vsel %vm395, %v2247, 0
    %2252 = vmatprep.subr.mxu0 0.0
    %2253 = vmatpush1.xpose.msra.mxu0 %v2250
    %2254 = vmatprep.subr.mxu0 0.0
    %2255 = vmatpush1.xpose.msra.mxu0 0.0
    %2256 = vmatprep.subr.mxu0 0.0
    %2257 = vmatpush1.xpose.msra.mxu0 0.0
    %2258 = vmatprep.subr.mxu0 0.0
    %2259 = vmatpush1.xpose.msra.mxu0 0.0
    %2260 = vmatprep.subr.mxu0 0.0
    %2261 = vmatpush1.xpose.msra.mxu0 0.0
    %2262 = vmatprep.subr.mxu0 0.0
    %2263 = vmatpush1.xpose.msra.mxu0 0.0
    %2264 = vmatprep.subr.mxu0 0.0
    %2265 = vmatpush1.xpose.msra.mxu0 0.0
    %2266 = vmatprep.subr.mxu0 0.0
    %2267 = vmatpush1.xpose.msra.mxu0 0.0
    %2268 = vmatprep.subr.mxu0 0.0
    %2269 = vmatpush1.xpose.msra.mxu0 0.0
    %2270 = vmatprep.subr.mxu0 0.0
    %2271 = vmatpush1.xpose.msra.mxu0 0.0
    %2272 = vmatprep.subr.mxu0 0.0
    %2273 = vmatpush1.xpose.msra.mxu0 0.0
    %2274 = vmatprep.subr.mxu0 0.0
    %2275 = vmatpush1.xpose.msra.mxu0 0.0
    %2276 = vmatprep.subr.mxu0 0.0
    %2277 = vmatpush1.xpose.msra.mxu0 0.0
    %2278 = vmatprep.subr.mxu0 0.0
    %2279 = vmatpush1.xpose.msra.mxu0 0.0
    %2280 = vmatprep.subr.mxu0 0.0
    %2281 = vmatpush1.xpose.msra.mxu0 0.0
    %2282 = vmatprep.subr.mxu0 0.0
    %2283 = vmatpush1.xpose.msra.mxu0 0.0
    %2284 = vmatprep.subr.mxu0 0.0
    %2285 = vmatpush1.xpose.msra.mxu0 0.0
    %2286 = vmatprep.subr.mxu0 0.0
    %2287 = vmatpush1.xpose.msra.mxu0 0.0
    %2288 = vmatprep.subr.mxu0 0.0
    %2289 = vmatpush1.xpose.msra.mxu0 0.0
    %2290 = vmatprep.subr.mxu0 0.0
    %2291 = vmatpush1.xpose.msra.mxu0 0.0
    %2292 = vmatprep.subr.mxu0 0.0
    %2293 = vmatpush1.xpose.msra.mxu0 0.0
    %2294 = vmatprep.subr.mxu0 0.0
    %2295 = vmatpush1.xpose.msra.mxu0 0.0
    %2296 = vmatprep.subr.mxu0 0.0
    %2297 = vmatpush1.xpose.msra.mxu0 0.0
    %2298 = vmatprep.subr.mxu0 0.0
    %2299 = vmatpush1.xpose.msra.mxu0 0.0
    %2300 = vmatprep.subr.mxu0 0.0
    %2301 = vmatpush1.xpose.msra.mxu0 0.0
    %2302 = vmatprep.subr.mxu0 0.0
    %2303 = vmatpush1.xpose.msra.mxu0 0.0
    %2304 = vmatprep.subr.mxu0 0.0
    %2305 = vmatpush1.xpose.msra.mxu0 0.0
    %2306 = vmatprep.subr.mxu0 0.0
    %2307 = vmatpush1.xpose.msra.mxu0 0.0
    %2308 = vmatprep.subr.mxu0 0.0
    %2309 = vmatpush1.xpose.msra.mxu0 0.0
    %2310 = vmatprep.subr.mxu0 0.0
    %2311 = vmatpush1.xpose.msra.mxu0 0.0
    %2312 = vmatprep.subr.mxu0 0.0
    %2313 = vmatpush1.xpose.msra.mxu0 0.0
    %2314 = vmatprep.subr.mxu0 0.0
    %2315 = vmatpush1.xpose.msra.mxu0 0.0
    %2316 = vmatprep.mubr.f32.mxu0 0.0
    %2317 = vmatmul.mubr.f32.gmra.mrb[0].mxu0 %v2248
    %v2318 = vpop.f32.mrb[0].mxu0
    %v2319 = vadd.f32 0.0, %v2318
    %v2320 = vpop.f32.mrb[0].mxu0
    %2321 = vdwg.mxu0
    %v2322 = vmul.f32 %v2319, 0.125
    %v2323 = vadd.f32 %v2322, %v816
    %v2324 = vsel %vm478, %v2323, -inf
    %2325 = vmax.xlane.f32.xlu0 %v2324
    %v2326 = vpop.xlane.xlu0 %2325
    %v2327 = vsub.f32 %v2323, %v2326
    %v2328 = vmul.f32 %v2327, 1.442695
    %v2329 = vpow.pop %v2328
    %v2330 = vsel %vm478, %v2329, 0.0
    %2331 = vadd.xlane.f32.xlu0 %v2330
    %v2332 = vpop.xlane.xlu0 %2331
    %v2333 = vrcp.pop %v2332
    %v2334 = vmul.f32 %v2329, %v2333
    %2336 = vrot.lane.b32.xlu0 %v1744, 64
    %v2337 = vpop.permute.xlu0 %2336
    %v2340 = vsel %vm478, %v2334, 0
    %2342 = vmatprep.subr.mxu0 0.0
    %2343 = vmatpush1.msra.mxu0 %v2337
    %2344 = vmatprep.subr.mxu0 0.0
    %2345 = vmatpush1.msra.mxu0 0.0
    %2346 = vmatprep.subr.mxu0 0.0
    %2347 = vmatpush1.msra.mxu0 0.0
    %2348 = vmatprep.subr.mxu0 0.0
    %2349 = vmatpush1.msra.mxu0 0.0
    %2350 = vmatprep.subr.mxu0 0.0
    %2351 = vmatpush1.msra.mxu0 0.0
    %2352 = vmatprep.subr.mxu0 0.0
    %2353 = vmatpush1.msra.mxu0 0.0
    %2354 = vmatprep.subr.mxu0 0.0
    %2355 = vmatpush1.msra.mxu0 0.0
    %2356 = vmatprep.subr.mxu0 0.0
    %2357 = vmatpush1.msra.mxu0 0.0
    %2358 = vmatprep.subr.mxu0 0.0
    %2359 = vmatpush1.msra.mxu0 0.0
    %2360 = vmatprep.subr.mxu0 0.0
    %2361 = vmatpush1.msra.mxu0 0.0
    %2362 = vmatprep.subr.mxu0 0.0
    %2363 = vmatpush1.msra.mxu0 0.0
    %2364 = vmatprep.subr.mxu0 0.0
    %2365 = vmatpush1.msra.mxu0 0.0
    %2366 = vmatprep.subr.mxu0 0.0
    %2367 = vmatpush1.msra.mxu0 0.0
    %2368 = vmatprep.subr.mxu0 0.0
    %2369 = vmatpush1.msra.mxu0 0.0
    %2370 = vmatprep.subr.mxu0 0.0
    %2371 = vmatpush1.msra.mxu0 0.0
    %2372 = vmatprep.subr.mxu0 0.0
    %2373 = vmatpush1.msra.mxu0 0.0
    %2374 = vmatprep.subr.mxu0 0.0
    %2375 = vmatpush1.msra.mxu0 0.0
    %2376 = vmatprep.subr.mxu0 0.0
    %2377 = vmatpush1.msra.mxu0 0.0
    %2378 = vmatprep.subr.mxu0 0.0
    %2379 = vmatpush1.msra.mxu0 0.0
    %2380 = vmatprep.subr.mxu0 0.0
    %2381 = vmatpush1.msra.mxu0 0.0
    %2382 = vmatprep.subr.mxu0 0.0
    %2383 = vmatpush1.msra.mxu0 0.0
    %2384 = vmatprep.subr.mxu0 0.0
    %2385 = vmatpush1.msra.mxu0 0.0
    %2386 = vmatprep.subr.mxu0 0.0
    %2387 = vmatpush1.msra.mxu0 0.0
    %2388 = vmatprep.subr.mxu0 0.0
    %2389 = vmatpush1.msra.mxu0 0.0
    %2390 = vmatprep.subr.mxu0 0.0
    %2391 = vmatpush1.msra.mxu0 0.0
    %2392 = vmatprep.subr.mxu0 0.0
    %2393 = vmatpush1.msra.mxu0 0.0
    %2394 = vmatprep.subr.mxu0 0.0
    %2395 = vmatpush1.msra.mxu0 0.0
    %2396 = vmatprep.subr.mxu0 0.0
    %2397 = vmatpush1.msra.mxu0 0.0
    %2398 = vmatprep.subr.mxu0 0.0
    %2399 = vmatpush1.msra.mxu0 0.0
    %2400 = vmatprep.subr.mxu0 0.0
    %2401 = vmatpush1.msra.mxu0 0.0
    %2402 = vmatprep.subr.mxu0 0.0
    %2403 = vmatpush1.msra.mxu0 0.0
    %2404 = vmatprep.subr.mxu0 0.0
    %2405 = vmatpush1.msra.mxu0 0.0
    %2406 = vmatprep.mubr.f32.mxu0 0.0
    %2407 = vmatmul.mubr.f32.gmra.mrb[0].mxu0 %v2340
    %v2408 = vpop.f32.mrb[0].mxu0
    %v2409 = vadd.f32 0.0, %v2408
    %v2410 = vpop.f32.mrb[0].mxu0
    %2411 = vdwg.mxu0
    %2413 = vrot.lane.b32.xlu0 %v2409, 64
    %v2414 = vpop.permute.xlu0 %2413
    %v2416 = vsel %vm395, %v2241, %v2414
    %s2417 = scalar_lea.vmem %s6, 128
    %v2418 = vld [vmem:[%s2417] sm:$0xff]
    %v2419 = vld [vmem:[%s2417 + $0x8] sm:$0xff]
    %v2420 = vld [vmem:[%s2417 + $0x10] sm:$0xff]
    %v2421 = vld [vmem:[%s2417 + $0x18] sm:$0xff]
    %v2422 = vld [vmem:[%s2417 + $0x20] sm:$0xff]
    %v2423 = vld [vmem:[%s2417 + $0x28] sm:$0xff]
    %v2424 = vld [vmem:[%s2417 + $0x30] sm:$0xff]
    %v2425 = vld [vmem:[%s2417 + $0x38] sm:$0xff]
    %v2426 = vld [vmem:[%s2417 + $0x40] sm:$0xff]
    %v2427 = vld [vmem:[%s2417 + $0x48] sm:$0xff]
    %v2428 = vld [vmem:[%s2417 + $0x50] sm:$0xff]
    %v2429 = vld [vmem:[%s2417 + $0x58] sm:$0xff]
    %v2430 = vld [vmem:[%s2417 + $0x60] sm:$0xff]
    %v2431 = vld [vmem:[%s2417 + $0x68] sm:$0xff]
    %v2432 = vld [vmem:[%s2417 + $0x70] sm:$0xff]
    %v2433 = vld [vmem:[%s2417 + $0x78] sm:$0xff]
    %s2434 = scalar_lea.vmem %s7, 1
    %v2435 = vld [vmem:[%s2434] sm:$0x1]
    %v2437 = vlaneseq
    %v2438 = vshrl.u32 %v2437, 7
    %v2439 = vsub.s32 0, %v2438
    %v2440 = vrot.slane %v2435, %v2439
    %2442 = vmatprep.subr.mxu0 0.0
    %2443 = vmatpush1.msra.mxu0 %v2418
    %2444 = vmatprep.subr.mxu0 0.0
    %2445 = vmatpush1.msra.mxu0 %v2419
    %2446 = vmatprep.subr.mxu0 0.0
    %2447 = vmatpush1.msra.mxu0 %v2420
    %2448 = vmatprep.subr.mxu0 0.0
    %2449 = vmatpush1.msra.mxu0 %v2421
    %2450 = vmatprep.subr.mxu0 0.0
    %2451 = vmatpush1.msra.mxu0 %v2422
    %2452 = vmatprep.subr.mxu0 0.0
    %2453 = vmatpush1.msra.mxu0 %v2423
    %2454 = vmatprep.subr.mxu0 0.0
    %2455 = vmatpush1.msra.mxu0 %v2424
    %2456 = vmatprep.subr.mxu0 0.0
    %2457 = vmatpush1.msra.mxu0 %v2425
    %2458 = vmatprep.subr.mxu0 0.0
    %2459 = vmatpush1.msra.mxu0 %v2426
    %2460 = vmatprep.subr.mxu0 0.0
    %2461 = vmatpush1.msra.mxu0 %v2427
    %2462 = vmatprep.subr.mxu0 0.0
    %2463 = vmatpush1.msra.mxu0 %v2428
    %2464 = vmatprep.subr.mxu0 0.0
    %2465 = vmatpush1.msra.mxu0 %v2429
    %2466 = vmatprep.subr.mxu0 0.0
    %2467 = vmatpush1.msra.mxu0 %v2430
    %2468 = vmatprep.subr.mxu0 0.0
    %2469 = vmatpush1.msra.mxu0 %v2431
    %2470 = vmatprep.subr.mxu0 0.0
    %2471 = vmatpush1.msra.mxu0 %v2432
    %2472 = vmatprep.subr.mxu0 0.0
    %2473 = vmatpush1.msra.mxu0 %v2433
    %2474 = vmatprep.subr.mxu0 0.0
    %2475 = vmatpush1.msra.mxu0 0.0
    %2476 = vmatprep.subr.mxu0 0.0
    %2477 = vmatpush1.msra.mxu0 0.0
    %2478 = vmatprep.subr.mxu0 0.0
    %2479 = vmatpush1.msra.mxu0 0.0
    %2480 = vmatprep.subr.mxu0 0.0
    %2481 = vmatpush1.msra.mxu0 0.0
    %2482 = vmatprep.subr.mxu0 0.0
    %2483 = vmatpush1.msra.mxu0 0.0
    %2484 = vmatprep.subr.mxu0 0.0
    %2485 = vmatpush1.msra.mxu0 0.0
    %2486 = vmatprep.subr.mxu0 0.0
    %2487 = vmatpush1.msra.mxu0 0.0
    %2488 = vmatprep.subr.mxu0 0.0
    %2489 = vmatpush1.msra.mxu0 0.0
    %2490 = vmatprep.subr.mxu0 0.0
    %2491 = vmatpush1.msra.mxu0 0.0
    %2492 = vmatprep.subr.mxu0 0.0
    %2493 = vmatpush1.msra.mxu0 0.0
    %2494 = vmatprep.subr.mxu0 0.0
    %2495 = vmatpush1.msra.mxu0 0.0
    %2496 = vmatprep.subr.mxu0 0.0
    %2497 = vmatpush1.msra.mxu0 0.0
    %2498 = vmatprep.subr.mxu0 0.0
    %2499 = vmatpush1.msra.mxu0 0.0
    %2500 = vmatprep.subr.mxu0 0.0
    %2501 = vmatpush1.msra.mxu0 0.0
    %2502 = vmatprep.subr.mxu0 0.0
    %2503 = vmatpush1.msra.mxu0 0.0
    %2504 = vmatprep.subr.mxu0 0.0
    %2505 = vmatpush1.msra.mxu0 0.0
    %2506 = vmatprep.mubr.f32.mxu0 0.0
    %2507 = vmatmul.mubr.f32.gmra.mrb[0].mxu0 %v2081
    %v2508 = vpop.f32.mrb[0].mxu0
    %v2509 = vadd.f32 %v2440, %v2508
    %v2510 = vpop.f32.mrb[0].mxu0
    %2511 = vmatprep.mubr.f32.mxu0 0.0
    %2512 = vmatmul.mubr.f32.gmra.mrb[0].mxu0 %v2416
    %v2513 = vpop.f32.mrb[0].mxu0
    %v2514 = vadd.f32 %v2440, %v2513
    %v2515 = vpop.f32.mrb[0].mxu0
    %2516 = vdwg.mxu0
    %v2517 = vadd.f32 %v2509, %v1526
    %v2518 = vadd.f32 %v2514, %v1527
    %s2519 = scalar_lea.vmem %s8, 1
    %v2520 = vld [vmem:[%s2519] sm:$0x1]
    %s2521 = scalar_lea.vmem %s9, 1
    %v2522 = vld [vmem:[%s2521] sm:$0x1]
    %2523 = vadd.xlane.f32.xlu0 %v2517
    %v2524 = vpop.xlane.xlu0 %2523
    %2525 = vadd.xlane.f32.xlu0 %v2518
    %v2526 = vpop.xlane.xlu0 %2525
    %v2527 = vmul.f32 %v2524, %v142
    %v2528 = vmul.f32 %v2526, %v142
    %v2529 = vsub.f32 %v2517, %v2527
    %v2530 = vsub.f32 %v2518, %v2528
    %v2531 = vmul.f32 %v2529, %v2529
    %v2532 = vmul.f32 %v2530, %v2530
    %2533 = vadd.xlane.f32.xlu0 %v2531
    %v2534 = vpop.xlane.xlu0 %2533
    %2535 = vadd.xlane.f32.xlu0 %v2532
    %v2536 = vpop.xlane.xlu0 %2535
    %v2537 = vmul.f32 %v2534, %v142
    %v2538 = vmul.f32 %v2536, %v142
    %v2539 = vadd.f32 %v2537, 1e-12
    %v2540 = vadd.f32 %v2538, 1e-12
    %v2541 = vrsqrt.pop %v2539
    %v2542 = vrsqrt.pop %v2540
    %v2543 = vmul.f32 %v2529, %v2541
    %v2544 = vmul.f32 %v2530, %v2542
    %v2546 = vlaneseq
    %v2547 = vshrl.u32 %v2546, 7
    %v2548 = vsub.s32 0, %v2547
    %v2549 = vrot.slane %v2520, %v2548
    %v2551 = vmul.f32 %v2543, %v2549
    %v2552 = vmul.f32 %v2544, %v2549
    %v2554 = vlaneseq
    %v2555 = vshrl.u32 %v2554, 7
    %v2556 = vsub.s32 0, %v2555
    %v2557 = vrot.slane %v2522, %v2556
    %v2559 = vadd.f32 %v2551, %v2557
    %v2560 = vadd.f32 %v2552, %v2557
    %s2561 = scalar_lea.vmem [#allocation5], 256
    %v2562 = vld [vmem:[%s2561] sm:$0xff]
    %v2563 = vld [vmem:[%s2561 + $0x8] sm:$0xff]
    %v2564 = vld [vmem:[%s2561 + $0x10] sm:$0xff]
    %v2565 = vld [vmem:[%s2561 + $0x18] sm:$0xff]
    %v2566 = vld [vmem:[%s2561 + $0x20] sm:$0xff]
    %v2567 = vld [vmem:[%s2561 + $0x28] sm:$0xff]
    %v2568 = vld [vmem:[%s2561 + $0x30] sm:$0xff]
    %v2569 = vld [vmem:[%s2561 + $0x38] sm:$0xff]
    %v2570 = vld [vmem:[%s2561 + $0x40] sm:$0xff]
    %v2571 = vld [vmem:[%s2561 + $0x48] sm:$0xff]
    %v2572 = vld [vmem:[%s2561 + $0x50] sm:$0xff]
    %v2573 = vld [vmem:[%s2561 + $0x58] sm:$0xff]
    %v2574 = vld [vmem:[%s2561 + $0x60] sm:$0xff]
    %v2575 = vld [vmem:[%s2561 + $0x68] sm:$0xff]
    %v2576 = vld [vmem:[%s2561 + $0x70] sm:$0xff]
    %v2577 = vld [vmem:[%s2561 + $0x78] sm:$0xff]
    %v2578 = vld [vmem:[%s2561 + $0x80] sm:$0xff]
    %v2579 = vld [vmem:[%s2561 + $0x88] sm:$0xff]
    %v2580 = vld [vmem:[%s2561 + $0x90] sm:$0xff]
    %v2581 = vld [vmem:[%s2561 + $0x98] sm:$0xff]
    %v2582 = vld [vmem:[%s2561 + $0xa0] sm:$0xff]
    %v2583 = vld [vmem:[%s2561 + $0xa8] sm:$0xff]
    %v2584 = vld [vmem:[%s2561 + $0xb0] sm:$0xff]
    %v2585 = vld [vmem:[%s2561 + $0xb8] sm:$0xff]
    %v2586 = vld [vmem:[%s2561 + $0xc0] sm:$0xff]
    %v2587 = vld [vmem:[%s2561 + $0xc8] sm:$0xff]
    %v2588 = vld [vmem:[%s2561 + $0xd0] sm:$0xff]
    %v2589 = vld [vmem:[%s2561 + $0xd8] sm:$0xff]
    %v2590 = vld [vmem:[%s2561 + $0xe0] sm:$0xff]
    %v2591 = vld [vmem:[%s2561 + $0xe8] sm:$0xff]
    %v2592 = vld [vmem:[%s2561 + $0xf0] sm:$0xff]
    %v2593 = vld [vmem:[%s2561 + $0xf8] sm:$0xff]
    %s2594 = scalar_lea.vmem %s11, 2
    %v2595 = vld [vmem:[%s2594] sm:$0x3]
    %v2597 = vlaneseq
    %v2598 = vshrl.u32 %v2597, 7
    %v2599 = vsub.s32 0, %v2598
    %v2600 = vrot.slane %v2595, %v2599
    %v2601 = vlaneseq
    %v2602 = vshrl.u32 %v2601, 7
    %v2603 = vsub.s32 1, %v2602
    %v2604 = vrot.slane %v2595, %v2603
    %2607 = vmatprep.subr.mxu0 %v2563
    %2608 = vmatpush1.msra.mxu0 %v2562
    %2609 = vmatprep.subr.mxu0 %v2565
    %2610 = vmatpush1.msra.mxu0 %v2564
    %2611 = vmatprep.subr.mxu0 %v2567
    %2612 = vmatpush1.msra.mxu0 %v2566
    %2613 = vmatprep.subr.mxu0 %v2569
    %2614 = vmatpush1.msra.mxu0 %v2568
    %2615 = vmatprep.subr.mxu0 %v2571
    %2616 = vmatpush1.msra.mxu0 %v2570
    %2617 = vmatprep.subr.mxu0 %v2573
    %2618 = vmatpush1.msra.mxu0 %v2572
    %2619 = vmatprep.subr.mxu0 %v2575
    %2620 = vmatpush1.msra.mxu0 %v2574
    %2621 = vmatprep.subr.mxu0 %v2577
    %2622 = vmatpush1.msra.mxu0 %v2576
    %2623 = vmatprep.subr.mxu0 %v2579
    %2624 = vmatpush1.msra.mxu0 %v2578
    %2625 = vmatprep.subr.mxu0 %v2581
    %2626 = vmatpush1.msra.mxu0 %v2580
    %2627 = vmatprep.subr.mxu0 %v2583
    %2628 = vmatpush1.msra.mxu0 %v2582
    %2629 = vmatprep.subr.mxu0 %v2585
    %2630 = vmatpush1.msra.mxu0 %v2584
    %2631 = vmatprep.subr.mxu0 %v2587
    %2632 = vmatpush1.msra.mxu0 %v2586
    %2633 = vmatprep.subr.mxu0 %v2589
    %2634 = vmatpush1.msra.mxu0 %v2588
    %2635 = vmatprep.subr.mxu0 %v2591
    %2636 = vmatpush1.msra.mxu0 %v2590
    %2637 = vmatprep.subr.mxu0 %v2593
    %2638 = vmatpush1.msra.mxu0 %v2592
    %2639 = vmatprep.subr.mxu0 0.0
    %2640 = vmatpush1.msra.mxu0 0.0
    %2641 = vmatprep.subr.mxu0 0.0
    %2642 = vmatpush1.msra.mxu0 0.0
    %2643 = vmatprep.subr.mxu0 0.0
    %2644 = vmatpush1.msra.mxu0 0.0
    %2645 = vmatprep.subr.mxu0 0.0
    %2646 = vmatpush1.msra.mxu0 0.0
    %2647 = vmatprep.subr.mxu0 0.0
    %2648 = vmatpush1.msra.mxu0 0.0
    %2649 = vmatprep.subr.mxu0 0.0
    %2650 = vmatpush1.msra.mxu0 0.0
    %2651 = vmatprep.subr.mxu0 0.0
    %2652 = vmatpush1.msra.mxu0 0.0
    %2653 = vmatprep.subr.mxu0 0.0
    %2654 = vmatpush1.msra.mxu0 0.0
    %2655 = vmatprep.subr.mxu0 0.0
    %2656 = vmatpush1.msra.mxu0 0.0
    %2657 = vmatprep.subr.mxu0 0.0
    %2658 = vmatpush1.msra.mxu0 0.0
    %2659 = vmatprep.subr.mxu0 0.0
    %2660 = vmatpush1.msra.mxu0 0.0
    %2661 = vmatprep.subr.mxu0 0.0
    %2662 = vmatpush1.msra.mxu0 0.0
    %2663 = vmatprep.subr.mxu0 0.0
    %2664 = vmatpush1.msra.mxu0 0.0
    %2665 = vmatprep.subr.mxu0 0.0
    %2666 = vmatpush1.msra.mxu0 0.0
    %2667 = vmatprep.subr.mxu0 0.0
    %2668 = vmatpush1.msra.mxu0 0.0
    %2669 = vmatprep.subr.mxu0 0.0
    %2670 = vmatpush1.msra.mxu0 0.0
    %2671 = vmatprep.mubr.f32.mxu0 0.0
    %2672 = vmatmul.mubr.f32.gmra.mrb[0].mxu0 %v2559
    %v2673 = vpop.f32.mrb[0].mxu0
    %v2674 = vadd.f32 %v2600, %v2673
    %v2675 = vpop.f32.mrb[0].mxu0
    %v2676 = vadd.f32 %v2604, %v2675
    %2677 = vmatprep.mubr.f32.mxu0 0.0
    %2678 = vmatmul.mubr.f32.gmra.mrb[0].mxu0 %v2560
    %v2679 = vpop.f32.mrb[0].mxu0
    %v2680 = vadd.f32 %v2600, %v2679
    %v2681 = vpop.f32.mrb[0].mxu0
    %v2682 = vadd.f32 %v2604, %v2681
    %2683 = vdwg.mxu0
    %v2684 = vmul.f32 %v2674, 0.5
    %v2685 = vmul.f32 %v2676, 0.5
    %v2686 = vmul.f32 %v2680, 0.5
    %v2687 = vmul.f32 %v2682, 0.5
    %v2688 = vmul.f32 %v2674, 0.044715
    %v2689 = vmul.f32 %v2676, 0.044715
    %v2690 = vmul.f32 %v2680, 0.044715
    %v2691 = vmul.f32 %v2682, 0.044715
    %v2692 = vmul.f32 %v2688, %v2674
    %v2693 = vmul.f32 %v2689, %v2676
    %v2694 = vmul.f32 %v2690, %v2680
    %v2695 = vmul.f32 %v2691, %v2682
    %v2696 = vmul.f32 %v2692, %v2674
    %v2697 = vmul.f32 %v2693, %v2676
    %v2698 = vmul.f32 %v2694, %v2680
    %v2699 = vmul.f32 %v2695, %v2682
    %v2700 = vadd.f32 %v2674, %v2696
    %v2701 = vadd.f32 %v2676, %v2697
    %v2702 = vadd.f32 %v2680, %v2698
    %v2703 = vadd.f32 %v2682, %v2699
    %v2704 = vmul.f32 %v2700, 0.7978846
    %v2705 = vmul.f32 %v2701, 0.7978846
    %v2706 = vmul.f32 %v2702, 0.7978846
    %v2707 = vmul.f32 %v2703, 0.7978846
    %v2708 = vtanh.pop %v2704
    %v2709 = vtanh.pop %v2705
    %v2710 = vtanh.pop %v2706
    %v2711 = vtanh.pop %v2707
    %v2712 = vadd.f32 %v2708, 1.0
    %v2713 = vadd.f32 %v2709, 1.0
    %v2714 = vadd.f32 %v2710, 1.0
    %v2715 = vadd.f32 %v2711, 1.0
    %v2716 = vmul.f32 %v2684, %v2712
    %v2717 = vmul.f32 %v2685, %v2713
    %v2718 = vmul.f32 %v2686, %v2714
    %v2719 = vmul.f32 %v2687, %v2715
    %s2720 = scalar_lea.vmem [#allocation7], 256
    %v2721 = vld [vmem:[%s2720] sm:$0xff]
    %v2722 = vld [vmem:[%s2720 + $0x8] sm:$0xff]
    %v2723 = vld [vmem:[%s2720 + $0x10] sm:$0xff]
    %v2724 = vld [vmem:[%s2720 + $0x18] sm:$0xff]
    %v2725 = vld [vmem:[%s2720 + $0x20] sm:$0xff]
    %v2726 = vld [vmem:[%s2720 + $0x28] sm:$0xff]
    %v2727 = vld [vmem:[%s2720 + $0x30] sm:$0xff]
    %v2728 = vld [vmem:[%s2720 + $0x38] sm:$0xff]
    %v2729 = vld [vmem:[%s2720 + $0x40] sm:$0xff]
    %v2730 = vld [vmem:[%s2720 + $0x48] sm:$0xff]
    %v2731 = vld [vmem:[%s2720 + $0x50] sm:$0xff]
    %v2732 = vld [vmem:[%s2720 + $0x58] sm:$0xff]
    %v2733 = vld [vmem:[%s2720 + $0x60] sm:$0xff]
    %v2734 = vld [vmem:[%s2720 + $0x68] sm:$0xff]
    %v2735 = vld [vmem:[%s2720 + $0x70] sm:$0xff]
    %v2736 = vld [vmem:[%s2720 + $0x78] sm:$0xff]
    %v2737 = vld [vmem:[%s2720 + $0x80] sm:$0xff]
    %v2738 = vld [vmem:[%s2720 + $0x88] sm:$0xff]
    %v2739 = vld [vmem:[%s2720 + $0x90] sm:$0xff]
    %v2740 = vld [vmem:[%s2720 + $0x98] sm:$0xff]
    %v2741 = vld [vmem:[%s2720 + $0xa0] sm:$0xff]
    %v2742 = vld [vmem:[%s2720 + $0xa8] sm:$0xff]
    %v2743 = vld [vmem:[%s2720 + $0xb0] sm:$0xff]
    %v2744 = vld [vmem:[%s2720 + $0xb8] sm:$0xff]
    %v2745 = vld [vmem:[%s2720 + $0xc0] sm:$0xff]
    %v2746 = vld [vmem:[%s2720 + $0xc8] sm:$0xff]
    %v2747 = vld [vmem:[%s2720 + $0xd0] sm:$0xff]
    %v2748 = vld [vmem:[%s2720 + $0xd8] sm:$0xff]
    %v2749 = vld [vmem:[%s2720 + $0xe0] sm:$0xff]
    %v2750 = vld [vmem:[%s2720 + $0xe8] sm:$0xff]
    %v2751 = vld [vmem:[%s2720 + $0xf0] sm:$0xff]
    %v2752 = vld [vmem:[%s2720 + $0xf8] sm:$0xff]
    %s2753 = scalar_lea.vmem %s13, 1
    %v2754 = vld [vmem:[%s2753] sm:$0x1]
    %v2756 = vlaneseq
    %v2757 = vshrl.u32 %v2756, 7
    %v2758 = vsub.s32 0, %v2757
    %v2759 = vrot.slane %v2754, %v2758
    %2761 = vmatprep.subr.mxu0 0.0
    %2762 = vmatpush1.msra.mxu0 %v2721
    %2763 = vmatprep.subr.mxu0 0.0
    %2764 = vmatpush1.msra.mxu0 %v2722
    %2765 = vmatprep.subr.mxu0 0.0
    %2766 = vmatpush1.msra.mxu0 %v2723
    %2767 = vmatprep.subr.mxu0 0.0
    %2768 = vmatpush1.msra.mxu0 %v2724
    %2769 = vmatprep.subr.mxu0 0.0
    %2770 = vmatpush1.msra.mxu0 %v2725
    %2771 = vmatprep.subr.mxu0 0.0
    %2772 = vmatpush1.msra.mxu0 %v2726
    %2773 = vmatprep.subr.mxu0 0.0
    %2774 = vmatpush1.msra.mxu0 %v2727
    %2775 = vmatprep.subr.mxu0 0.0
    %2776 = vmatpush1.msra.mxu0 %v2728
    %2777 = vmatprep.subr.mxu0 0.0
    %2778 = vmatpush1.msra.mxu0 %v2729
    %2779 = vmatprep.subr.mxu0 0.0
    %2780 = vmatpush1.msra.mxu0 %v2730
    %2781 = vmatprep.subr.mxu0 0.0
    %2782 = vmatpush1.msra.mxu0 %v2731
    %2783 = vmatprep.subr.mxu0 0.0
    %2784 = vmatpush1.msra.mxu0 %v2732
    %2785 = vmatprep.subr.mxu0 0.0
    %2786 = vmatpush1.msra.mxu0 %v2733
    %2787 = vmatprep.subr.mxu0 0.0
    %2788 = vmatpush1.msra.mxu0 %v2734
    %2789 = vmatprep.subr.mxu0 0.0
    %2790 = vmatpush1.msra.mxu0 %v2735
    %2791 = vmatprep.subr.mxu0 0.0
    %2792 = vmatpush1.msra.mxu0 %v2736
    %2793 = vmatprep.subr.mxu0 0.0
    %2794 = vmatpush1.msra.mxu0 %v2737
    %2795 = vmatprep.subr.mxu0 0.0
    %2796 = vmatpush1.msra.mxu0 %v2738
    %2797 = vmatprep.subr.mxu0 0.0
    %2798 = vmatpush1.msra.mxu0 %v2739
    %2799 = vmatprep.subr.mxu0 0.0
    %2800 = vmatpush1.msra.mxu0 %v2740
    %2801 = vmatprep.subr.mxu0 0.0
    %2802 = vmatpush1.msra.mxu0 %v2741
    %2803 = vmatprep.subr.mxu0 0.0
    %2804 = vmatpush1.msra.mxu0 %v2742
    %2805 = vmatprep.subr.mxu0 0.0
    %2806 = vmatpush1.msra.mxu0 %v2743
    %2807 = vmatprep.subr.mxu0 0.0
    %2808 = vmatpush1.msra.mxu0 %v2744
    %2809 = vmatprep.subr.mxu0 0.0
    %2810 = vmatpush1.msra.mxu0 %v2745
    %2811 = vmatprep.subr.mxu0 0.0
    %2812 = vmatpush1.msra.mxu0 %v2746
    %2813 = vmatprep.subr.mxu0 0.0
    %2814 = vmatpush1.msra.mxu0 %v2747
    %2815 = vmatprep.subr.mxu0 0.0
    %2816 = vmatpush1.msra.mxu0 %v2748
    %2817 = vmatprep.subr.mxu0 0.0
    %2818 = vmatpush1.msra.mxu0 %v2749
    %2819 = vmatprep.subr.mxu0 0.0
    %2820 = vmatpush1.msra.mxu0 %v2750
    %2821 = vmatprep.subr.mxu0 0.0
    %2822 = vmatpush1.msra.mxu0 %v2751
    %2823 = vmatprep.subr.mxu0 0.0
    %2824 = vmatpush1.msra.mxu0 %v2752
    %2825 = vmatprep.mubr.f32.mxu0 %v2717
    %2826 = vmatmul.mubr.f32.gmra.mrb[0].mxu0 %v2716
    %v2827 = vpop.f32.mrb[0].mxu0
    %v2828 = vadd.f32 %v2759, %v2827
    %v2829 = vpop.f32.mrb[0].mxu0
    %2830 = vmatprep.mubr.f32.mxu0 %v2719
    %2831 = vmatmul.mubr.f32.gmra.mrb[0].mxu0 %v2718
    %v2832 = vpop.f32.mrb[0].mxu0
    %v2833 = vadd.f32 %v2759, %v2832
    %v2834 = vpop.f32.mrb[0].mxu0
    %2835 = vdwg.mxu0
    %v2836 = vadd.f32 %v2828, %v2559
    %v2837 = vadd.f32 %v2833, %v2560
    %s2838 = scalar_lea.vmem %s14, 1
    %v2839 = vld [vmem:[%s2838] sm:$0x1]
    %s2840 = scalar_lea.vmem %s15, 1
    %v2841 = vld [vmem:[%s2840] sm:$0x1]
    %2842 = vadd.xlane.f32.xlu0 %v2836
    %v2843 = vpop.xlane.xlu0 %2842
    %2844 = vadd.xlane.f32.xlu0 %v2837
    %v2845 = vpop.xlane.xlu0 %2844
    %v2846 = vmul.f32 %v2843, %v142
    %v2847 = vmul.f32 %v2845, %v142
    %v2848 = vsub.f32 %v2836, %v2846
    %v2849 = vsub.f32 %v2837, %v2847
    %v2850 = vmul.f32 %v2848, %v2848
    %v2851 = vmul.f32 %v2849, %v2849
    %2852 = vadd.xlane.f32.xlu0 %v2850
    %v2853 = vpop.xlane.xlu0 %2852
    %2854 = vadd.xlane.f32.xlu0 %v2851
    %v2855 = vpop.xlane.xlu0 %2854
    %v2856 = vmul.f32 %v2853, %v142
    %v2857 = vmul.f32 %v2855, %v142
    %v2858 = vadd.f32 %v2856, 1e-12
    %v2859 = vadd.f32 %v2857, 1e-12
    %v2860 = vrsqrt.pop %v2858
    %v2861 = vrsqrt.pop %v2859
    %v2862 = vmul.f32 %v2848, %v2860
    %v2863 = vmul.f32 %v2849, %v2861
    %v2865 = vlaneseq
    %v2866 = vshrl.u32 %v2865, 7
    %v2867 = vsub.s32 0, %v2866
    %v2868 = vrot.slane %v2839, %v2867
    %v2870 = vmul.f32 %v2862, %v2868
    %v2871 = vmul.f32 %v2863, %v2868
    %v2873 = vlaneseq
    %v2874 = vshrl.u32 %v2873, 7
    %v2875 = vsub.s32 0, %v2874
    %v2876 = vrot.slane %v2841, %v2875
    %v2878 = vadd.f32 %v2870, %v2876
    %v2879 = vadd.f32 %v2871, %v2876
    %v2881 = vrot.slane %v2879, 7
    %vm2883 = vcmask 1040384
    %v2884 = vsel %vm2883, %v2878, %v2881
    %v2885 = vld [vmem:[#allocation8] sm:$0xff]
    %v2886 = vld [vmem:[#allocation8 + $0x8] sm:$0xff]
    %v2887 = vld [vmem:[#allocation8 + $0x10] sm:$0xff]
    %v2888 = vld [vmem:[#allocation8 + $0x18] sm:$0xff]
    %v2889 = vld [vmem:[#allocation8 + $0x20] sm:$0xff]
    %v2890 = vld [vmem:[#allocation8 + $0x28] sm:$0xff]
    %v2891 = vld [vmem:[#allocation8 + $0x30] sm:$0xff]
    %v2892 = vld [vmem:[#allocation8 + $0x38] sm:$0xff]
    %v2893 = vld [vmem:[#allocation8 + $0x40] sm:$0xff]
    %v2894 = vld [vmem:[#allocation8 + $0x48] sm:$0xff]
    %v2895 = vld [vmem:[#allocation8 + $0x50] sm:$0xff]
    %v2896 = vld [vmem:[#allocation8 + $0x58] sm:$0xff]
    %v2897 = vld [vmem:[#allocation8 + $0x60] sm:$0xff]
    %v2898 = vld [vmem:[#allocation8 + $0x68] sm:$0xff]
    %v2899 = vld [vmem:[#allocation8 + $0x70] sm:$0xff]
    %v2900 = vld [vmem:[#allocation8 + $0x78] sm:$0xff]
    %v2901 = vld [vmem:[%s17] sm:$0x1]
    %v2903 = vlaneseq
    %v2904 = vshrl.u32 %v2903, 7
    %v2905 = vsub.s32 0, %v2904
    %v2906 = vrot.slane %v2901, %v2905
    %2908 = vmatprep.subr.mxu0 0.0
    %2909 = vmatpush1.msra.mxu0 %v2885
    %2910 = vmatprep.subr.mxu0 0.0
    %2911 = vmatpush1.msra.mxu0 %v2886
    %2912 = vmatprep.subr.mxu0 0.0
    %2913 = vmatpush1.msra.mxu0 %v2887
    %2914 = vmatprep.subr.mxu0 0.0
    %2915 = vmatpush1.msra.mxu0 %v2888
    %2916 = vmatprep.subr.mxu0 0.0
    %2917 = vmatpush1.msra.mxu0 %v2889
    %2918 = vmatprep.subr.mxu0 0.0
    %2919 = vmatpush1.msra.mxu0 %v2890
    %2920 = vmatprep.subr.mxu0 0.0
    %2921 = vmatpush1.msra.mxu0 %v2891
    %2922 = vmatprep.subr.mxu0 0.0
    %2923 = vmatpush1.msra.mxu0 %v2892
    %2924 = vmatprep.subr.mxu0 0.0
    %2925 = vmatpush1.msra.mxu0 %v2893
    %2926 = vmatprep.subr.mxu0 0.0
    %2927 = vmatpush1.msra.mxu0 %v2894
    %2928 = vmatprep.subr.mxu0 0.0
    %2929 = vmatpush1.msra.mxu0 %v2895
    %2930 = vmatprep.subr.mxu0 0.0
    %2931 = vmatpush1.msra.mxu0 %v2896
    %2932 = vmatprep.subr.mxu0 0.0
    %2933 = vmatpush1.msra.mxu0 %v2897
    %2934 = vmatprep.subr.mxu0 0.0
    %2935 = vmatpush1.msra.mxu0 %v2898
    %2936 = vmatprep.subr.mxu0 0.0
    %2937 = vmatpush1.msra.mxu0 %v2899
    %2938 = vmatprep.subr.mxu0 0.0
    %2939 = vmatpush1.msra.mxu0 %v2900
    %2940 = vmatprep.subr.mxu0 0.0
    %2941 = vmatpush1.msra.mxu0 0.0
    %2942 = vmatprep.subr.mxu0 0.0
    %2943 = vmatpush1.msra.mxu0 0.0
    %2944 = vmatprep.subr.mxu0 0.0
    %2945 = vmatpush1.msra.mxu0 0.0
    %2946 = vmatprep.subr.mxu0 0.0
    %2947 = vmatpush1.msra.mxu0 0.0
    %2948 = vmatprep.subr.mxu0 0.0
    %2949 = vmatpush1.msra.mxu0 0.0
    %2950 = vmatprep.subr.mxu0 0.0
    %2951 = vmatpush1.msra.mxu0 0.0
    %2952 = vmatprep.subr.mxu0 0.0
    %2953 = vmatpush1.msra.mxu0 0.0
    %2954 = vmatprep.subr.mxu0 0.0
    %2955 = vmatpush1.msra.mxu0 0.0
    %2956 = vmatprep.subr.mxu0 0.0
    %2957 = vmatpush1.msra.mxu0 0.0
    %2958 = vmatprep.subr.mxu0 0.0
    %2959 = vmatpush1.msra.mxu0 0.0
    %2960 = vmatprep.subr.mxu0 0.0
    %2961 = vmatpush1.msra.mxu0 0.0
    %2962 = vmatprep.subr.mxu0 0.0
    %2963 = vmatpush1.msra.mxu0 0.0
    %2964 = vmatprep.subr.mxu0 0.0
    %2965 = vmatpush1.msra.mxu0 0.0
    %2966 = vmatprep.subr.mxu0 0.0
    %2967 = vmatpush1.msra.mxu0 0.0
    %2968 = vmatprep.subr.mxu0 0.0
    %2969 = vmatpush1.msra.mxu0 0.0
    %2970 = vmatprep.subr.mxu0 0.0
    %2971 = vmatpush1.msra.mxu0 0.0
    %2972 = vmatprep.mubr.f32.mxu0 0.0
    %2973 = vmatmul.mubr.f32.gmra.mrb[0].mxu0 %v2884
    %v2974 = vpop.f32.mrb[0].mxu0
    %v2975 = vadd.f32 %v2906, %v2974
    %v2976 = vpop.f32.mrb[0].mxu0
    %2977 = vdwg.mxu0
    %v2978 = vtanh.pop %v2975
    %v2979 = vld [vmem:[#allocation10] sm:$0xff]
    %v2980 = vld [vmem:[#allocation10 + $0x8] sm:$0xff]
    %v2981 = vld [vmem:[#allocation10 + $0x10] sm:$0xff]
    %v2982 = vld [vmem:[#allocation10 + $0x18] sm:$0xff]
    %v2983 = vld [vmem:[#allocation10 + $0x20] sm:$0xff]
    %v2984 = vld [vmem:[#allocation10 + $0x28] sm:$0xff]
    %v2985 = vld [vmem:[#allocation10 + $0x30] sm:$0xff]
    %v2986 = vld [vmem:[#allocation10 + $0x38] sm:$0xff]
    %v2987 = vld [vmem:[#allocation10 + $0x40] sm:$0xff]
    %v2988 = vld [vmem:[#allocation10 + $0x48] sm:$0xff]
    %v2989 = vld [vmem:[#allocation10 + $0x50] sm:$0xff]
    %v2990 = vld [vmem:[#allocation10 + $0x58] sm:$0xff]
    %v2991 = vld [vmem:[#allocation10 + $0x60] sm:$0xff]
    %v2992 = vld [vmem:[#allocation10 + $0x68] sm:$0xff]
    %v2993 = vld [vmem:[#allocation10 + $0x70] sm:$0xff]
    %v2994 = vld [vmem:[#allocation10 + $0x78] sm:$0xff]
    %v2995 = vld [vmem:[%s19] sm:$0x1]
    %v2997 = vlaneseq
    %v2998 = vshrl.u32 %v2997, 7
    %v2999 = vsub.s32 0, %v2998
    %v3000 = vrot.slane %v2995, %v2999
    %3002 = vmatprep.subr.mxu0 0.0
    %3003 = vmatpush1.msra.mxu0 %v2979
    %3004 = vmatprep.subr.mxu0 0.0
    %3005 = vmatpush1.msra.mxu0 %v2980
    %3006 = vmatprep.subr.mxu0 0.0
    %3007 = vmatpush1.msra.mxu0 %v2981
    %3008 = vmatprep.subr.mxu0 0.0
    %3009 = vmatpush1.msra.mxu0 %v2982
    %3010 = vmatprep.subr.mxu0 0.0
    %3011 = vmatpush1.msra.mxu0 %v2983
    %3012 = vmatprep.subr.mxu0 0.0
    %3013 = vmatpush1.msra.mxu0 %v2984
    %3014 = vmatprep.subr.mxu0 0.0
    %3015 = vmatpush1.msra.mxu0 %v2985
    %3016 = vmatprep.subr.mxu0 0.0
    %3017 = vmatpush1.msra.mxu0 %v2986
    %3018 = vmatprep.subr.mxu0 0.0
    %3019 = vmatpush1.msra.mxu0 %v2987
    %3020 = vmatprep.subr.mxu0 0.0
    %3021 = vmatpush1.msra.mxu0 %v2988
    %3022 = vmatprep.subr.mxu0 0.0
    %3023 = vmatpush1.msra.mxu0 %v2989
    %3024 = vmatprep.subr.mxu0 0.0
    %3025 = vmatpush1.msra.mxu0 %v2990
    %3026 = vmatprep.subr.mxu0 0.0
    %3027 = vmatpush1.msra.mxu0 %v2991
    %3028 = vmatprep.subr.mxu0 0.0
    %3029 = vmatpush1.msra.mxu0 %v2992
    %3030 = vmatprep.subr.mxu0 0.0
    %3031 = vmatpush1.msra.mxu0 %v2993
    %3032 = vmatprep.subr.mxu0 0.0
    %3033 = vmatpush1.msra.mxu0 %v2994
    %3034 = vmatprep.subr.mxu0 0.0
    %3035 = vmatpush1.msra.mxu0 0.0
    %3036 = vmatprep.subr.mxu0 0.0
    %3037 = vmatpush1.msra.mxu0 0.0
    %3038 = vmatprep.subr.mxu0 0.0
    %3039 = vmatpush1.msra.mxu0 0.0
    %3040 = vmatprep.subr.mxu0 0.0
    %3041 = vmatpush1.msra.mxu0 0.0
    %3042 = vmatprep.subr.mxu0 0.0
    %3043 = vmatpush1.msra.mxu0 0.0
    %3044 = vmatprep.subr.mxu0 0.0
    %3045 = vmatpush1.msra.mxu0 0.0
    %3046 = vmatprep.subr.mxu0 0.0
    %3047 = vmatpush1.msra.mxu0 0.0
    %3048 = vmatprep.subr.mxu0 0.0
    %3049 = vmatpush1.msra.mxu0 0.0
    %3050 = vmatprep.subr.mxu0 0.0
    %3051 = vmatpush1.msra.mxu0 0.0
    %3052 = vmatprep.subr.mxu0 0.0
    %3053 = vmatpush1.msra.mxu0 0.0
    %3054 = vmatprep.subr.mxu0 0.0
    %3055 = vmatpush1.msra.mxu0 0.0
    %3056 = vmatprep.subr.mxu0 0.0
    %3057 = vmatpush1.msra.mxu0 0.0
    %3058 = vmatprep.subr.mxu0 0.0
    %3059 = vmatpush1.msra.mxu0 0.0
    %3060 = vmatprep.subr.mxu0 0.0
    %3061 = vmatpush1.msra.mxu0 0.0
    %3062 = vmatprep.subr.mxu0 0.0
    %3063 = vmatpush1.msra.mxu0 0.0
    %3064 = vmatprep.subr.mxu0 0.0
    %3065 = vmatpush1.msra.mxu0 0.0
    %3066 = vmatprep.mubr.f32.mxu0 0.0
    %3067 = vmatmul.mubr.f32.gmra.mrb[0].mxu0 %v2978
    %v3068 = vpop.f32.mrb[0].mxu0
    %v3069 = vadd.f32 %v3000, %v3068
    %v3070 = vpop.f32.mrb[0].mxu0
    %3071 = vdwg.mxu0
    %3072 = vst [vmem:[#allocation11] sm:$0x3] %v3069
    // Predicated region
    $region102: #{bert_multidim_regression_forward.1} parent=1 // pred_check
      _
    $region103: #{bert_multidim_regression_forward.1} parent=1 // pred_check_branch
      %3074 = sbr.rel (0) target = $region105
    $region104: #{bert_multidim_regression_forward.1} parent=1 // pred_region
      %s3076 = ssub.s32 32, 32
      %3077 = vsyncadd [#allocation4], %s3076
      %s3079 = sshll.u32 [#allocation11], 4
      %s3080 = int_to_ptr.vmem [resolvable:$true] %s3079
      %3082 = dma.vmem_to_hbm [thread:$0]  %s3080, 32, %s20, [#allocation4]
    $region105: #{bert_multidim_regression_forward.1} parent=1 // pred_fallthru
      _
    // Predicated region
    $region106: #{bert_multidim_regression_forward.1} parent=1 // pred_check
      _
    $region107: #{bert_multidim_regression_forward.1} parent=1 // pred_check_branch
      %3084 = sbr.rel (0) target = $region109
    $region108: #{bert_multidim_regression_forward.1} parent=1 // pred_region
      %3085 = dma.done [#allocation4], 32
    $region109: #{bert_multidim_regression_forward.1} parent=1 // pred_fallthru
      _
    %3086 = vsyncpa [#allocation3], 1
    %3087 = vsyncpa [#allocation6], 1
    %3088 = vsyncpa [#allocation9], 1
    %3089 = vsyncpa [#allocation4], 1

</llo_original>
